<compile_context>
chip_gen: v5e
topology: v5e:2x2
jax: 0.10.0
libtpu: 0.0.40
codegen_flags: <defaults>
</compile_context>

<pallas_src>
import math

import jax
import jax.numpy as jnp
from jax.experimental import pallas as pl
from jax.experimental.pallas import tpu as pltpu

# ------------------------- config (mirrors torch config) -------------------------
BATCH = 2
MAX_SEQ_LEN = 8
HIDDEN = 32
NUM_HEADS = 4
HEAD_DIM = HIDDEN // NUM_HEADS
DEPTH = 2
TOKEN_VOCAB = 50
TAG_VOCAB = 10
DROPOUT = 0.0                       # dropout == identity (eval-equivalent semantics)
LN_EPS = 1e-5
ATTN_SCALE = math.sqrt(HIDDEN)      # reference divides by sqrt(hidden_dim), NOT sqrt(head_dim)

VEC_LANES = 128                     # lane width of the packed bias/LN slab
OUT_PAD = 128                       # lane-dense padded head-output width (>= TAG_VOCAB)
VEC_ROWS = 24                       # 2 (emb LN) + DEPTH*8 + 2 (fc biases) = 20, padded to 24


# ------------------------- in-kernel math helpers -------------------------
def _layernorm(x, g, b):
    mu = jnp.mean(x, axis=-1, keepdims=True)
    var = jnp.mean((x - mu) ** 2, axis=-1, keepdims=True)
    return (x - mu) * jax.lax.rsqrt(var + LN_EPS) * g + b


def _erf(x):
    # Abramowitz & Stegun 7.1.26 (max abs err ~1.5e-7), built only from ops that
    # lower cleanly in Mosaic (exp/mul/div/where).
    a1, a2, a3, a4, a5 = 0.254829592, -0.284496736, 1.421413741, -1.453152027, 1.061405429
    p = 0.3275911
    s = jnp.where(x >= 0.0, 1.0, -1.0)
    ax = jnp.abs(x)
    t = 1.0 / (1.0 + p * ax)
    poly = ((((a5 * t + a4) * t + a3) * t + a2) * t + a1) * t
    y = 1.0 - poly * jnp.exp(-ax * ax)
    return s * y


def _gelu_exact(x):
    # torch nn.GELU() default is exact (erf-based) GELU.
    return 0.5 * x * (1.0 + _erf(x * (1.0 / math.sqrt(2.0))))


def _dot_t(a, b):
    # a @ b.T without an explicit in-kernel transpose.
    return jax.lax.dot_general(a, b, (((1,), (1,)), ((), ())),
                               preferred_element_type=jnp.float32)


# ------------------------- fused forward kernel -------------------------
def transformer_kernel(x_ref, mask2d_ref, vec_ref,
                       wqkv_ref, wo_ref, w1_ref, w2_ref,
                       fc1w_ref, fc2w_ref, out_ref):
    H = HIDDEN
    S = MAX_SEQ_LEN

    def vrow(r, width):
        # one packed (1, width) bias / LN vector from the slab
        return vec_ref[r:r + 1, :width]

    # ---- embedding layernorm (token+pos sum computed in wrapper; dropout p=0 -> id) ----
    x = _layernorm(x_ref[...], vrow(0, H), vrow(1, H))                     # (B*S, H)

    # ---- transformer blocks (static unroll over DEPTH) ----
    for d in range(DEPTH):
        base = 2 + d * 8
        # fused QKV projection: (B*S, H) @ (H, 3H) + packed bias
        qkv = jnp.dot(x, wqkv_ref[d], preferred_element_type=jnp.float32) + vrow(base + 0, 3 * H)
        wo = wo_ref[d]                                                     # (H, H)

        per_batch = []
        for b in range(BATCH):                       # static loop; attention is per-batch
            rows = slice(b * S, (b + 1) * S)
            m2d = mask2d_ref[b]                      # (S, S) 0/1 mask (row x col outer product)
            acc = None
            for h in range(NUM_HEADS):               # static loop over heads
                qh = qkv[rows, h * HEAD_DIM:(h + 1) * HEAD_DIM]
                kh = qkv[rows, H + h * HEAD_DIM:H + (h + 1) * HEAD_DIM]
                vh = qkv[rows, 2 * H + h * HEAD_DIM:2 * H + (h + 1) * HEAD_DIM]
                scores = _dot_t(qh, kh) * (1.0 / ATTN_SCALE)               # (S, S)
                # masked_fill semantics (exactly -1e12) so fully-masked rows match torch
                scores = jnp.where(m2d == 0.0, -1e12, scores)
                smax = jnp.max(scores, axis=-1, keepdims=True)
                e = jnp.exp(scores - smax)
                attn = e / jnp.sum(e, axis=-1, keepdims=True)
                hout = jnp.dot(attn, vh, preferred_element_type=jnp.float32)   # (S, D)
                # fold concat into output proj: ctx @ Wo == sum_h hout_h @ Wo[hD:(h+1)D, :]
                contrib = jnp.dot(hout, wo[h * HEAD_DIM:(h + 1) * HEAD_DIM, :],
                                  preferred_element_type=jnp.float32)          # (S, H)
                acc = contrib if acc is None else acc + contrib
            per_batch.append(acc)
        attn_out = jnp.concatenate(per_batch, axis=0) + vrow(base + 1, H)      # (B*S, H)

        x1 = _layernorm(attn_out + x, vrow(base + 2, H), vrow(base + 3, H))
        h1 = jnp.dot(x1, w1_ref[d], preferred_element_type=jnp.float32) + vrow(base + 4, 4 * H)
        h1 = _gelu_exact(h1)
        mlp = jnp.dot(h1, w2_ref[d], preferred_element_type=jnp.float32) + vrow(base + 5, H)
        x = _layernorm(mlp + x1, vrow(base + 6, H), vrow(base + 7, H))

    # ---- head (fc1/fc2 weights pre-normalized + padded in the wrapper) ----
    fb = 2 + DEPTH * 8
    hh = _gelu_exact(jnp.dot(x, fc1w_ref[...], preferred_element_type=jnp.float32) + vrow(fb, H))
    out_ref[...] = jnp.dot(hh, fc2w_ref[...],
                           preferred_element_type=jnp.float32) + vrow(fb + 1, OUT_PAD)


# ------------------------- pallas_call wrapper -------------------------
@jax.jit
def transformer_forward(packed, inputs, masks):
    # embedding gather + positional add stay in plain JAX (glue); LN is in-kernel
    x0 = packed["tok_emb"][inputs] + packed["pos_emb"]                     # (B, S, H)
    x0 = x0.reshape(BATCH * MAX_SEQ_LEN, HIDDEN)

    m = masks.astype(jnp.float32)
    mask2d = m[:, :, None] * m[:, None, :]                                 # (B, S, S)

    vmem_spec = lambda: pl.BlockSpec(memory_space=pltpu.MemorySpace.VMEM)
    out_padded = pl.pallas_call(
        transformer_kernel,
        out_shape=jax.ShapeDtypeStruct((BATCH * MAX_SEQ_LEN, OUT_PAD), jnp.float32),
        in_specs=[vmem_spec() for _ in range(9)],
        out_specs=vmem_spec(),
    )(x0, mask2d, packed["vec"],
      packed["wqkv"], packed["wo"], packed["w1"], packed["w2"],
      packed["fc1w"], packed["fc2w"])

    return out_padded[:, :TAG_VOCAB].reshape(BATCH, MAX_SEQ_LEN, TAG_VOCAB)


# ------------------------- deterministic parameter init & packing -------------------------
def init_params(key):
    keys = iter(jax.random.split(key, 64))

    def nrm(shape, scale=0.05):
        return scale * jax.random.normal(next(keys), shape, dtype=jnp.float32)

    H = HIDDEN
    p = {
        "tok_emb": nrm((TOKEN_VOCAB, H), 1.0),
        "pos_emb": nrm((1, MAX_SEQ_LEN, H), 1.0),            # torch.randn
        "emb_ln_g": jnp.ones((H,), jnp.float32),
        "emb_ln_b": jnp.zeros((H,), jnp.float32),
        "blocks": [],
    }
    for _ in range(DEPTH):
        p["blocks"].append({
            "wq": nrm((H, H)), "bq": nrm((H,)),              # weights stored as (in, out)
            "wk": nrm((H, H)), "bk": nrm((H,)),
            "wv": nrm((H, H)), "bv": nrm((H,)),
            "wo": nrm((H, H)), "bo": nrm((H,)),
            "ln1_g": jnp.ones((H,), jnp.float32), "ln1_b": jnp.zeros((H,), jnp.float32),
            "w1": nrm((H, 4 * H)), "b1": nrm((4 * H,)),
            "w2": nrm((4 * H, H)), "b2": nrm((H,)),
            "ln2_g": jnp.ones((H,), jnp.float32), "ln2_b": jnp.zeros((H,), jnp.float32),
        })
    p["fc1_w"] = nrm((H, H))                                 # torch layout (out, in)
    p["fc1_b"] = nrm((H,))
    p["fc2_w"] = nrm((TAG_VOCAB, H))                         # torch layout (out, in)
    p["fc2_b"] = nrm((TAG_VOCAB,))
    return p


def pack_params(p):
    H = HIDDEN

    def padrow(v):
        v = v.reshape(-1)
        return jnp.pad(v, (0, VEC_LANES - v.shape[0]))

    rows = [padrow(p["emb_ln_g"]), padrow(p["emb_ln_b"])]
    wqkv, wo, w1, w2 = [], [], [], []
    for blk in p["blocks"]:
        wqkv.append(jnp.concatenate([blk["wq"], blk["wk"], blk["wv"]], axis=1))   # (H, 3H)
        wo.append(blk["wo"])
        w1.append(blk["w1"])
        w2.append(blk["w2"])
        rows += [padrow(jnp.concatenate([blk["bq"], blk["bk"], blk["bv"]])),      # packed QKV bias
                 padrow(blk["bo"]),
                 padrow(blk["ln1_g"]), padrow(blk["ln1_b"]),
                 padrow(blk["b1"]), padrow(blk["b2"]),
                 padrow(blk["ln2_g"]), padrow(blk["ln2_b"])]

    # L2-normalize fc weights along dim=-1 of the torch-layout (out, in) matrices,
    # i.e. F.normalize(w, p=2, dim=-1, eps=1e-5) — hoisted out of the kernel.
    def l2norm_rows(w):
        n = jnp.sqrt(jnp.sum(w * w, axis=-1, keepdims=True))
        return w / jnp.maximum(n, 1e-5)

    fc1w = l2norm_rows(p["fc1_w"]).T                                             # (H, H) in x out
    fc2w = l2norm_rows(p["fc2_w"]).T                                             # (H, TAG)
    fc2w = jnp.pad(fc2w, ((0, 0), (0, OUT_PAD - TAG_VOCAB)))                     # (H, 128) lane-dense

    rows += [padrow(p["fc1_b"]), padrow(p["fc2_b"])]
    while len(rows) < VEC_ROWS:
        rows.append(jnp.zeros((VEC_LANES,), jnp.float32))
    vec = jnp.stack(rows, axis=0)                                                # (24, 128)

    return {
        "tok_emb": p["tok_emb"],
        "pos_emb": p["pos_emb"],
        "vec": vec,
        "wqkv": jnp.stack(wqkv),       # (DEPTH, H, 3H)
        "wo": jnp.stack(wo),           # (DEPTH, H, H)
        "w1": jnp.stack(w1),           # (DEPTH, H, 4H)
        "w2": jnp.stack(w2),           # (DEPTH, 4H, H)
        "fc1w": fc1w,
        "fc2w": fc2w,
    }


if __name__ == "__main__":
    key = jax.random.PRNGKey(0)
    pkey, ikey = jax.random.split(key)
    params = init_params(pkey)
    packed = pack_params(params)

    inputs = jax.random.randint(ikey, (BATCH, MAX_SEQ_LEN), 0, TOKEN_VOCAB)
    lengths = jnp.array([MAX_SEQ_LEN, 5], dtype=jnp.int32)
    masks = (jnp.arange(MAX_SEQ_LEN)[None, :] < lengths[:, None]).astype(jnp.float32)

    out = transformer_forward(packed, inputs, masks)
    jax.block_until_ready(out)
    assert out.shape == (BATCH, MAX_SEQ_LEN, TAG_VOCAB), out.shape
    assert bool(jnp.all(jnp.isfinite(out)))
    print("KERNEL_OK")
</pallas_src>

<mosaic_0001>
module attributes {stable_mosaic.version = 11 : i64} {
  func.func @transformer_kernel(%arg0: memref<16x32xf32, #tpu.memory_space<vmem>>, %arg1: memref<2x8x8xf32, #tpu.memory_space<vmem>>, %arg2: memref<24x128xf32, #tpu.memory_space<vmem>>, %arg3: memref<2x32x96xf32, #tpu.memory_space<vmem>>, %arg4: memref<2x32x32xf32, #tpu.memory_space<vmem>>, %arg5: memref<2x32x128xf32, #tpu.memory_space<vmem>>, %arg6: memref<2x128x32xf32, #tpu.memory_space<vmem>>, %arg7: memref<32x32xf32, #tpu.memory_space<vmem>>, %arg8: memref<32x128xf32, #tpu.memory_space<vmem>>, %arg9: memref<16x128xf32, #tpu.memory_space<vmem>>) attributes {dimension_semantics = [], scalar_prefetch = 0 : i64, scratch_operands = 0 : i64, tpu.core_type = #tpu.core_type<tc>} {
    %c0 = arith.constant 0 : index
    %c0_0 = arith.constant 0 : index
    %0 = vector.load %arg0[%c0, %c0_0] : memref<16x32xf32, #tpu.memory_space<vmem>>, vector<16x32xf32>
    %c0_1 = arith.constant 0 : index
    %c0_2 = arith.constant 0 : index
    %1 = vector.load %arg2[%c0_1, %c0_2] : memref<24x128xf32, #tpu.memory_space<vmem>>, vector<1x32xf32>
    %c1 = arith.constant 1 : index
    %c0_3 = arith.constant 0 : index
    %2 = vector.load %arg2[%c1, %c0_3] : memref<24x128xf32, #tpu.memory_space<vmem>>, vector<1x32xf32>
    %cst = arith.constant dense<0.000000e+00> : vector<16xf32>
    %3 = vector.multi_reduction <add>, %0, %cst [1] : vector<16x32xf32> to vector<16xf32>
    %4 = vector.shape_cast %3 : vector<16xf32> to vector<16x1xf32>
    %cst_4 = arith.constant 3.200000e+01 : f32
    %5 = vector.broadcast %cst_4 : f32 to vector<16x1xf32>
    %6 = arith.divf %4, %5 : vector<16x1xf32>
    %7 = vector.broadcast %6 : vector<16x1xf32> to vector<16x32xf32>
    %8 = arith.subf %0, %7 : vector<16x32xf32>
    %9 = arith.mulf %8, %8 : vector<16x32xf32>
    %cst_5 = arith.constant dense<0.000000e+00> : vector<16xf32>
    %10 = vector.multi_reduction <add>, %9, %cst_5 [1] : vector<16x32xf32> to vector<16xf32>
    %11 = vector.shape_cast %10 : vector<16xf32> to vector<16x1xf32>
    %cst_6 = arith.constant 3.200000e+01 : f32
    %12 = vector.broadcast %cst_6 : f32 to vector<16x1xf32>
    %13 = arith.divf %11, %12 : vector<16x1xf32>
    %14 = vector.broadcast %6 : vector<16x1xf32> to vector<16x32xf32>
    %15 = arith.subf %0, %14 : vector<16x32xf32>
    %cst_7 = arith.constant 9.99999974E-6 : f32
    %16 = vector.broadcast %cst_7 : f32 to vector<16x1xf32>
    %17 = arith.addf %13, %16 : vector<16x1xf32>
    %18 = math.rsqrt %17 : vector<16x1xf32>
    %19 = vector.broadcast %18 : vector<16x1xf32> to vector<16x32xf32>
    %20 = arith.mulf %15, %19 : vector<16x32xf32>
    %21 = vector.broadcast %1 : vector<1x32xf32> to vector<16x32xf32>
    %22 = arith.mulf %20, %21 : vector<16x32xf32>
    %23 = vector.broadcast %2 : vector<1x32xf32> to vector<16x32xf32>
    %24 = arith.addf %22, %23 : vector<16x32xf32>
    %c0_8 = arith.constant 0 : index
    %c0_9 = arith.constant 0 : index
    %c0_10 = arith.constant 0 : index
    %25 = vector.load %arg3[%c0_8, %c0_9, %c0_10] : memref<2x32x96xf32, #tpu.memory_space<vmem>>, vector<1x32x96xf32>
    %26 = vector.shape_cast %25 : vector<1x32x96xf32> to vector<32x96xf32>
    %cst_11 = arith.constant dense<0.000000e+00> : vector<16x96xf32>
    %27 = tpu.matmul %24, %26, %cst_11 {dimension_numbers = #tpu.dot_dimension_numbers<[1], [0], [0], [1], [0, 0, 1, 1], [], []>} : vector<16x32xf32>, vector<32x96xf32>, vector<16x96xf32> -> vector<16x96xf32>
    %c2 = arith.constant 2 : index
    %c0_12 = arith.constant 0 : index
    %28 = vector.load %arg2[%c2, %c0_12] : memref<24x128xf32, #tpu.memory_space<vmem>>, vector<1x96xf32>
    %29 = vector.broadcast %28 : vector<1x96xf32> to vector<16x96xf32>
    %30 = arith.addf %27, %29 : vector<16x96xf32>
    %c0_13 = arith.constant 0 : index
    %c0_14 = arith.constant 0 : index
    %c0_15 = arith.constant 0 : index
    %31 = vector.load %arg4[%c0_13, %c0_14, %c0_15] : memref<2x32x32xf32, #tpu.memory_space<vmem>>, vector<1x32x32xf32>
    %32 = vector.shape_cast %31 : vector<1x32x32xf32> to vector<32x32xf32>
    %c0_16 = arith.constant 0 : index
    %c0_17 = arith.constant 0 : index
    %c0_18 = arith.constant 0 : index
    %33 = vector.load %arg1[%c0_16, %c0_17, %c0_18] : memref<2x8x8xf32, #tpu.memory_space<vmem>>, vector<1x8x8xf32>
    %34 = vector.shape_cast %33 : vector<1x8x8xf32> to vector<8x8xf32>
    %35 = vector.extract_strided_slice %30 {offsets = [0, 0], sizes = [8, 8], strides = [1, 1]} : vector<16x96xf32> to vector<8x8xf32>
    %36 = vector.extract_strided_slice %30 {offsets = [0, 32], sizes = [8, 8], strides = [1, 1]} : vector<16x96xf32> to vector<8x8xf32>
    %37 = vector.extract_strided_slice %30 {offsets = [0, 64], sizes = [8, 8], strides = [1, 1]} : vector<16x96xf32> to vector<8x8xf32>
    %cst_19 = arith.constant dense<0.000000e+00> : vector<8x8xf32>
    %38 = tpu.matmul %35, %36, %cst_19 {dimension_numbers = #tpu.dot_dimension_numbers<[1], [1], [0], [0], [0, 0, 1, 0], [], []>} : vector<8x8xf32>, vector<8x8xf32>, vector<8x8xf32> -> vector<8x8xf32>
    %cst_20 = arith.constant 0.176776692 : f32
    %39 = vector.broadcast %cst_20 : f32 to vector<8x8xf32>
    %40 = arith.mulf %38, %39 : vector<8x8xf32>
    %cst_21 = arith.constant 0.000000e+00 : f32
    %41 = vector.broadcast %cst_21 : f32 to vector<8x8xf32>
    %42 = arith.cmpf oeq, %34, %41 : vector<8x8xf32>
    %cst_22 = arith.constant -9.99999995E+11 : f32
    %43 = vector.broadcast %cst_22 : f32 to vector<8x8xf32>
    %44 = arith.select %42, %43, %40 : vector<8x8xi1>, vector<8x8xf32>
    %cst_23 = arith.constant dense<0xFF800000> : vector<8xf32>
    %45 = vector.multi_reduction <maximumf>, %44, %cst_23 [1] : vector<8x8xf32> to vector<8xf32>
    %46 = vector.shape_cast %45 : vector<8xf32> to vector<8x1xf32>
    %47 = vector.broadcast %46 : vector<8x1xf32> to vector<8x8xf32>
    %48 = arith.subf %44, %47 : vector<8x8xf32>
    %49 = math.exp %48 : vector<8x8xf32>
    %cst_24 = arith.constant dense<0.000000e+00> : vector<8xf32>
    %50 = vector.multi_reduction <add>, %49, %cst_24 [1] : vector<8x8xf32> to vector<8xf32>
    %51 = vector.shape_cast %50 : vector<8xf32> to vector<8x1xf32>
    %52 = vector.broadcast %51 : vector<8x1xf32> to vector<8x8xf32>
    %53 = arith.divf %49, %52 : vector<8x8xf32>
    %cst_25 = arith.constant dense<0.000000e+00> : vector<8x8xf32>
    %54 = tpu.matmul %53, %37, %cst_25 {dimension_numbers = #tpu.dot_dimension_numbers<[1], [0], [0], [1], [0, 0, 1, 1], [], []>} : vector<8x8xf32>, vector<8x8xf32>, vector<8x8xf32> -> vector<8x8xf32>
    %55 = vector.extract_strided_slice %32 {offsets = [0, 0], sizes = [8, 32], strides = [1, 1]} : vector<32x32xf32> to vector<8x32xf32>
    %cst_26 = arith.constant dense<0.000000e+00> : vector<8x32xf32>
    %56 = tpu.matmul %54, %55, %cst_26 {dimension_numbers = #tpu.dot_dimension_numbers<[1], [0], [0], [1], [0, 0, 1, 1], [], []>} : vector<8x8xf32>, vector<8x32xf32>, vector<8x32xf32> -> vector<8x32xf32>
    %57 = vector.extract_strided_slice %30 {offsets = [0, 8], sizes = [8, 8], strides = [1, 1]} : vector<16x96xf32> to vector<8x8xf32>
    %58 = vector.extract_strided_slice %30 {offsets = [0, 40], sizes = [8, 8], strides = [1, 1]} : vector<16x96xf32> to vector<8x8xf32>
    %59 = vector.extract_strided_slice %30 {offsets = [0, 72], sizes = [8, 8], strides = [1, 1]} : vector<16x96xf32> to vector<8x8xf32>
    %cst_27 = arith.constant dense<0.000000e+00> : vector<8x8xf32>
    %60 = tpu.matmul %57, %58, %cst_27 {dimension_numbers = #tpu.dot_dimension_numbers<[1], [1], [0], [0], [0, 0, 1, 0], [], []>} : vector<8x8xf32>, vector<8x8xf32>, vector<8x8xf32> -> vector<8x8xf32>
    %cst_28 = arith.constant 0.176776692 : f32
    %61 = vector.broadcast %cst_28 : f32 to vector<8x8xf32>
    %62 = arith.mulf %60, %61 : vector<8x8xf32>
    %cst_29 = arith.constant 0.000000e+00 : f32
    %63 = vector.broadcast %cst_29 : f32 to vector<8x8xf32>
    %64 = arith.cmpf oeq, %34, %63 : vector<8x8xf32>
    %cst_30 = arith.constant -9.99999995E+11 : f32
    %65 = vector.broadcast %cst_30 : f32 to vector<8x8xf32>
    %66 = arith.select %64, %65, %62 : vector<8x8xi1>, vector<8x8xf32>
    %cst_31 = arith.constant dense<0xFF800000> : vector<8xf32>
    %67 = vector.multi_reduction <maximumf>, %66, %cst_31 [1] : vector<8x8xf32> to vector<8xf32>
    %68 = vector.shape_cast %67 : vector<8xf32> to vector<8x1xf32>
    %69 = vector.broadcast %68 : vector<8x1xf32> to vector<8x8xf32>
    %70 = arith.subf %66, %69 : vector<8x8xf32>
    %71 = math.exp %70 : vector<8x8xf32>
    %cst_32 = arith.constant dense<0.000000e+00> : vector<8xf32>
    %72 = vector.multi_reduction <add>, %71, %cst_32 [1] : vector<8x8xf32> to vector<8xf32>
    %73 = vector.shape_cast %72 : vector<8xf32> to vector<8x1xf32>
    %74 = vector.broadcast %73 : vector<8x1xf32> to vector<8x8xf32>
    %75 = arith.divf %71, %74 : vector<8x8xf32>
    %cst_33 = arith.constant dense<0.000000e+00> : vector<8x8xf32>
    %76 = tpu.matmul %75, %59, %cst_33 {dimension_numbers = #tpu.dot_dimension_numbers<[1], [0], [0], [1], [0, 0, 1, 1], [], []>} : vector<8x8xf32>, vector<8x8xf32>, vector<8x8xf32> -> vector<8x8xf32>
    %77 = vector.extract_strided_slice %32 {offsets = [8, 0], sizes = [8, 32], strides = [1, 1]} : vector<32x32xf32> to vector<8x32xf32>
    %cst_34 = arith.constant dense<0.000000e+00> : vector<8x32xf32>
    %78 = tpu.matmul %76, %77, %cst_34 {dimension_numbers = #tpu.dot_dimension_numbers<[1], [0], [0], [1], [0, 0, 1, 1], [], []>} : vector<8x8xf32>, vector<8x32xf32>, vector<8x32xf32> -> vector<8x32xf32>
    %79 = arith.addf %56, %78 : vector<8x32xf32>
    %80 = vector.extract_strided_slice %30 {offsets = [0, 16], sizes = [8, 8], strides = [1, 1]} : vector<16x96xf32> to vector<8x8xf32>
    %81 = vector.extract_strided_slice %30 {offsets = [0, 48], sizes = [8, 8], strides = [1, 1]} : vector<16x96xf32> to vector<8x8xf32>
    %82 = vector.extract_strided_slice %30 {offsets = [0, 80], sizes = [8, 8], strides = [1, 1]} : vector<16x96xf32> to vector<8x8xf32>
    %cst_35 = arith.constant dense<0.000000e+00> : vector<8x8xf32>
    %83 = tpu.matmul %80, %81, %cst_35 {dimension_numbers = #tpu.dot_dimension_numbers<[1], [1], [0], [0], [0, 0, 1, 0], [], []>} : vector<8x8xf32>, vector<8x8xf32>, vector<8x8xf32> -> vector<8x8xf32>
    %cst_36 = arith.constant 0.176776692 : f32
    %84 = vector.broadcast %cst_36 : f32 to vector<8x8xf32>
    %85 = arith.mulf %83, %84 : vector<8x8xf32>
    %cst_37 = arith.constant 0.000000e+00 : f32
    %86 = vector.broadcast %cst_37 : f32 to vector<8x8xf32>
    %87 = arith.cmpf oeq, %34, %86 : vector<8x8xf32>
    %cst_38 = arith.constant -9.99999995E+11 : f32
    %88 = vector.broadcast %cst_38 : f32 to vector<8x8xf32>
    %89 = arith.select %87, %88, %85 : vector<8x8xi1>, vector<8x8xf32>
    %cst_39 = arith.constant dense<0xFF800000> : vector<8xf32>
    %90 = vector.multi_reduction <maximumf>, %89, %cst_39 [1] : vector<8x8xf32> to vector<8xf32>
    %91 = vector.shape_cast %90 : vector<8xf32> to vector<8x1xf32>
    %92 = vector.broadcast %91 : vector<8x1xf32> to vector<8x8xf32>
    %93 = arith.subf %89, %92 : vector<8x8xf32>
    %94 = math.exp %93 : vector<8x8xf32>
    %cst_40 = arith.constant dense<0.000000e+00> : vector<8xf32>
    %95 = vector.multi_reduction <add>, %94, %cst_40 [1] : vector<8x8xf32> to vector<8xf32>
    %96 = vector.shape_cast %95 : vector<8xf32> to vector<8x1xf32>
    %97 = vector.broadcast %96 : vector<8x1xf32> to vector<8x8xf32>
    %98 = arith.divf %94, %97 : vector<8x8xf32>
    %cst_41 = arith.constant dense<0.000000e+00> : vector<8x8xf32>
    %99 = tpu.matmul %98, %82, %cst_41 {dimension_numbers = #tpu.dot_dimension_numbers<[1], [0], [0], [1], [0, 0, 1, 1], [], []>} : vector<8x8xf32>, vector<8x8xf32>, vector<8x8xf32> -> vector<8x8xf32>
    %100 = vector.extract_strided_slice %32 {offsets = [16, 0], sizes = [8, 32], strides = [1, 1]} : vector<32x32xf32> to vector<8x32xf32>
    %cst_42 = arith.constant dense<0.000000e+00> : vector<8x32xf32>
    %101 = tpu.matmul %99, %100, %cst_42 {dimension_numbers = #tpu.dot_dimension_numbers<[1], [0], [0], [1], [0, 0, 1, 1], [], []>} : vector<8x8xf32>, vector<8x32xf32>, vector<8x32xf32> -> vector<8x32xf32>
    %102 = arith.addf %79, %101 : vector<8x32xf32>
    %103 = vector.extract_strided_slice %30 {offsets = [0, 24], sizes = [8, 8], strides = [1, 1]} : vector<16x96xf32> to vector<8x8xf32>
    %104 = vector.extract_strided_slice %30 {offsets = [0, 56], sizes = [8, 8], strides = [1, 1]} : vector<16x96xf32> to vector<8x8xf32>
    %105 = vector.extract_strided_slice %30 {offsets = [0, 88], sizes = [8, 8], strides = [1, 1]} : vector<16x96xf32> to vector<8x8xf32>
    %cst_43 = arith.constant dense<0.000000e+00> : vector<8x8xf32>
    %106 = tpu.matmul %103, %104, %cst_43 {dimension_numbers = #tpu.dot_dimension_numbers<[1], [1], [0], [0], [0, 0, 1, 0], [], []>} : vector<8x8xf32>, vector<8x8xf32>, vector<8x8xf32> -> vector<8x8xf32>
    %cst_44 = arith.constant 0.176776692 : f32
    %107 = vector.broadcast %cst_44 : f32 to vector<8x8xf32>
    %108 = arith.mulf %106, %107 : vector<8x8xf32>
    %cst_45 = arith.constant 0.000000e+00 : f32
    %109 = vector.broadcast %cst_45 : f32 to vector<8x8xf32>
    %110 = arith.cmpf oeq, %34, %109 : vector<8x8xf32>
    %cst_46 = arith.constant -9.99999995E+11 : f32
    %111 = vector.broadcast %cst_46 : f32 to vector<8x8xf32>
    %112 = arith.select %110, %111, %108 : vector<8x8xi1>, vector<8x8xf32>
    %cst_47 = arith.constant dense<0xFF800000> : vector<8xf32>
    %113 = vector.multi_reduction <maximumf>, %112, %cst_47 [1] : vector<8x8xf32> to vector<8xf32>
    %114 = vector.shape_cast %113 : vector<8xf32> to vector<8x1xf32>
    %115 = vector.broadcast %114 : vector<8x1xf32> to vector<8x8xf32>
    %116 = arith.subf %112, %115 : vector<8x8xf32>
    %117 = math.exp %116 : vector<8x8xf32>
    %cst_48 = arith.constant dense<0.000000e+00> : vector<8xf32>
    %118 = vector.multi_reduction <add>, %117, %cst_48 [1] : vector<8x8xf32> to vector<8xf32>
    %119 = vector.shape_cast %118 : vector<8xf32> to vector<8x1xf32>
    %120 = vector.broadcast %119 : vector<8x1xf32> to vector<8x8xf32>
    %121 = arith.divf %117, %120 : vector<8x8xf32>
    %cst_49 = arith.constant dense<0.000000e+00> : vector<8x8xf32>
    %122 = tpu.matmul %121, %105, %cst_49 {dimension_numbers = #tpu.dot_dimension_numbers<[1], [0], [0], [1], [0, 0, 1, 1], [], []>} : vector<8x8xf32>, vector<8x8xf32>, vector<8x8xf32> -> vector<8x8xf32>
    %123 = vector.extract_strided_slice %32 {offsets = [24, 0], sizes = [8, 32], strides = [1, 1]} : vector<32x32xf32> to vector<8x32xf32>
    %cst_50 = arith.constant dense<0.000000e+00> : vector<8x32xf32>
    %124 = tpu.matmul %122, %123, %cst_50 {dimension_numbers = #tpu.dot_dimension_numbers<[1], [0], [0], [1], [0, 0, 1, 1], [], []>} : vector<8x8xf32>, vector<8x32xf32>, vector<8x32xf32> -> vector<8x32xf32>
    %125 = arith.addf %102, %124 : vector<8x32xf32>
    %c1_51 = arith.constant 1 : index
    %c0_52 = arith.constant 0 : index
    %c0_53 = arith.constant 0 : index
    %126 = vector.load %arg1[%c1_51, %c0_52, %c0_53] : memref<2x8x8xf32, #tpu.memory_space<vmem>>, vector<1x8x8xf32>
    %127 = vector.shape_cast %126 : vector<1x8x8xf32> to vector<8x8xf32>
    %128 = vector.extract_strided_slice %30 {offsets = [8, 0], sizes = [8, 8], strides = [1, 1]} : vector<16x96xf32> to vector<8x8xf32>
    %129 = vector.extract_strided_slice %30 {offsets = [8, 32], sizes = [8, 8], strides = [1, 1]} : vector<16x96xf32> to vector<8x8xf32>
    %130 = vector.extract_strided_slice %30 {offsets = [8, 64], sizes = [8, 8], strides = [1, 1]} : vector<16x96xf32> to vector<8x8xf32>
    %cst_54 = arith.constant dense<0.000000e+00> : vector<8x8xf32>
    %131 = tpu.matmul %128, %129, %cst_54 {dimension_numbers = #tpu.dot_dimension_numbers<[1], [1], [0], [0], [0, 0, 1, 0], [], []>} : vector<8x8xf32>, vector<8x8xf32>, vector<8x8xf32> -> vector<8x8xf32>
    %cst_55 = arith.constant 0.176776692 : f32
    %132 = vector.broadcast %cst_55 : f32 to vector<8x8xf32>
    %133 = arith.mulf %131, %132 : vector<8x8xf32>
    %cst_56 = arith.constant 0.000000e+00 : f32
    %134 = vector.broadcast %cst_56 : f32 to vector<8x8xf32>
    %135 = arith.cmpf oeq, %127, %134 : vector<8x8xf32>
    %cst_57 = arith.constant -9.99999995E+11 : f32
    %136 = vector.broadcast %cst_57 : f32 to vector<8x8xf32>
    %137 = arith.select %135, %136, %133 : vector<8x8xi1>, vector<8x8xf32>
    %cst_58 = arith.constant dense<0xFF800000> : vector<8xf32>
    %138 = vector.multi_reduction <maximumf>, %137, %cst_58 [1] : vector<8x8xf32> to vector<8xf32>
    %139 = vector.shape_cast %138 : vector<8xf32> to vector<8x1xf32>
    %140 = vector.broadcast %139 : vector<8x1xf32> to vector<8x8xf32>
    %141 = arith.subf %137, %140 : vector<8x8xf32>
    %142 = math.exp %141 : vector<8x8xf32>
    %cst_59 = arith.constant dense<0.000000e+00> : vector<8xf32>
    %143 = vector.multi_reduction <add>, %142, %cst_59 [1] : vector<8x8xf32> to vector<8xf32>
    %144 = vector.shape_cast %143 : vector<8xf32> to vector<8x1xf32>
    %145 = vector.broadcast %144 : vector<8x1xf32> to vector<8x8xf32>
    %146 = arith.divf %142, %145 : vector<8x8xf32>
    %cst_60 = arith.constant dense<0.000000e+00> : vector<8x8xf32>
    %147 = tpu.matmul %146, %130, %cst_60 {dimension_numbers = #tpu.dot_dimension_numbers<[1], [0], [0], [1], [0, 0, 1, 1], [], []>} : vector<8x8xf32>, vector<8x8xf32>, vector<8x8xf32> -> vector<8x8xf32>
    %148 = vector.extract_strided_slice %32 {offsets = [0, 0], sizes = [8, 32], strides = [1, 1]} : vector<32x32xf32> to vector<8x32xf32>
    %cst_61 = arith.constant dense<0.000000e+00> : vector<8x32xf32>
    %149 = tpu.matmul %147, %148, %cst_61 {dimension_numbers = #tpu.dot_dimension_numbers<[1], [0], [0], [1], [0, 0, 1, 1], [], []>} : vector<8x8xf32>, vector<8x32xf32>, vector<8x32xf32> -> vector<8x32xf32>
    %150 = vector.extract_strided_slice %30 {offsets = [8, 8], sizes = [8, 8], strides = [1, 1]} : vector<16x96xf32> to vector<8x8xf32>
    %151 = vector.extract_strided_slice %30 {offsets = [8, 40], sizes = [8, 8], strides = [1, 1]} : vector<16x96xf32> to vector<8x8xf32>
    %152 = vector.extract_strided_slice %30 {offsets = [8, 72], sizes = [8, 8], strides = [1, 1]} : vector<16x96xf32> to vector<8x8xf32>
    %cst_62 = arith.constant dense<0.000000e+00> : vector<8x8xf32>
    %153 = tpu.matmul %150, %151, %cst_62 {dimension_numbers = #tpu.dot_dimension_numbers<[1], [1], [0], [0], [0, 0, 1, 0], [], []>} : vector<8x8xf32>, vector<8x8xf32>, vector<8x8xf32> -> vector<8x8xf32>
    %cst_63 = arith.constant 0.176776692 : f32
    %154 = vector.broadcast %cst_63 : f32 to vector<8x8xf32>
    %155 = arith.mulf %153, %154 : vector<8x8xf32>
    %cst_64 = arith.constant 0.000000e+00 : f32
    %156 = vector.broadcast %cst_64 : f32 to vector<8x8xf32>
    %157 = arith.cmpf oeq, %127, %156 : vector<8x8xf32>
    %cst_65 = arith.constant -9.99999995E+11 : f32
    %158 = vector.broadcast %cst_65 : f32 to vector<8x8xf32>
    %159 = arith.select %157, %158, %155 : vector<8x8xi1>, vector<8x8xf32>
    %cst_66 = arith.constant dense<0xFF800000> : vector<8xf32>
    %160 = vector.multi_reduction <maximumf>, %159, %cst_66 [1] : vector<8x8xf32> to vector<8xf32>
    %161 = vector.shape_cast %160 : vector<8xf32> to vector<8x1xf32>
    %162 = vector.broadcast %161 : vector<8x1xf32> to vector<8x8xf32>
    %163 = arith.subf %159, %162 : vector<8x8xf32>
    %164 = math.exp %163 : vector<8x8xf32>
    %cst_67 = arith.constant dense<0.000000e+00> : vector<8xf32>
    %165 = vector.multi_reduction <add>, %164, %cst_67 [1] : vector<8x8xf32> to vector<8xf32>
    %166 = vector.shape_cast %165 : vector<8xf32> to vector<8x1xf32>
    %167 = vector.broadcast %166 : vector<8x1xf32> to vector<8x8xf32>
    %168 = arith.divf %164, %167 : vector<8x8xf32>
    %cst_68 = arith.constant dense<0.000000e+00> : vector<8x8xf32>
    %169 = tpu.matmul %168, %152, %cst_68 {dimension_numbers = #tpu.dot_dimension_numbers<[1], [0], [0], [1], [0, 0, 1, 1], [], []>} : vector<8x8xf32>, vector<8x8xf32>, vector<8x8xf32> -> vector<8x8xf32>
    %170 = vector.extract_strided_slice %32 {offsets = [8, 0], sizes = [8, 32], strides = [1, 1]} : vector<32x32xf32> to vector<8x32xf32>
    %cst_69 = arith.constant dense<0.000000e+00> : vector<8x32xf32>
    %171 = tpu.matmul %169, %170, %cst_69 {dimension_numbers = #tpu.dot_dimension_numbers<[1], [0], [0], [1], [0, 0, 1, 1], [], []>} : vector<8x8xf32>, vector<8x32xf32>, vector<8x32xf32> -> vector<8x32xf32>
    %172 = arith.addf %149, %171 : vector<8x32xf32>
    %173 = vector.extract_strided_slice %30 {offsets = [8, 16], sizes = [8, 8], strides = [1, 1]} : vector<16x96xf32> to vector<8x8xf32>
    %174 = vector.extract_strided_slice %30 {offsets = [8, 48], sizes = [8, 8], strides = [1, 1]} : vector<16x96xf32> to vector<8x8xf32>
    %175 = vector.extract_strided_slice %30 {offsets = [8, 80], sizes = [8, 8], strides = [1, 1]} : vector<16x96xf32> to vector<8x8xf32>
    %cst_70 = arith.constant dense<0.000000e+00> : vector<8x8xf32>
    %176 = tpu.matmul %173, %174, %cst_70 {dimension_numbers = #tpu.dot_dimension_numbers<[1], [1], [0], [0], [0, 0, 1, 0], [], []>} : vector<8x8xf32>, vector<8x8xf32>, vector<8x8xf32> -> vector<8x8xf32>
    %cst_71 = arith.constant 0.176776692 : f32
    %177 = vector.broadcast %cst_71 : f32 to vector<8x8xf32>
    %178 = arith.mulf %176, %177 : vector<8x8xf32>
    %cst_72 = arith.constant 0.000000e+00 : f32
    %179 = vector.broadcast %cst_72 : f32 to vector<8x8xf32>
    %180 = arith.cmpf oeq, %127, %179 : vector<8x8xf32>
    %cst_73 = arith.constant -9.99999995E+11 : f32
    %181 = vector.broadcast %cst_73 : f32 to vector<8x8xf32>
    %182 = arith.select %180, %181, %178 : vector<8x8xi1>, vector<8x8xf32>
    %cst_74 = arith.constant dense<0xFF800000> : vector<8xf32>
    %183 = vector.multi_reduction <maximumf>, %182, %cst_74 [1] : vector<8x8xf32> to vector<8xf32>
    %184 = vector.shape_cast %183 : vector<8xf32> to vector<8x1xf32>
    %185 = vector.broadcast %184 : vector<8x1xf32> to vector<8x8xf32>
    %186 = arith.subf %182, %185 : vector<8x8xf32>
    %187 = math.exp %186 : vector<8x8xf32>
    %cst_75 = arith.constant dense<0.000000e+00> : vector<8xf32>
    %188 = vector.multi_reduction <add>, %187, %cst_75 [1] : vector<8x8xf32> to vector<8xf32>
    %189 = vector.shape_cast %188 : vector<8xf32> to vector<8x1xf32>
    %190 = vector.broadcast %189 : vector<8x1xf32> to vector<8x8xf32>
    %191 = arith.divf %187, %190 : vector<8x8xf32>
    %cst_76 = arith.constant dense<0.000000e+00> : vector<8x8xf32>
    %192 = tpu.matmul %191, %175, %cst_76 {dimension_numbers = #tpu.dot_dimension_numbers<[1], [0], [0], [1], [0, 0, 1, 1], [], []>} : vector<8x8xf32>, vector<8x8xf32>, vector<8x8xf32> -> vector<8x8xf32>
    %193 = vector.extract_strided_slice %32 {offsets = [16, 0], sizes = [8, 32], strides = [1, 1]} : vector<32x32xf32> to vector<8x32xf32>
    %cst_77 = arith.constant dense<0.000000e+00> : vector<8x32xf32>
    %194 = tpu.matmul %192, %193, %cst_77 {dimension_numbers = #tpu.dot_dimension_numbers<[1], [0], [0], [1], [0, 0, 1, 1], [], []>} : vector<8x8xf32>, vector<8x32xf32>, vector<8x32xf32> -> vector<8x32xf32>
    %195 = arith.addf %172, %194 : vector<8x32xf32>
    %196 = vector.extract_strided_slice %30 {offsets = [8, 24], sizes = [8, 8], strides = [1, 1]} : vector<16x96xf32> to vector<8x8xf32>
    %197 = vector.extract_strided_slice %30 {offsets = [8, 56], sizes = [8, 8], strides = [1, 1]} : vector<16x96xf32> to vector<8x8xf32>
    %198 = vector.extract_strided_slice %30 {offsets = [8, 88], sizes = [8, 8], strides = [1, 1]} : vector<16x96xf32> to vector<8x8xf32>
    %cst_78 = arith.constant dense<0.000000e+00> : vector<8x8xf32>
    %199 = tpu.matmul %196, %197, %cst_78 {dimension_numbers = #tpu.dot_dimension_numbers<[1], [1], [0], [0], [0, 0, 1, 0], [], []>} : vector<8x8xf32>, vector<8x8xf32>, vector<8x8xf32> -> vector<8x8xf32>
    %cst_79 = arith.constant 0.176776692 : f32
    %200 = vector.broadcast %cst_79 : f32 to vector<8x8xf32>
    %201 = arith.mulf %199, %200 : vector<8x8xf32>
    %cst_80 = arith.constant 0.000000e+00 : f32
    %202 = vector.broadcast %cst_80 : f32 to vector<8x8xf32>
    %203 = arith.cmpf oeq, %127, %202 : vector<8x8xf32>
    %cst_81 = arith.constant -9.99999995E+11 : f32
    %204 = vector.broadcast %cst_81 : f32 to vector<8x8xf32>
    %205 = arith.select %203, %204, %201 : vector<8x8xi1>, vector<8x8xf32>
    %cst_82 = arith.constant dense<0xFF800000> : vector<8xf32>
    %206 = vector.multi_reduction <maximumf>, %205, %cst_82 [1] : vector<8x8xf32> to vector<8xf32>
    %207 = vector.shape_cast %206 : vector<8xf32> to vector<8x1xf32>
    %208 = vector.broadcast %207 : vector<8x1xf32> to vector<8x8xf32>
    %209 = arith.subf %205, %208 : vector<8x8xf32>
    %210 = math.exp %209 : vector<8x8xf32>
    %cst_83 = arith.constant dense<0.000000e+00> : vector<8xf32>
    %211 = vector.multi_reduction <add>, %210, %cst_83 [1] : vector<8x8xf32> to vector<8xf32>
    %212 = vector.shape_cast %211 : vector<8xf32> to vector<8x1xf32>
    %213 = vector.broadcast %212 : vector<8x1xf32> to vector<8x8xf32>
    %214 = arith.divf %210, %213 : vector<8x8xf32>
    %cst_84 = arith.constant dense<0.000000e+00> : vector<8x8xf32>
    %215 = tpu.matmul %214, %198, %cst_84 {dimension_numbers = #tpu.dot_dimension_numbers<[1], [0], [0], [1], [0, 0, 1, 1], [], []>} : vector<8x8xf32>, vector<8x8xf32>, vector<8x8xf32> -> vector<8x8xf32>
    %216 = vector.extract_strided_slice %32 {offsets = [24, 0], sizes = [8, 32], strides = [1, 1]} : vector<32x32xf32> to vector<8x32xf32>
    %cst_85 = arith.constant dense<0.000000e+00> : vector<8x32xf32>
    %217 = tpu.matmul %215, %216, %cst_85 {dimension_numbers = #tpu.dot_dimension_numbers<[1], [0], [0], [1], [0, 0, 1, 1], [], []>} : vector<8x8xf32>, vector<8x32xf32>, vector<8x32xf32> -> vector<8x32xf32>
    %218 = arith.addf %195, %217 : vector<8x32xf32>
    %219 = tpu.concatenate %125, %218 in 0 : vector<8x32xf32>, vector<8x32xf32> -> vector<16x32xf32>
    %c3 = arith.constant 3 : index
    %c0_86 = arith.constant 0 : index
    %220 = vector.load %arg2[%c3, %c0_86] : memref<24x128xf32, #tpu.memory_space<vmem>>, vector<1x32xf32>
    %221 = vector.broadcast %220 : vector<1x32xf32> to vector<16x32xf32>
    %222 = arith.addf %219, %221 : vector<16x32xf32>
    %223 = arith.addf %222, %24 : vector<16x32xf32>
    %c4 = arith.constant 4 : index
    %c0_87 = arith.constant 0 : index
    %224 = vector.load %arg2[%c4, %c0_87] : memref<24x128xf32, #tpu.memory_space<vmem>>, vector<1x32xf32>
    %c5 = arith.constant 5 : index
    %c0_88 = arith.constant 0 : index
    %225 = vector.load %arg2[%c5, %c0_88] : memref<24x128xf32, #tpu.memory_space<vmem>>, vector<1x32xf32>
    %cst_89 = arith.constant dense<0.000000e+00> : vector<16xf32>
    %226 = vector.multi_reduction <add>, %223, %cst_89 [1] : vector<16x32xf32> to vector<16xf32>
    %227 = vector.shape_cast %226 : vector<16xf32> to vector<16x1xf32>
    %cst_90 = arith.constant 3.200000e+01 : f32
    %228 = vector.broadcast %cst_90 : f32 to vector<16x1xf32>
    %229 = arith.divf %227, %228 : vector<16x1xf32>
    %230 = vector.broadcast %229 : vector<16x1xf32> to vector<16x32xf32>
    %231 = arith.subf %223, %230 : vector<16x32xf32>
    %232 = arith.mulf %231, %231 : vector<16x32xf32>
    %cst_91 = arith.constant dense<0.000000e+00> : vector<16xf32>
    %233 = vector.multi_reduction <add>, %232, %cst_91 [1] : vector<16x32xf32> to vector<16xf32>
    %234 = vector.shape_cast %233 : vector<16xf32> to vector<16x1xf32>
    %cst_92 = arith.constant 3.200000e+01 : f32
    %235 = vector.broadcast %cst_92 : f32 to vector<16x1xf32>
    %236 = arith.divf %234, %235 : vector<16x1xf32>
    %237 = vector.broadcast %229 : vector<16x1xf32> to vector<16x32xf32>
    %238 = arith.subf %223, %237 : vector<16x32xf32>
    %cst_93 = arith.constant 9.99999974E-6 : f32
    %239 = vector.broadcast %cst_93 : f32 to vector<16x1xf32>
    %240 = arith.addf %236, %239 : vector<16x1xf32>
    %241 = math.rsqrt %240 : vector<16x1xf32>
    %242 = vector.broadcast %241 : vector<16x1xf32> to vector<16x32xf32>
    %243 = arith.mulf %238, %242 : vector<16x32xf32>
    %244 = vector.broadcast %224 : vector<1x32xf32> to vector<16x32xf32>
    %245 = arith.mulf %243, %244 : vector<16x32xf32>
    %246 = vector.broadcast %225 : vector<1x32xf32> to vector<16x32xf32>
    %247 = arith.addf %245, %246 : vector<16x32xf32>
    %c0_94 = arith.constant 0 : index
    %c0_95 = arith.constant 0 : index
    %c0_96 = arith.constant 0 : index
    %248 = vector.load %arg5[%c0_94, %c0_95, %c0_96] : memref<2x32x128xf32, #tpu.memory_space<vmem>>, vector<1x32x128xf32>
    %249 = vector.shape_cast %248 : vector<1x32x128xf32> to vector<32x128xf32>
    %cst_97 = arith.constant dense<0.000000e+00> : vector<16x128xf32>
    %250 = tpu.matmul %247, %249, %cst_97 {dimension_numbers = #tpu.dot_dimension_numbers<[1], [0], [0], [1], [0, 0, 1, 1], [], []>} : vector<16x32xf32>, vector<32x128xf32>, vector<16x128xf32> -> vector<16x128xf32>
    %c6 = arith.constant 6 : index
    %c0_98 = arith.constant 0 : index
    %251 = vector.load %arg2[%c6, %c0_98] : memref<24x128xf32, #tpu.memory_space<vmem>>, vector<1x128xf32>
    %252 = vector.broadcast %251 : vector<1x128xf32> to vector<16x128xf32>
    %253 = arith.addf %250, %252 : vector<16x128xf32>
    %cst_99 = arith.constant 5.000000e-01 : f32
    %254 = vector.broadcast %cst_99 : f32 to vector<16x128xf32>
    %255 = arith.mulf %254, %253 : vector<16x128xf32>
    %cst_100 = arith.constant 0.707106769 : f32
    %256 = vector.broadcast %cst_100 : f32 to vector<16x128xf32>
    %257 = arith.mulf %253, %256 : vector<16x128xf32>
    %cst_101 = arith.constant 0.000000e+00 : f32
    %258 = vector.broadcast %cst_101 : f32 to vector<16x128xf32>
    %259 = arith.cmpf oge, %257, %258 : vector<16x128xf32>
    %cst_102 = arith.constant 1.000000e+00 : f32
    %cst_103 = arith.constant -1.000000e+00 : f32
    %260 = vector.broadcast %cst_102 : f32 to vector<16x128xf32>
    %261 = vector.broadcast %cst_103 : f32 to vector<16x128xf32>
    %262 = arith.select %259, %260, %261 : vector<16x128xi1>, vector<16x128xf32>
    %263 = math.absf %257 : vector<16x128xf32>
    %cst_104 = arith.constant 0.327591091 : f32
    %264 = vector.broadcast %cst_104 : f32 to vector<16x128xf32>
    %265 = arith.mulf %264, %263 : vector<16x128xf32>
    %cst_105 = arith.constant 1.000000e+00 : f32
    %266 = vector.broadcast %cst_105 : f32 to vector<16x128xf32>
    %267 = arith.addf %266, %265 : vector<16x128xf32>
    %cst_106 = arith.constant 1.000000e+00 : f32
    %268 = vector.broadcast %cst_106 : f32 to vector<16x128xf32>
    %269 = arith.divf %268, %267 : vector<16x128xf32>
    %cst_107 = arith.constant 1.06140542 : f32
    %270 = vector.broadcast %cst_107 : f32 to vector<16x128xf32>
    %271 = arith.mulf %270, %269 : vector<16x128xf32>
    %cst_108 = arith.constant -1.45315206 : f32
    %272 = vector.broadcast %cst_108 : f32 to vector<16x128xf32>
    %273 = arith.addf %271, %272 : vector<16x128xf32>
    %274 = arith.mulf %273, %269 : vector<16x128xf32>
    %cst_109 = arith.constant 1.42141378 : f32
    %275 = vector.broadcast %cst_109 : f32 to vector<16x128xf32>
    %276 = arith.addf %274, %275 : vector<16x128xf32>
    %277 = arith.mulf %276, %269 : vector<16x128xf32>
    %cst_110 = arith.constant -0.284496725 : f32
    %278 = vector.broadcast %cst_110 : f32 to vector<16x128xf32>
    %279 = arith.addf %277, %278 : vector<16x128xf32>
    %280 = arith.mulf %279, %269 : vector<16x128xf32>
    %cst_111 = arith.constant 0.254829586 : f32
    %281 = vector.broadcast %cst_111 : f32 to vector<16x128xf32>
    %282 = arith.addf %280, %281 : vector<16x128xf32>
    %283 = arith.mulf %282, %269 : vector<16x128xf32>
    %cst_112 = arith.constant 0.000000e+00 : f32
    %284 = vector.broadcast %cst_112 : f32 to vector<16x128xf32>
    %285 = arith.subf %284, %263 : vector<16x128xf32>
    %286 = arith.mulf %285, %263 : vector<16x128xf32>
    %287 = math.exp %286 : vector<16x128xf32>
    %288 = arith.mulf %283, %287 : vector<16x128xf32>
    %cst_113 = arith.constant 1.000000e+00 : f32
    %289 = vector.broadcast %cst_113 : f32 to vector<16x128xf32>
    %290 = arith.subf %289, %288 : vector<16x128xf32>
    %291 = arith.mulf %262, %290 : vector<16x128xf32>
    %cst_114 = arith.constant 1.000000e+00 : f32
    %292 = vector.broadcast %cst_114 : f32 to vector<16x128xf32>
    %293 = arith.addf %292, %291 : vector<16x128xf32>
    %294 = arith.mulf %255, %293 : vector<16x128xf32>
    %c0_115 = arith.constant 0 : index
    %c0_116 = arith.constant 0 : index
    %c0_117 = arith.constant 0 : index
    %295 = vector.load %arg6[%c0_115, %c0_116, %c0_117] : memref<2x128x32xf32, #tpu.memory_space<vmem>>, vector<1x128x32xf32>
    %296 = vector.shape_cast %295 : vector<1x128x32xf32> to vector<128x32xf32>
    %cst_118 = arith.constant dense<0.000000e+00> : vector<16x32xf32>
    %297 = tpu.matmul %294, %296, %cst_118 {dimension_numbers = #tpu.dot_dimension_numbers<[1], [0], [0], [1], [0, 0, 1, 1], [], []>} : vector<16x128xf32>, vector<128x32xf32>, vector<16x32xf32> -> vector<16x32xf32>
    %c7 = arith.constant 7 : index
    %c0_119 = arith.constant 0 : index
    %298 = vector.load %arg2[%c7, %c0_119] : memref<24x128xf32, #tpu.memory_space<vmem>>, vector<1x32xf32>
    %299 = vector.broadcast %298 : vector<1x32xf32> to vector<16x32xf32>
    %300 = arith.addf %297, %299 : vector<16x32xf32>
    %301 = arith.addf %300, %247 : vector<16x32xf32>
    %c8 = arith.constant 8 : index
    %c0_120 = arith.constant 0 : index
    %302 = vector.load %arg2[%c8, %c0_120] : memref<24x128xf32, #tpu.memory_space<vmem>>, vector<1x32xf32>
    %c9 = arith.constant 9 : index
    %c0_121 = arith.constant 0 : index
    %303 = vector.load %arg2[%c9, %c0_121] : memref<24x128xf32, #tpu.memory_space<vmem>>, vector<1x32xf32>
    %cst_122 = arith.constant dense<0.000000e+00> : vector<16xf32>
    %304 = vector.multi_reduction <add>, %301, %cst_122 [1] : vector<16x32xf32> to vector<16xf32>
    %305 = vector.shape_cast %304 : vector<16xf32> to vector<16x1xf32>
    %cst_123 = arith.constant 3.200000e+01 : f32
    %306 = vector.broadcast %cst_123 : f32 to vector<16x1xf32>
    %307 = arith.divf %305, %306 : vector<16x1xf32>
    %308 = vector.broadcast %307 : vector<16x1xf32> to vector<16x32xf32>
    %309 = arith.subf %301, %308 : vector<16x32xf32>
    %310 = arith.mulf %309, %309 : vector<16x32xf32>
    %cst_124 = arith.constant dense<0.000000e+00> : vector<16xf32>
    %311 = vector.multi_reduction <add>, %310, %cst_124 [1] : vector<16x32xf32> to vector<16xf32>
    %312 = vector.shape_cast %311 : vector<16xf32> to vector<16x1xf32>
    %cst_125 = arith.constant 3.200000e+01 : f32
    %313 = vector.broadcast %cst_125 : f32 to vector<16x1xf32>
    %314 = arith.divf %312, %313 : vector<16x1xf32>
    %315 = vector.broadcast %307 : vector<16x1xf32> to vector<16x32xf32>
    %316 = arith.subf %301, %315 : vector<16x32xf32>
    %cst_126 = arith.constant 9.99999974E-6 : f32
    %317 = vector.broadcast %cst_126 : f32 to vector<16x1xf32>
    %318 = arith.addf %314, %317 : vector<16x1xf32>
    %319 = math.rsqrt %318 : vector<16x1xf32>
    %320 = vector.broadcast %319 : vector<16x1xf32> to vector<16x32xf32>
    %321 = arith.mulf %316, %320 : vector<16x32xf32>
    %322 = vector.broadcast %302 : vector<1x32xf32> to vector<16x32xf32>
    %323 = arith.mulf %321, %322 : vector<16x32xf32>
    %324 = vector.broadcast %303 : vector<1x32xf32> to vector<16x32xf32>
    %325 = arith.addf %323, %324 : vector<16x32xf32>
    %c1_127 = arith.constant 1 : index
    %c0_128 = arith.constant 0 : index
    %c0_129 = arith.constant 0 : index
    %326 = vector.load %arg3[%c1_127, %c0_128, %c0_129] : memref<2x32x96xf32, #tpu.memory_space<vmem>>, vector<1x32x96xf32>
    %327 = vector.shape_cast %326 : vector<1x32x96xf32> to vector<32x96xf32>
    %cst_130 = arith.constant dense<0.000000e+00> : vector<16x96xf32>
    %328 = tpu.matmul %325, %327, %cst_130 {dimension_numbers = #tpu.dot_dimension_numbers<[1], [0], [0], [1], [0, 0, 1, 1], [], []>} : vector<16x32xf32>, vector<32x96xf32>, vector<16x96xf32> -> vector<16x96xf32>
    %c10 = arith.constant 10 : index
    %c0_131 = arith.constant 0 : index
    %329 = vector.load %arg2[%c10, %c0_131] : memref<24x128xf32, #tpu.memory_space<vmem>>, vector<1x96xf32>
    %330 = vector.broadcast %329 : vector<1x96xf32> to vector<16x96xf32>
    %331 = arith.addf %328, %330 : vector<16x96xf32>
    %c1_132 = arith.constant 1 : index
    %c0_133 = arith.constant 0 : index
    %c0_134 = arith.constant 0 : index
    %332 = vector.load %arg4[%c1_132, %c0_133, %c0_134] : memref<2x32x32xf32, #tpu.memory_space<vmem>>, vector<1x32x32xf32>
    %333 = vector.shape_cast %332 : vector<1x32x32xf32> to vector<32x32xf32>
    %c0_135 = arith.constant 0 : index
    %c0_136 = arith.constant 0 : index
    %c0_137 = arith.constant 0 : index
    %334 = vector.load %arg1[%c0_135, %c0_136, %c0_137] : memref<2x8x8xf32, #tpu.memory_space<vmem>>, vector<1x8x8xf32>
    %335 = vector.shape_cast %334 : vector<1x8x8xf32> to vector<8x8xf32>
    %336 = vector.extract_strided_slice %331 {offsets = [0, 0], sizes = [8, 8], strides = [1, 1]} : vector<16x96xf32> to vector<8x8xf32>
    %337 = vector.extract_strided_slice %331 {offsets = [0, 32], sizes = [8, 8], strides = [1, 1]} : vector<16x96xf32> to vector<8x8xf32>
    %338 = vector.extract_strided_slice %331 {offsets = [0, 64], sizes = [8, 8], strides = [1, 1]} : vector<16x96xf32> to vector<8x8xf32>
    %cst_138 = arith.constant dense<0.000000e+00> : vector<8x8xf32>
    %339 = tpu.matmul %336, %337, %cst_138 {dimension_numbers = #tpu.dot_dimension_numbers<[1], [1], [0], [0], [0, 0, 1, 0], [], []>} : vector<8x8xf32>, vector<8x8xf32>, vector<8x8xf32> -> vector<8x8xf32>
    %cst_139 = arith.constant 0.176776692 : f32
    %340 = vector.broadcast %cst_139 : f32 to vector<8x8xf32>
    %341 = arith.mulf %339, %340 : vector<8x8xf32>
    %cst_140 = arith.constant 0.000000e+00 : f32
    %342 = vector.broadcast %cst_140 : f32 to vector<8x8xf32>
    %343 = arith.cmpf oeq, %335, %342 : vector<8x8xf32>
    %cst_141 = arith.constant -9.99999995E+11 : f32
    %344 = vector.broadcast %cst_141 : f32 to vector<8x8xf32>
    %345 = arith.select %343, %344, %341 : vector<8x8xi1>, vector<8x8xf32>
    %cst_142 = arith.constant dense<0xFF800000> : vector<8xf32>
    %346 = vector.multi_reduction <maximumf>, %345, %cst_142 [1] : vector<8x8xf32> to vector<8xf32>
    %347 = vector.shape_cast %346 : vector<8xf32> to vector<8x1xf32>
    %348 = vector.broadcast %347 : vector<8x1xf32> to vector<8x8xf32>
    %349 = arith.subf %345, %348 : vector<8x8xf32>
    %350 = math.exp %349 : vector<8x8xf32>
    %cst_143 = arith.constant dense<0.000000e+00> : vector<8xf32>
    %351 = vector.multi_reduction <add>, %350, %cst_143 [1] : vector<8x8xf32> to vector<8xf32>
    %352 = vector.shape_cast %351 : vector<8xf32> to vector<8x1xf32>
    %353 = vector.broadcast %352 : vector<8x1xf32> to vector<8x8xf32>
    %354 = arith.divf %350, %353 : vector<8x8xf32>
    %cst_144 = arith.constant dense<0.000000e+00> : vector<8x8xf32>
    %355 = tpu.matmul %354, %338, %cst_144 {dimension_numbers = #tpu.dot_dimension_numbers<[1], [0], [0], [1], [0, 0, 1, 1], [], []>} : vector<8x8xf32>, vector<8x8xf32>, vector<8x8xf32> -> vector<8x8xf32>
    %356 = vector.extract_strided_slice %333 {offsets = [0, 0], sizes = [8, 32], strides = [1, 1]} : vector<32x32xf32> to vector<8x32xf32>
    %cst_145 = arith.constant dense<0.000000e+00> : vector<8x32xf32>
    %357 = tpu.matmul %355, %356, %cst_145 {dimension_numbers = #tpu.dot_dimension_numbers<[1], [0], [0], [1], [0, 0, 1, 1], [], []>} : vector<8x8xf32>, vector<8x32xf32>, vector<8x32xf32> -> vector<8x32xf32>
    %358 = vector.extract_strided_slice %331 {offsets = [0, 8], sizes = [8, 8], strides = [1, 1]} : vector<16x96xf32> to vector<8x8xf32>
    %359 = vector.extract_strided_slice %331 {offsets = [0, 40], sizes = [8, 8], strides = [1, 1]} : vector<16x96xf32> to vector<8x8xf32>
    %360 = vector.extract_strided_slice %331 {offsets = [0, 72], sizes = [8, 8], strides = [1, 1]} : vector<16x96xf32> to vector<8x8xf32>
    %cst_146 = arith.constant dense<0.000000e+00> : vector<8x8xf32>
    %361 = tpu.matmul %358, %359, %cst_146 {dimension_numbers = #tpu.dot_dimension_numbers<[1], [1], [0], [0], [0, 0, 1, 0], [], []>} : vector<8x8xf32>, vector<8x8xf32>, vector<8x8xf32> -> vector<8x8xf32>
    %cst_147 = arith.constant 0.176776692 : f32
    %362 = vector.broadcast %cst_147 : f32 to vector<8x8xf32>
    %363 = arith.mulf %361, %362 : vector<8x8xf32>
    %cst_148 = arith.constant 0.000000e+00 : f32
    %364 = vector.broadcast %cst_148 : f32 to vector<8x8xf32>
    %365 = arith.cmpf oeq, %335, %364 : vector<8x8xf32>
    %cst_149 = arith.constant -9.99999995E+11 : f32
    %366 = vector.broadcast %cst_149 : f32 to vector<8x8xf32>
    %367 = arith.select %365, %366, %363 : vector<8x8xi1>, vector<8x8xf32>
    %cst_150 = arith.constant dense<0xFF800000> : vector<8xf32>
    %368 = vector.multi_reduction <maximumf>, %367, %cst_150 [1] : vector<8x8xf32> to vector<8xf32>
    %369 = vector.shape_cast %368 : vector<8xf32> to vector<8x1xf32>
    %370 = vector.broadcast %369 : vector<8x1xf32> to vector<8x8xf32>
    %371 = arith.subf %367, %370 : vector<8x8xf32>
    %372 = math.exp %371 : vector<8x8xf32>
    %cst_151 = arith.constant dense<0.000000e+00> : vector<8xf32>
    %373 = vector.multi_reduction <add>, %372, %cst_151 [1] : vector<8x8xf32> to vector<8xf32>
    %374 = vector.shape_cast %373 : vector<8xf32> to vector<8x1xf32>
    %375 = vector.broadcast %374 : vector<8x1xf32> to vector<8x8xf32>
    %376 = arith.divf %372, %375 : vector<8x8xf32>
    %cst_152 = arith.constant dense<0.000000e+00> : vector<8x8xf32>
    %377 = tpu.matmul %376, %360, %cst_152 {dimension_numbers = #tpu.dot_dimension_numbers<[1], [0], [0], [1], [0, 0, 1, 1], [], []>} : vector<8x8xf32>, vector<8x8xf32>, vector<8x8xf32> -> vector<8x8xf32>
    %378 = vector.extract_strided_slice %333 {offsets = [8, 0], sizes = [8, 32], strides = [1, 1]} : vector<32x32xf32> to vector<8x32xf32>
    %cst_153 = arith.constant dense<0.000000e+00> : vector<8x32xf32>
    %379 = tpu.matmul %377, %378, %cst_153 {dimension_numbers = #tpu.dot_dimension_numbers<[1], [0], [0], [1], [0, 0, 1, 1], [], []>} : vector<8x8xf32>, vector<8x32xf32>, vector<8x32xf32> -> vector<8x32xf32>
    %380 = arith.addf %357, %379 : vector<8x32xf32>
    %381 = vector.extract_strided_slice %331 {offsets = [0, 16], sizes = [8, 8], strides = [1, 1]} : vector<16x96xf32> to vector<8x8xf32>
    %382 = vector.extract_strided_slice %331 {offsets = [0, 48], sizes = [8, 8], strides = [1, 1]} : vector<16x96xf32> to vector<8x8xf32>
    %383 = vector.extract_strided_slice %331 {offsets = [0, 80], sizes = [8, 8], strides = [1, 1]} : vector<16x96xf32> to vector<8x8xf32>
    %cst_154 = arith.constant dense<0.000000e+00> : vector<8x8xf32>
    %384 = tpu.matmul %381, %382, %cst_154 {dimension_numbers = #tpu.dot_dimension_numbers<[1], [1], [0], [0], [0, 0, 1, 0], [], []>} : vector<8x8xf32>, vector<8x8xf32>, vector<8x8xf32> -> vector<8x8xf32>
    %cst_155 = arith.constant 0.176776692 : f32
    %385 = vector.broadcast %cst_155 : f32 to vector<8x8xf32>
    %386 = arith.mulf %384, %385 : vector<8x8xf32>
    %cst_156 = arith.constant 0.000000e+00 : f32
    %387 = vector.broadcast %cst_156 : f32 to vector<8x8xf32>
    %388 = arith.cmpf oeq, %335, %387 : vector<8x8xf32>
    %cst_157 = arith.constant -9.99999995E+11 : f32
    %389 = vector.broadcast %cst_157 : f32 to vector<8x8xf32>
    %390 = arith.select %388, %389, %386 : vector<8x8xi1>, vector<8x8xf32>
    %cst_158 = arith.constant dense<0xFF800000> : vector<8xf32>
    %391 = vector.multi_reduction <maximumf>, %390, %cst_158 [1] : vector<8x8xf32> to vector<8xf32>
    %392 = vector.shape_cast %391 : vector<8xf32> to vector<8x1xf32>
    %393 = vector.broadcast %392 : vector<8x1xf32> to vector<8x8xf32>
    %394 = arith.subf %390, %393 : vector<8x8xf32>
    %395 = math.exp %394 : vector<8x8xf32>
    %cst_159 = arith.constant dense<0.000000e+00> : vector<8xf32>
    %396 = vector.multi_reduction <add>, %395, %cst_159 [1] : vector<8x8xf32> to vector<8xf32>
    %397 = vector.shape_cast %396 : vector<8xf32> to vector<8x1xf32>
    %398 = vector.broadcast %397 : vector<8x1xf32> to vector<8x8xf32>
    %399 = arith.divf %395, %398 : vector<8x8xf32>
    %cst_160 = arith.constant dense<0.000000e+00> : vector<8x8xf32>
    %400 = tpu.matmul %399, %383, %cst_160 {dimension_numbers = #tpu.dot_dimension_numbers<[1], [0], [0], [1], [0, 0, 1, 1], [], []>} : vector<8x8xf32>, vector<8x8xf32>, vector<8x8xf32> -> vector<8x8xf32>
    %401 = vector.extract_strided_slice %333 {offsets = [16, 0], sizes = [8, 32], strides = [1, 1]} : vector<32x32xf32> to vector<8x32xf32>
    %cst_161 = arith.constant dense<0.000000e+00> : vector<8x32xf32>
    %402 = tpu.matmul %400, %401, %cst_161 {dimension_numbers = #tpu.dot_dimension_numbers<[1], [0], [0], [1], [0, 0, 1, 1], [], []>} : vector<8x8xf32>, vector<8x32xf32>, vector<8x32xf32> -> vector<8x32xf32>
    %403 = arith.addf %380, %402 : vector<8x32xf32>
    %404 = vector.extract_strided_slice %331 {offsets = [0, 24], sizes = [8, 8], strides = [1, 1]} : vector<16x96xf32> to vector<8x8xf32>
    %405 = vector.extract_strided_slice %331 {offsets = [0, 56], sizes = [8, 8], strides = [1, 1]} : vector<16x96xf32> to vector<8x8xf32>
    %406 = vector.extract_strided_slice %331 {offsets = [0, 88], sizes = [8, 8], strides = [1, 1]} : vector<16x96xf32> to vector<8x8xf32>
    %cst_162 = arith.constant dense<0.000000e+00> : vector<8x8xf32>
    %407 = tpu.matmul %404, %405, %cst_162 {dimension_numbers = #tpu.dot_dimension_numbers<[1], [1], [0], [0], [0, 0, 1, 0], [], []>} : vector<8x8xf32>, vector<8x8xf32>, vector<8x8xf32> -> vector<8x8xf32>
    %cst_163 = arith.constant 0.176776692 : f32
    %408 = vector.broadcast %cst_163 : f32 to vector<8x8xf32>
    %409 = arith.mulf %407, %408 : vector<8x8xf32>
    %cst_164 = arith.constant 0.000000e+00 : f32
    %410 = vector.broadcast %cst_164 : f32 to vector<8x8xf32>
    %411 = arith.cmpf oeq, %335, %410 : vector<8x8xf32>
    %cst_165 = arith.constant -9.99999995E+11 : f32
    %412 = vector.broadcast %cst_165 : f32 to vector<8x8xf32>
    %413 = arith.select %411, %412, %409 : vector<8x8xi1>, vector<8x8xf32>
    %cst_166 = arith.constant dense<0xFF800000> : vector<8xf32>
    %414 = vector.multi_reduction <maximumf>, %413, %cst_166 [1] : vector<8x8xf32> to vector<8xf32>
    %415 = vector.shape_cast %414 : vector<8xf32> to vector<8x1xf32>
    %416 = vector.broadcast %415 : vector<8x1xf32> to vector<8x8xf32>
    %417 = arith.subf %413, %416 : vector<8x8xf32>
    %418 = math.exp %417 : vector<8x8xf32>
    %cst_167 = arith.constant dense<0.000000e+00> : vector<8xf32>
    %419 = vector.multi_reduction <add>, %418, %cst_167 [1] : vector<8x8xf32> to vector<8xf32>
    %420 = vector.shape_cast %419 : vector<8xf32> to vector<8x1xf32>
    %421 = vector.broadcast %420 : vector<8x1xf32> to vector<8x8xf32>
    %422 = arith.divf %418, %421 : vector<8x8xf32>
    %cst_168 = arith.constant dense<0.000000e+00> : vector<8x8xf32>
    %423 = tpu.matmul %422, %406, %cst_168 {dimension_numbers = #tpu.dot_dimension_numbers<[1], [0], [0], [1], [0, 0, 1, 1], [], []>} : vector<8x8xf32>, vector<8x8xf32>, vector<8x8xf32> -> vector<8x8xf32>
    %424 = vector.extract_strided_slice %333 {offsets = [24, 0], sizes = [8, 32], strides = [1, 1]} : vector<32x32xf32> to vector<8x32xf32>
    %cst_169 = arith.constant dense<0.000000e+00> : vector<8x32xf32>
    %425 = tpu.matmul %423, %424, %cst_169 {dimension_numbers = #tpu.dot_dimension_numbers<[1], [0], [0], [1], [0, 0, 1, 1], [], []>} : vector<8x8xf32>, vector<8x32xf32>, vector<8x32xf32> -> vector<8x32xf32>
    %426 = arith.addf %403, %425 : vector<8x32xf32>
    %c1_170 = arith.constant 1 : index
    %c0_171 = arith.constant 0 : index
    %c0_172 = arith.constant 0 : index
    %427 = vector.load %arg1[%c1_170, %c0_171, %c0_172] : memref<2x8x8xf32, #tpu.memory_space<vmem>>, vector<1x8x8xf32>
    %428 = vector.shape_cast %427 : vector<1x8x8xf32> to vector<8x8xf32>
    %429 = vector.extract_strided_slice %331 {offsets = [8, 0], sizes = [8, 8], strides = [1, 1]} : vector<16x96xf32> to vector<8x8xf32>
    %430 = vector.extract_strided_slice %331 {offsets = [8, 32], sizes = [8, 8], strides = [1, 1]} : vector<16x96xf32> to vector<8x8xf32>
    %431 = vector.extract_strided_slice %331 {offsets = [8, 64], sizes = [8, 8], strides = [1, 1]} : vector<16x96xf32> to vector<8x8xf32>
    %cst_173 = arith.constant dense<0.000000e+00> : vector<8x8xf32>
    %432 = tpu.matmul %429, %430, %cst_173 {dimension_numbers = #tpu.dot_dimension_numbers<[1], [1], [0], [0], [0, 0, 1, 0], [], []>} : vector<8x8xf32>, vector<8x8xf32>, vector<8x8xf32> -> vector<8x8xf32>
    %cst_174 = arith.constant 0.176776692 : f32
    %433 = vector.broadcast %cst_174 : f32 to vector<8x8xf32>
    %434 = arith.mulf %432, %433 : vector<8x8xf32>
    %cst_175 = arith.constant 0.000000e+00 : f32
    %435 = vector.broadcast %cst_175 : f32 to vector<8x8xf32>
    %436 = arith.cmpf oeq, %428, %435 : vector<8x8xf32>
    %cst_176 = arith.constant -9.99999995E+11 : f32
    %437 = vector.broadcast %cst_176 : f32 to vector<8x8xf32>
    %438 = arith.select %436, %437, %434 : vector<8x8xi1>, vector<8x8xf32>
    %cst_177 = arith.constant dense<0xFF800000> : vector<8xf32>
    %439 = vector.multi_reduction <maximumf>, %438, %cst_177 [1] : vector<8x8xf32> to vector<8xf32>
    %440 = vector.shape_cast %439 : vector<8xf32> to vector<8x1xf32>
    %441 = vector.broadcast %440 : vector<8x1xf32> to vector<8x8xf32>
    %442 = arith.subf %438, %441 : vector<8x8xf32>
    %443 = math.exp %442 : vector<8x8xf32>
    %cst_178 = arith.constant dense<0.000000e+00> : vector<8xf32>
    %444 = vector.multi_reduction <add>, %443, %cst_178 [1] : vector<8x8xf32> to vector<8xf32>
    %445 = vector.shape_cast %444 : vector<8xf32> to vector<8x1xf32>
    %446 = vector.broadcast %445 : vector<8x1xf32> to vector<8x8xf32>
    %447 = arith.divf %443, %446 : vector<8x8xf32>
    %cst_179 = arith.constant dense<0.000000e+00> : vector<8x8xf32>
    %448 = tpu.matmul %447, %431, %cst_179 {dimension_numbers = #tpu.dot_dimension_numbers<[1], [0], [0], [1], [0, 0, 1, 1], [], []>} : vector<8x8xf32>, vector<8x8xf32>, vector<8x8xf32> -> vector<8x8xf32>
    %449 = vector.extract_strided_slice %333 {offsets = [0, 0], sizes = [8, 32], strides = [1, 1]} : vector<32x32xf32> to vector<8x32xf32>
    %cst_180 = arith.constant dense<0.000000e+00> : vector<8x32xf32>
    %450 = tpu.matmul %448, %449, %cst_180 {dimension_numbers = #tpu.dot_dimension_numbers<[1], [0], [0], [1], [0, 0, 1, 1], [], []>} : vector<8x8xf32>, vector<8x32xf32>, vector<8x32xf32> -> vector<8x32xf32>
    %451 = vector.extract_strided_slice %331 {offsets = [8, 8], sizes = [8, 8], strides = [1, 1]} : vector<16x96xf32> to vector<8x8xf32>
    %452 = vector.extract_strided_slice %331 {offsets = [8, 40], sizes = [8, 8], strides = [1, 1]} : vector<16x96xf32> to vector<8x8xf32>
    %453 = vector.extract_strided_slice %331 {offsets = [8, 72], sizes = [8, 8], strides = [1, 1]} : vector<16x96xf32> to vector<8x8xf32>
    %cst_181 = arith.constant dense<0.000000e+00> : vector<8x8xf32>
    %454 = tpu.matmul %451, %452, %cst_181 {dimension_numbers = #tpu.dot_dimension_numbers<[1], [1], [0], [0], [0, 0, 1, 0], [], []>} : vector<8x8xf32>, vector<8x8xf32>, vector<8x8xf32> -> vector<8x8xf32>
    %cst_182 = arith.constant 0.176776692 : f32
    %455 = vector.broadcast %cst_182 : f32 to vector<8x8xf32>
    %456 = arith.mulf %454, %455 : vector<8x8xf32>
    %cst_183 = arith.constant 0.000000e+00 : f32
    %457 = vector.broadcast %cst_183 : f32 to vector<8x8xf32>
    %458 = arith.cmpf oeq, %428, %457 : vector<8x8xf32>
    %cst_184 = arith.constant -9.99999995E+11 : f32
    %459 = vector.broadcast %cst_184 : f32 to vector<8x8xf32>
    %460 = arith.select %458, %459, %456 : vector<8x8xi1>, vector<8x8xf32>
    %cst_185 = arith.constant dense<0xFF800000> : vector<8xf32>
    %461 = vector.multi_reduction <maximumf>, %460, %cst_185 [1] : vector<8x8xf32> to vector<8xf32>
    %462 = vector.shape_cast %461 : vector<8xf32> to vector<8x1xf32>
    %463 = vector.broadcast %462 : vector<8x1xf32> to vector<8x8xf32>
    %464 = arith.subf %460, %463 : vector<8x8xf32>
    %465 = math.exp %464 : vector<8x8xf32>
    %cst_186 = arith.constant dense<0.000000e+00> : vector<8xf32>
    %466 = vector.multi_reduction <add>, %465, %cst_186 [1] : vector<8x8xf32> to vector<8xf32>
    %467 = vector.shape_cast %466 : vector<8xf32> to vector<8x1xf32>
    %468 = vector.broadcast %467 : vector<8x1xf32> to vector<8x8xf32>
    %469 = arith.divf %465, %468 : vector<8x8xf32>
    %cst_187 = arith.constant dense<0.000000e+00> : vector<8x8xf32>
    %470 = tpu.matmul %469, %453, %cst_187 {dimension_numbers = #tpu.dot_dimension_numbers<[1], [0], [0], [1], [0, 0, 1, 1], [], []>} : vector<8x8xf32>, vector<8x8xf32>, vector<8x8xf32> -> vector<8x8xf32>
    %471 = vector.extract_strided_slice %333 {offsets = [8, 0], sizes = [8, 32], strides = [1, 1]} : vector<32x32xf32> to vector<8x32xf32>
    %cst_188 = arith.constant dense<0.000000e+00> : vector<8x32xf32>
    %472 = tpu.matmul %470, %471, %cst_188 {dimension_numbers = #tpu.dot_dimension_numbers<[1], [0], [0], [1], [0, 0, 1, 1], [], []>} : vector<8x8xf32>, vector<8x32xf32>, vector<8x32xf32> -> vector<8x32xf32>
    %473 = arith.addf %450, %472 : vector<8x32xf32>
    %474 = vector.extract_strided_slice %331 {offsets = [8, 16], sizes = [8, 8], strides = [1, 1]} : vector<16x96xf32> to vector<8x8xf32>
    %475 = vector.extract_strided_slice %331 {offsets = [8, 48], sizes = [8, 8], strides = [1, 1]} : vector<16x96xf32> to vector<8x8xf32>
    %476 = vector.extract_strided_slice %331 {offsets = [8, 80], sizes = [8, 8], strides = [1, 1]} : vector<16x96xf32> to vector<8x8xf32>
    %cst_189 = arith.constant dense<0.000000e+00> : vector<8x8xf32>
    %477 = tpu.matmul %474, %475, %cst_189 {dimension_numbers = #tpu.dot_dimension_numbers<[1], [1], [0], [0], [0, 0, 1, 0], [], []>} : vector<8x8xf32>, vector<8x8xf32>, vector<8x8xf32> -> vector<8x8xf32>
    %cst_190 = arith.constant 0.176776692 : f32
    %478 = vector.broadcast %cst_190 : f32 to vector<8x8xf32>
    %479 = arith.mulf %477, %478 : vector<8x8xf32>
    %cst_191 = arith.constant 0.000000e+00 : f32
    %480 = vector.broadcast %cst_191 : f32 to vector<8x8xf32>
    %481 = arith.cmpf oeq, %428, %480 : vector<8x8xf32>
    %cst_192 = arith.constant -9.99999995E+11 : f32
    %482 = vector.broadcast %cst_192 : f32 to vector<8x8xf32>
    %483 = arith.select %481, %482, %479 : vector<8x8xi1>, vector<8x8xf32>
    %cst_193 = arith.constant dense<0xFF800000> : vector<8xf32>
    %484 = vector.multi_reduction <maximumf>, %483, %cst_193 [1] : vector<8x8xf32> to vector<8xf32>
    %485 = vector.shape_cast %484 : vector<8xf32> to vector<8x1xf32>
    %486 = vector.broadcast %485 : vector<8x1xf32> to vector<8x8xf32>
    %487 = arith.subf %483, %486 : vector<8x8xf32>
    %488 = math.exp %487 : vector<8x8xf32>
    %cst_194 = arith.constant dense<0.000000e+00> : vector<8xf32>
    %489 = vector.multi_reduction <add>, %488, %cst_194 [1] : vector<8x8xf32> to vector<8xf32>
    %490 = vector.shape_cast %489 : vector<8xf32> to vector<8x1xf32>
    %491 = vector.broadcast %490 : vector<8x1xf32> to vector<8x8xf32>
    %492 = arith.divf %488, %491 : vector<8x8xf32>
    %cst_195 = arith.constant dense<0.000000e+00> : vector<8x8xf32>
    %493 = tpu.matmul %492, %476, %cst_195 {dimension_numbers = #tpu.dot_dimension_numbers<[1], [0], [0], [1], [0, 0, 1, 1], [], []>} : vector<8x8xf32>, vector<8x8xf32>, vector<8x8xf32> -> vector<8x8xf32>
    %494 = vector.extract_strided_slice %333 {offsets = [16, 0], sizes = [8, 32], strides = [1, 1]} : vector<32x32xf32> to vector<8x32xf32>
    %cst_196 = arith.constant dense<0.000000e+00> : vector<8x32xf32>
    %495 = tpu.matmul %493, %494, %cst_196 {dimension_numbers = #tpu.dot_dimension_numbers<[1], [0], [0], [1], [0, 0, 1, 1], [], []>} : vector<8x8xf32>, vector<8x32xf32>, vector<8x32xf32> -> vector<8x32xf32>
    %496 = arith.addf %473, %495 : vector<8x32xf32>
    %497 = vector.extract_strided_slice %331 {offsets = [8, 24], sizes = [8, 8], strides = [1, 1]} : vector<16x96xf32> to vector<8x8xf32>
    %498 = vector.extract_strided_slice %331 {offsets = [8, 56], sizes = [8, 8], strides = [1, 1]} : vector<16x96xf32> to vector<8x8xf32>
    %499 = vector.extract_strided_slice %331 {offsets = [8, 88], sizes = [8, 8], strides = [1, 1]} : vector<16x96xf32> to vector<8x8xf32>
    %cst_197 = arith.constant dense<0.000000e+00> : vector<8x8xf32>
    %500 = tpu.matmul %497, %498, %cst_197 {dimension_numbers = #tpu.dot_dimension_numbers<[1], [1], [0], [0], [0, 0, 1, 0], [], []>} : vector<8x8xf32>, vector<8x8xf32>, vector<8x8xf32> -> vector<8x8xf32>
    %cst_198 = arith.constant 0.176776692 : f32
    %501 = vector.broadcast %cst_198 : f32 to vector<8x8xf32>
    %502 = arith.mulf %500, %501 : vector<8x8xf32>
    %cst_199 = arith.constant 0.000000e+00 : f32
    %503 = vector.broadcast %cst_199 : f32 to vector<8x8xf32>
    %504 = arith.cmpf oeq, %428, %503 : vector<8x8xf32>
    %cst_200 = arith.constant -9.99999995E+11 : f32
    %505 = vector.broadcast %cst_200 : f32 to vector<8x8xf32>
    %506 = arith.select %504, %505, %502 : vector<8x8xi1>, vector<8x8xf32>
    %cst_201 = arith.constant dense<0xFF800000> : vector<8xf32>
    %507 = vector.multi_reduction <maximumf>, %506, %cst_201 [1] : vector<8x8xf32> to vector<8xf32>
    %508 = vector.shape_cast %507 : vector<8xf32> to vector<8x1xf32>
    %509 = vector.broadcast %508 : vector<8x1xf32> to vector<8x8xf32>
    %510 = arith.subf %506, %509 : vector<8x8xf32>
    %511 = math.exp %510 : vector<8x8xf32>
    %cst_202 = arith.constant dense<0.000000e+00> : vector<8xf32>
    %512 = vector.multi_reduction <add>, %511, %cst_202 [1] : vector<8x8xf32> to vector<8xf32>
    %513 = vector.shape_cast %512 : vector<8xf32> to vector<8x1xf32>
    %514 = vector.broadcast %513 : vector<8x1xf32> to vector<8x8xf32>
    %515 = arith.divf %511, %514 : vector<8x8xf32>
    %cst_203 = arith.constant dense<0.000000e+00> : vector<8x8xf32>
    %516 = tpu.matmul %515, %499, %cst_203 {dimension_numbers = #tpu.dot_dimension_numbers<[1], [0], [0], [1], [0, 0, 1, 1], [], []>} : vector<8x8xf32>, vector<8x8xf32>, vector<8x8xf32> -> vector<8x8xf32>
    %517 = vector.extract_strided_slice %333 {offsets = [24, 0], sizes = [8, 32], strides = [1, 1]} : vector<32x32xf32> to vector<8x32xf32>
    %cst_204 = arith.constant dense<0.000000e+00> : vector<8x32xf32>
    %518 = tpu.matmul %516, %517, %cst_204 {dimension_numbers = #tpu.dot_dimension_numbers<[1], [0], [0], [1], [0, 0, 1, 1], [], []>} : vector<8x8xf32>, vector<8x32xf32>, vector<8x32xf32> -> vector<8x32xf32>
    %519 = arith.addf %496, %518 : vector<8x32xf32>
    %520 = tpu.concatenate %426, %519 in 0 : vector<8x32xf32>, vector<8x32xf32> -> vector<16x32xf32>
    %c11 = arith.constant 11 : index
    %c0_205 = arith.constant 0 : index
    %521 = vector.load %arg2[%c11, %c0_205] : memref<24x128xf32, #tpu.memory_space<vmem>>, vector<1x32xf32>
    %522 = vector.broadcast %521 : vector<1x32xf32> to vector<16x32xf32>
    %523 = arith.addf %520, %522 : vector<16x32xf32>
    %524 = arith.addf %523, %325 : vector<16x32xf32>
    %c12 = arith.constant 12 : index
    %c0_206 = arith.constant 0 : index
    %525 = vector.load %arg2[%c12, %c0_206] : memref<24x128xf32, #tpu.memory_space<vmem>>, vector<1x32xf32>
    %c13 = arith.constant 13 : index
    %c0_207 = arith.constant 0 : index
    %526 = vector.load %arg2[%c13, %c0_207] : memref<24x128xf32, #tpu.memory_space<vmem>>, vector<1x32xf32>
    %cst_208 = arith.constant dense<0.000000e+00> : vector<16xf32>
    %527 = vector.multi_reduction <add>, %524, %cst_208 [1] : vector<16x32xf32> to vector<16xf32>
    %528 = vector.shape_cast %527 : vector<16xf32> to vector<16x1xf32>
    %cst_209 = arith.constant 3.200000e+01 : f32
    %529 = vector.broadcast %cst_209 : f32 to vector<16x1xf32>
    %530 = arith.divf %528, %529 : vector<16x1xf32>
    %531 = vector.broadcast %530 : vector<16x1xf32> to vector<16x32xf32>
    %532 = arith.subf %524, %531 : vector<16x32xf32>
    %533 = arith.mulf %532, %532 : vector<16x32xf32>
    %cst_210 = arith.constant dense<0.000000e+00> : vector<16xf32>
    %534 = vector.multi_reduction <add>, %533, %cst_210 [1] : vector<16x32xf32> to vector<16xf32>
    %535 = vector.shape_cast %534 : vector<16xf32> to vector<16x1xf32>
    %cst_211 = arith.constant 3.200000e+01 : f32
    %536 = vector.broadcast %cst_211 : f32 to vector<16x1xf32>
    %537 = arith.divf %535, %536 : vector<16x1xf32>
    %538 = vector.broadcast %530 : vector<16x1xf32> to vector<16x32xf32>
    %539 = arith.subf %524, %538 : vector<16x32xf32>
    %cst_212 = arith.constant 9.99999974E-6 : f32
    %540 = vector.broadcast %cst_212 : f32 to vector<16x1xf32>
    %541 = arith.addf %537, %540 : vector<16x1xf32>
    %542 = math.rsqrt %541 : vector<16x1xf32>
    %543 = vector.broadcast %542 : vector<16x1xf32> to vector<16x32xf32>
    %544 = arith.mulf %539, %543 : vector<16x32xf32>
    %545 = vector.broadcast %525 : vector<1x32xf32> to vector<16x32xf32>
    %546 = arith.mulf %544, %545 : vector<16x32xf32>
    %547 = vector.broadcast %526 : vector<1x32xf32> to vector<16x32xf32>
    %548 = arith.addf %546, %547 : vector<16x32xf32>
    %c1_213 = arith.constant 1 : index
    %c0_214 = arith.constant 0 : index
    %c0_215 = arith.constant 0 : index
    %549 = vector.load %arg5[%c1_213, %c0_214, %c0_215] : memref<2x32x128xf32, #tpu.memory_space<vmem>>, vector<1x32x128xf32>
    %550 = vector.shape_cast %549 : vector<1x32x128xf32> to vector<32x128xf32>
    %cst_216 = arith.constant dense<0.000000e+00> : vector<16x128xf32>
    %551 = tpu.matmul %548, %550, %cst_216 {dimension_numbers = #tpu.dot_dimension_numbers<[1], [0], [0], [1], [0, 0, 1, 1], [], []>} : vector<16x32xf32>, vector<32x128xf32>, vector<16x128xf32> -> vector<16x128xf32>
    %c14 = arith.constant 14 : index
    %c0_217 = arith.constant 0 : index
    %552 = vector.load %arg2[%c14, %c0_217] : memref<24x128xf32, #tpu.memory_space<vmem>>, vector<1x128xf32>
    %553 = vector.broadcast %552 : vector<1x128xf32> to vector<16x128xf32>
    %554 = arith.addf %551, %553 : vector<16x128xf32>
    %cst_218 = arith.constant 5.000000e-01 : f32
    %555 = vector.broadcast %cst_218 : f32 to vector<16x128xf32>
    %556 = arith.mulf %555, %554 : vector<16x128xf32>
    %cst_219 = arith.constant 0.707106769 : f32
    %557 = vector.broadcast %cst_219 : f32 to vector<16x128xf32>
    %558 = arith.mulf %554, %557 : vector<16x128xf32>
    %cst_220 = arith.constant 0.000000e+00 : f32
    %559 = vector.broadcast %cst_220 : f32 to vector<16x128xf32>
    %560 = arith.cmpf oge, %558, %559 : vector<16x128xf32>
    %cst_221 = arith.constant 1.000000e+00 : f32
    %cst_222 = arith.constant -1.000000e+00 : f32
    %561 = vector.broadcast %cst_221 : f32 to vector<16x128xf32>
    %562 = vector.broadcast %cst_222 : f32 to vector<16x128xf32>
    %563 = arith.select %560, %561, %562 : vector<16x128xi1>, vector<16x128xf32>
    %564 = math.absf %558 : vector<16x128xf32>
    %cst_223 = arith.constant 0.327591091 : f32
    %565 = vector.broadcast %cst_223 : f32 to vector<16x128xf32>
    %566 = arith.mulf %565, %564 : vector<16x128xf32>
    %cst_224 = arith.constant 1.000000e+00 : f32
    %567 = vector.broadcast %cst_224 : f32 to vector<16x128xf32>
    %568 = arith.addf %567, %566 : vector<16x128xf32>
    %cst_225 = arith.constant 1.000000e+00 : f32
    %569 = vector.broadcast %cst_225 : f32 to vector<16x128xf32>
    %570 = arith.divf %569, %568 : vector<16x128xf32>
    %cst_226 = arith.constant 1.06140542 : f32
    %571 = vector.broadcast %cst_226 : f32 to vector<16x128xf32>
    %572 = arith.mulf %571, %570 : vector<16x128xf32>
    %cst_227 = arith.constant -1.45315206 : f32
    %573 = vector.broadcast %cst_227 : f32 to vector<16x128xf32>
    %574 = arith.addf %572, %573 : vector<16x128xf32>
    %575 = arith.mulf %574, %570 : vector<16x128xf32>
    %cst_228 = arith.constant 1.42141378 : f32
    %576 = vector.broadcast %cst_228 : f32 to vector<16x128xf32>
    %577 = arith.addf %575, %576 : vector<16x128xf32>
    %578 = arith.mulf %577, %570 : vector<16x128xf32>
    %cst_229 = arith.constant -0.284496725 : f32
    %579 = vector.broadcast %cst_229 : f32 to vector<16x128xf32>
    %580 = arith.addf %578, %579 : vector<16x128xf32>
    %581 = arith.mulf %580, %570 : vector<16x128xf32>
    %cst_230 = arith.constant 0.254829586 : f32
    %582 = vector.broadcast %cst_230 : f32 to vector<16x128xf32>
    %583 = arith.addf %581, %582 : vector<16x128xf32>
    %584 = arith.mulf %583, %570 : vector<16x128xf32>
    %cst_231 = arith.constant 0.000000e+00 : f32
    %585 = vector.broadcast %cst_231 : f32 to vector<16x128xf32>
    %586 = arith.subf %585, %564 : vector<16x128xf32>
    %587 = arith.mulf %586, %564 : vector<16x128xf32>
    %588 = math.exp %587 : vector<16x128xf32>
    %589 = arith.mulf %584, %588 : vector<16x128xf32>
    %cst_232 = arith.constant 1.000000e+00 : f32
    %590 = vector.broadcast %cst_232 : f32 to vector<16x128xf32>
    %591 = arith.subf %590, %589 : vector<16x128xf32>
    %592 = arith.mulf %563, %591 : vector<16x128xf32>
    %cst_233 = arith.constant 1.000000e+00 : f32
    %593 = vector.broadcast %cst_233 : f32 to vector<16x128xf32>
    %594 = arith.addf %593, %592 : vector<16x128xf32>
    %595 = arith.mulf %556, %594 : vector<16x128xf32>
    %c1_234 = arith.constant 1 : index
    %c0_235 = arith.constant 0 : index
    %c0_236 = arith.constant 0 : index
    %596 = vector.load %arg6[%c1_234, %c0_235, %c0_236] : memref<2x128x32xf32, #tpu.memory_space<vmem>>, vector<1x128x32xf32>
    %597 = vector.shape_cast %596 : vector<1x128x32xf32> to vector<128x32xf32>
    %cst_237 = arith.constant dense<0.000000e+00> : vector<16x32xf32>
    %598 = tpu.matmul %595, %597, %cst_237 {dimension_numbers = #tpu.dot_dimension_numbers<[1], [0], [0], [1], [0, 0, 1, 1], [], []>} : vector<16x128xf32>, vector<128x32xf32>, vector<16x32xf32> -> vector<16x32xf32>
    %c15 = arith.constant 15 : index
    %c0_238 = arith.constant 0 : index
    %599 = vector.load %arg2[%c15, %c0_238] : memref<24x128xf32, #tpu.memory_space<vmem>>, vector<1x32xf32>
    %600 = vector.broadcast %599 : vector<1x32xf32> to vector<16x32xf32>
    %601 = arith.addf %598, %600 : vector<16x32xf32>
    %602 = arith.addf %601, %548 : vector<16x32xf32>
    %c16 = arith.constant 16 : index
    %c0_239 = arith.constant 0 : index
    %603 = vector.load %arg2[%c16, %c0_239] : memref<24x128xf32, #tpu.memory_space<vmem>>, vector<1x32xf32>
    %c17 = arith.constant 17 : index
    %c0_240 = arith.constant 0 : index
    %604 = vector.load %arg2[%c17, %c0_240] : memref<24x128xf32, #tpu.memory_space<vmem>>, vector<1x32xf32>
    %cst_241 = arith.constant dense<0.000000e+00> : vector<16xf32>
    %605 = vector.multi_reduction <add>, %602, %cst_241 [1] : vector<16x32xf32> to vector<16xf32>
    %606 = vector.shape_cast %605 : vector<16xf32> to vector<16x1xf32>
    %cst_242 = arith.constant 3.200000e+01 : f32
    %607 = vector.broadcast %cst_242 : f32 to vector<16x1xf32>
    %608 = arith.divf %606, %607 : vector<16x1xf32>
    %609 = vector.broadcast %608 : vector<16x1xf32> to vector<16x32xf32>
    %610 = arith.subf %602, %609 : vector<16x32xf32>
    %611 = arith.mulf %610, %610 : vector<16x32xf32>
    %cst_243 = arith.constant dense<0.000000e+00> : vector<16xf32>
    %612 = vector.multi_reduction <add>, %611, %cst_243 [1] : vector<16x32xf32> to vector<16xf32>
    %613 = vector.shape_cast %612 : vector<16xf32> to vector<16x1xf32>
    %cst_244 = arith.constant 3.200000e+01 : f32
    %614 = vector.broadcast %cst_244 : f32 to vector<16x1xf32>
    %615 = arith.divf %613, %614 : vector<16x1xf32>
    %616 = vector.broadcast %608 : vector<16x1xf32> to vector<16x32xf32>
    %617 = arith.subf %602, %616 : vector<16x32xf32>
    %cst_245 = arith.constant 9.99999974E-6 : f32
    %618 = vector.broadcast %cst_245 : f32 to vector<16x1xf32>
    %619 = arith.addf %615, %618 : vector<16x1xf32>
    %620 = math.rsqrt %619 : vector<16x1xf32>
    %621 = vector.broadcast %620 : vector<16x1xf32> to vector<16x32xf32>
    %622 = arith.mulf %617, %621 : vector<16x32xf32>
    %623 = vector.broadcast %603 : vector<1x32xf32> to vector<16x32xf32>
    %624 = arith.mulf %622, %623 : vector<16x32xf32>
    %625 = vector.broadcast %604 : vector<1x32xf32> to vector<16x32xf32>
    %626 = arith.addf %624, %625 : vector<16x32xf32>
    %c0_246 = arith.constant 0 : index
    %c0_247 = arith.constant 0 : index
    %627 = vector.load %arg7[%c0_246, %c0_247] : memref<32x32xf32, #tpu.memory_space<vmem>>, vector<32x32xf32>
    %cst_248 = arith.constant dense<0.000000e+00> : vector<16x32xf32>
    %628 = tpu.matmul %626, %627, %cst_248 {dimension_numbers = #tpu.dot_dimension_numbers<[1], [0], [0], [1], [0, 0, 1, 1], [], []>} : vector<16x32xf32>, vector<32x32xf32>, vector<16x32xf32> -> vector<16x32xf32>
    %c18 = arith.constant 18 : index
    %c0_249 = arith.constant 0 : index
    %629 = vector.load %arg2[%c18, %c0_249] : memref<24x128xf32, #tpu.memory_space<vmem>>, vector<1x32xf32>
    %630 = vector.broadcast %629 : vector<1x32xf32> to vector<16x32xf32>
    %631 = arith.addf %628, %630 : vector<16x32xf32>
    %cst_250 = arith.constant 5.000000e-01 : f32
    %632 = vector.broadcast %cst_250 : f32 to vector<16x32xf32>
    %633 = arith.mulf %632, %631 : vector<16x32xf32>
    %cst_251 = arith.constant 0.707106769 : f32
    %634 = vector.broadcast %cst_251 : f32 to vector<16x32xf32>
    %635 = arith.mulf %631, %634 : vector<16x32xf32>
    %cst_252 = arith.constant 0.000000e+00 : f32
    %636 = vector.broadcast %cst_252 : f32 to vector<16x32xf32>
    %637 = arith.cmpf oge, %635, %636 : vector<16x32xf32>
    %cst_253 = arith.constant 1.000000e+00 : f32
    %cst_254 = arith.constant -1.000000e+00 : f32
    %638 = vector.broadcast %cst_253 : f32 to vector<16x32xf32>
    %639 = vector.broadcast %cst_254 : f32 to vector<16x32xf32>
    %640 = arith.select %637, %638, %639 : vector<16x32xi1>, vector<16x32xf32>
    %641 = math.absf %635 : vector<16x32xf32>
    %cst_255 = arith.constant 0.327591091 : f32
    %642 = vector.broadcast %cst_255 : f32 to vector<16x32xf32>
    %643 = arith.mulf %642, %641 : vector<16x32xf32>
    %cst_256 = arith.constant 1.000000e+00 : f32
    %644 = vector.broadcast %cst_256 : f32 to vector<16x32xf32>
    %645 = arith.addf %644, %643 : vector<16x32xf32>
    %cst_257 = arith.constant 1.000000e+00 : f32
    %646 = vector.broadcast %cst_257 : f32 to vector<16x32xf32>
    %647 = arith.divf %646, %645 : vector<16x32xf32>
    %cst_258 = arith.constant 1.06140542 : f32
    %648 = vector.broadcast %cst_258 : f32 to vector<16x32xf32>
    %649 = arith.mulf %648, %647 : vector<16x32xf32>
    %cst_259 = arith.constant -1.45315206 : f32
    %650 = vector.broadcast %cst_259 : f32 to vector<16x32xf32>
    %651 = arith.addf %649, %650 : vector<16x32xf32>
    %652 = arith.mulf %651, %647 : vector<16x32xf32>
    %cst_260 = arith.constant 1.42141378 : f32
    %653 = vector.broadcast %cst_260 : f32 to vector<16x32xf32>
    %654 = arith.addf %652, %653 : vector<16x32xf32>
    %655 = arith.mulf %654, %647 : vector<16x32xf32>
    %cst_261 = arith.constant -0.284496725 : f32
    %656 = vector.broadcast %cst_261 : f32 to vector<16x32xf32>
    %657 = arith.addf %655, %656 : vector<16x32xf32>
    %658 = arith.mulf %657, %647 : vector<16x32xf32>
    %cst_262 = arith.constant 0.254829586 : f32
    %659 = vector.broadcast %cst_262 : f32 to vector<16x32xf32>
    %660 = arith.addf %658, %659 : vector<16x32xf32>
    %661 = arith.mulf %660, %647 : vector<16x32xf32>
    %cst_263 = arith.constant 0.000000e+00 : f32
    %662 = vector.broadcast %cst_263 : f32 to vector<16x32xf32>
    %663 = arith.subf %662, %641 : vector<16x32xf32>
    %664 = arith.mulf %663, %641 : vector<16x32xf32>
    %665 = math.exp %664 : vector<16x32xf32>
    %666 = arith.mulf %661, %665 : vector<16x32xf32>
    %cst_264 = arith.constant 1.000000e+00 : f32
    %667 = vector.broadcast %cst_264 : f32 to vector<16x32xf32>
    %668 = arith.subf %667, %666 : vector<16x32xf32>
    %669 = arith.mulf %640, %668 : vector<16x32xf32>
    %cst_265 = arith.constant 1.000000e+00 : f32
    %670 = vector.broadcast %cst_265 : f32 to vector<16x32xf32>
    %671 = arith.addf %670, %669 : vector<16x32xf32>
    %672 = arith.mulf %633, %671 : vector<16x32xf32>
    %c0_266 = arith.constant 0 : index
    %c0_267 = arith.constant 0 : index
    %673 = vector.load %arg8[%c0_266, %c0_267] : memref<32x128xf32, #tpu.memory_space<vmem>>, vector<32x128xf32>
    %cst_268 = arith.constant dense<0.000000e+00> : vector<16x128xf32>
    %674 = tpu.matmul %672, %673, %cst_268 {dimension_numbers = #tpu.dot_dimension_numbers<[1], [0], [0], [1], [0, 0, 1, 1], [], []>} : vector<16x32xf32>, vector<32x128xf32>, vector<16x128xf32> -> vector<16x128xf32>
    %c19 = arith.constant 19 : index
    %c0_269 = arith.constant 0 : index
    %675 = vector.load %arg2[%c19, %c0_269] : memref<24x128xf32, #tpu.memory_space<vmem>>, vector<1x128xf32>
    %676 = vector.broadcast %675 : vector<1x128xf32> to vector<16x128xf32>
    %677 = arith.addf %674, %676 : vector<16x128xf32>
    %c0_270 = arith.constant 0 : index
    %c0_271 = arith.constant 0 : index
    %678 = vector.load %arg9[%c0_270, %c0_271] : memref<16x128xf32, #tpu.memory_space<vmem>>, vector<16x128xf32>
    tpu.vector_store %arg9[%c0_270, %c0_271], %677 {strides = array<i32>} : memref<16x128xf32, #tpu.memory_space<vmem>>, vector<16x128xf32>,
    return
  }
}

</mosaic_0001>

<llo_original>
// kernel: transformer_forward.1
$region0: #{transformer_forward.1}
  #allocation0 [shape = 'u32[]', space=smem, size = 0x4, offset = 0x4, fixed_abs, tag = 'smem constant byte address 0x4 - core index']
  #allocation1 [shape = 'u32[72,128]{1,0:T(1,128)}', space=vmem, size = 0x9000, scoped, tag = 'internal scratch']
  %s0 = inlined_call_operand.vmem [shape: f32[16,32], index: 0, kind: input, shape index: {}]
  %s1 = inlined_call_operand.vmem [shape: f32[2,8,8], index: 1, kind: input, shape index: {}]
  %s2 = inlined_call_operand.vmem [shape: f32[24,128], index: 2, kind: input, shape index: {}]
  %s3 = inlined_call_operand.vmem [shape: f32[2,32,96], index: 3, kind: input, shape index: {}]
  %s4 = inlined_call_operand.vmem [shape: f32[2,32,32], index: 4, kind: input, shape index: {}]
  %s5 = inlined_call_operand.vmem [shape: f32[2,32,128], index: 5, kind: input, shape index: {}]
  %s6 = inlined_call_operand.vmem [shape: f32[2,128,32], index: 6, kind: input, shape index: {}]
  %s7 = inlined_call_operand.vmem [shape: f32[32,32], index: 7, kind: input, shape index: {}]
  %s8 = inlined_call_operand.vmem [shape: f32[32,128], index: 8, kind: input, shape index: {}]
  %s9 = inlined_call_operand.vmem [shape: f32[16,128], index: 9, kind: output, shape index: {}]
  %s10 = sld [smem:[#allocation0]]
  $region46: #{transformer_forward.1} parent=0
    _
  %s12 = ssub.s32 1, %s10
  %s13 = scalar_select 0, %s12, %s10
  // Predicated region
  $region2: #{transformer_forward.1} parent=0 // pred_check
    _
  $region3: #{transformer_forward.1} parent=0 // pred_check_branch
    %15 = sbr.rel (0) target = $region5
  $region4: #{transformer_forward.1} parent=0 // pred_region
    _
  $region5: #{transformer_forward.1} parent=0 // pred_fallthru
    _
  // Predicated region
  $region6: #{transformer_forward.1} parent=0 // pred_check
    _
  $region7: #{transformer_forward.1} parent=0 // pred_check_branch
    %17 = sbr.rel (0) target = $region9
  $region8: #{transformer_forward.1} parent=0 // pred_region
    _
  $region9: #{transformer_forward.1} parent=0 // pred_fallthru
    _
  // Predicated region
  $region10: #{transformer_forward.1} parent=0 // pred_check
    _
  $region11: #{transformer_forward.1} parent=0 // pred_check_branch
    %19 = sbr.rel (0) target = $region13
  $region12: #{transformer_forward.1} parent=0 // pred_region
    _
  $region13: #{transformer_forward.1} parent=0 // pred_fallthru
    _
  // Predicated region
  $region14: #{transformer_forward.1} parent=0 // pred_check
    _
  $region15: #{transformer_forward.1} parent=0 // pred_check_branch
    %21 = sbr.rel (0) target = $region17
  $region16: #{transformer_forward.1} parent=0 // pred_region
    _
  $region17: #{transformer_forward.1} parent=0 // pred_fallthru
    _
  // Predicated region
  $region18: #{transformer_forward.1} parent=0 // pred_check
    _
  $region19: #{transformer_forward.1} parent=0 // pred_check_branch
    %23 = sbr.rel (0) target = $region21
  $region20: #{transformer_forward.1} parent=0 // pred_region
    _
  $region21: #{transformer_forward.1} parent=0 // pred_fallthru
    _
  // Predicated region
  $region22: #{transformer_forward.1} parent=0 // pred_check
    _
  $region23: #{transformer_forward.1} parent=0 // pred_check_branch
    %25 = sbr.rel (0) target = $region25
  $region24: #{transformer_forward.1} parent=0 // pred_region
    _
  $region25: #{transformer_forward.1} parent=0 // pred_fallthru
    _
  // Predicated region
  $region26: #{transformer_forward.1} parent=0 // pred_check
    _
  $region27: #{transformer_forward.1} parent=0 // pred_check_branch
    %27 = sbr.rel (0) target = $region29
  $region28: #{transformer_forward.1} parent=0 // pred_region
    _
  $region29: #{transformer_forward.1} parent=0 // pred_fallthru
    _
  // Predicated region
  $region30: #{transformer_forward.1} parent=0 // pred_check
    _
  $region31: #{transformer_forward.1} parent=0 // pred_check_branch
    %29 = sbr.rel (0) target = $region33
  $region32: #{transformer_forward.1} parent=0 // pred_region
    _
  $region33: #{transformer_forward.1} parent=0 // pred_fallthru
    _
  // Predicated region
  $region34: #{transformer_forward.1} parent=0 // pred_check
    _
  $region35: #{transformer_forward.1} parent=0 // pred_check_branch
    %31 = sbr.rel (0) target = $region37
  $region36: #{transformer_forward.1} parent=0 // pred_region
    _
  $region37: #{transformer_forward.1} parent=0 // pred_fallthru
    _
  %v32 = vld [vmem:[%s0] sm:$0xff]
  %v33 = vld [vmem:[%s0 + $0x8] sm:$0xff]
  %v34 = vld [vmem:[%s2] sm:$0x1]
  %v35 = vld [vmem:[%s2 + $0x1] sm:$0x1]
  %vm36 = vcmask 261120
  %v37 = vsel %vm36, %v32, 0.0
  %38 = vadd.xlane.f32.xlu0 %v37
  %v39 = vpop.xlane.xlu0 %38
  %v40 = vsel %vm36, %v33, 0.0
  %41 = vadd.xlane.f32.xlu0 %v40
  %v42 = vpop.xlane.xlu0 %41
  %v43 = vrcp.pop 32.0
  %v44 = vmul.f32 32.0, %v43
  %v45 = vsub.f32 1.0, %v44
  %v46 = vmul.f32 %v43, %v45
  %v47 = vadd.f32 %v43, %v46
  %vm48 = vweird.f32 %v43
  %v49 = vsel %vm48, %v43, %v47
  %v50 = vmul.f32 %v39, %v49
  %v51 = vmul.f32 %v42, %v49
  %v52 = vsub.f32 %v32, %v50
  %v53 = vsub.f32 %v33, %v51
  %v54 = vmul.f32 %v52, %v52
  %v55 = vmul.f32 %v53, %v53
  %v56 = vsel %vm36, %v54, 0.0
  %57 = vadd.xlane.f32.xlu0 %v56
  %v58 = vpop.xlane.xlu0 %57
  %v59 = vsel %vm36, %v55, 0.0
  %60 = vadd.xlane.f32.xlu0 %v59
  %v61 = vpop.xlane.xlu0 %60
  %v62 = vmul.f32 %v58, %v49
  %v63 = vmul.f32 %v61, %v49
  %v64 = vadd.f32 %v62, 1e-05
  %v65 = vadd.f32 %v63, 1e-05
  %v66 = vrsqrt.pop %v64
  %v67 = vmul.f32 %v66, %v64
  %v68 = vmul.f32 %v67, %v66
  %v69 = vmul.f32 0.5, %v68
  %v70 = vsub.f32 1.5, %v69
  %v71 = vmul.f32 %v66, %v70
  %vm72 = vweird.f32 %v64
  %vm73 = vweird.f32 %v66
  %vm74 = vmor %vm72, %vm73
  %v75 = vsel %vm74, %v66, %v71
  %v76 = vrsqrt.pop %v65
  %v77 = vmul.f32 %v76, %v65
  %v78 = vmul.f32 %v77, %v76
  %v79 = vmul.f32 0.5, %v78
  %v80 = vsub.f32 1.5, %v79
  %v81 = vmul.f32 %v76, %v80
  %vm82 = vweird.f32 %v65
  %vm83 = vweird.f32 %v76
  %vm84 = vmor %vm82, %vm83
  %v85 = vsel %vm84, %v76, %v81
  %v86 = vmul.f32 %v52, %v75
  %v87 = vmul.f32 %v53, %v85
  %v88 = vperm.slane %v34, 0
  %v89 = vmul.f32 %v86, %v88
  %v90 = vmul.f32 %v87, %v88
  %v91 = vperm.slane %v35, 0
  %v92 = vadd.f32 %v89, %v91
  %v93 = vadd.f32 %v90, %v91
  %v94 = vld [vmem:[%s3] sm:$0xff]
  %v95 = vld [vmem:[%s3 + $0x8] sm:$0xff]
  %v96 = vld [vmem:[%s3 + $0x10] sm:$0xff]
  %v97 = vld [vmem:[%s3 + $0x18] sm:$0xff]
  %v98 = vld [vmem:[%s2 + $0x2] sm:$0x1]
  %v99 = vperm.slane %v98, 0
  %v101 = vsel %vm36, %v92, 0
  %v104 = vsel %vm36, %v93, 0
  %106 = vmatpush.msra.mxu0 0.0
  %107 = vmatpush.msra.mxu0 0.0
  %108 = vmatpush.msra.mxu0 0.0
  %109 = vmatpush.msra.mxu0 0.0
  %110 = vmatpush.msra.mxu0 0.0
  %111 = vmatpush.msra.mxu0 0.0
  %112 = vmatpush.msra.mxu0 0.0
  %113 = vmatpush.msra.mxu0 0.0
  %114 = vmatpush.msra.mxu0 0.0
  %115 = vmatpush.msra.mxu0 0.0
  %116 = vmatpush.msra.mxu0 0.0
  %117 = vmatpush.msra.mxu0 0.0
  %118 = vmatpush.msra.mxu0 %v97
  %119 = vmatpush.msra.mxu0 %v96
  %120 = vmatpush.msra.mxu0 %v95
  %121 = vmatpush.msra.mxu0 %v94
  %122 = vmatmul.f32.gmra.mxu0 %v101
  %v123 = vpop.f32.mrf.mxu0
  %v124 = vadd.f32 %v99, %v123
  %125 = vmatmul.f32.gmra.mxu0 %v104
  %v126 = vpop.f32.mrf.mxu0
  %v127 = vadd.f32 %v99, %v126
  %128 = vdwg.mxu0
  %v129 = vld [vmem:[%s4] sm:$0xff]
  %v130 = vld [vmem:[%s4 + $0x8] sm:$0xff]
  %v131 = vld [vmem:[%s4 + $0x10] sm:$0xff]
  %v132 = vld [vmem:[%s4 + $0x18] sm:$0xff]
  %v133 = vld [vmem:[%s1] sm:$0xff]
  %135 = vrot.lane.b32.xlu0 %v124, 96
  %v136 = vpop.permute.xlu0 %135
  %vm137 = vcmask 64512
  %v138 = vsel %vm137, %v124, 0
  %v140 = vsel %vm137, %v136, 0
  %142 = vmatpush.xpose.msra.mxu0 0.0
  %143 = vmatpush.xpose.msra.mxu0 0.0
  %144 = vmatpush.xpose.msra.mxu0 0.0
  %145 = vmatpush.xpose.msra.mxu0 0.0
  %146 = vmatpush.xpose.msra.mxu0 0.0
  %147 = vmatpush.xpose.msra.mxu0 0.0
  %148 = vmatpush.xpose.msra.mxu0 0.0
  %149 = vmatpush.xpose.msra.mxu0 0.0
  %150 = vmatpush.xpose.msra.mxu0 0.0
  %151 = vmatpush.xpose.msra.mxu0 0.0
  %152 = vmatpush.xpose.msra.mxu0 0.0
  %153 = vmatpush.xpose.msra.mxu0 0.0
  %154 = vmatpush.xpose.msra.mxu0 0.0
  %155 = vmatpush.xpose.msra.mxu0 0.0
  %156 = vmatpush.xpose.msra.mxu0 0.0
  %157 = vmatpush.xpose.msra.mxu0 %v140
  %158 = vmatmul.f32.gmra.mxu0 %v138
  %v159 = vpop.f32.mrf.mxu0
  %v160 = vadd.f32 0.0, %v159
  %161 = vdwg.mxu0
  %v162 = vmul.f32 %v160, 0.17677669
  %vm163 = vcmp.eq.f32.partialorder %v133, 0.0
  %v164 = vsel %vm163, -1e+12, %v162
  %v165 = vsel %vm137, %v164, -inf
  %166 = vmax.xlane.f32.xlu0 %v165
  %v167 = vpop.xlane.xlu0 %166
  %v168 = vsub.f32 %v164, %v167
  %v169 = vmul.f32 %v168, 1.442695
  %v170 = vpow.pop %v169
  %v171 = vsel %vm137, %v170, 0.0
  %172 = vadd.xlane.f32.xlu0 %v171
  %v173 = vpop.xlane.xlu0 %172
  %v174 = vrcp.pop %v173
  %v175 = vmul.f32 %v173, %v174
  %v176 = vsub.f32 1.0, %v175
  %v177 = vmul.f32 %v174, %v176
  %v178 = vadd.f32 %v174, %v177
  %vm179 = vweird.f32 %v173
  %vm180 = vweird.f32 %v174
  %vm181 = vmor %vm179, %vm180
  %v182 = vsel %vm181, %v174, %v178
  %v183 = vand.u32 2147483647, %v173
  %vm184 = vcmp.eq.f32.partialorder %v183, 8.507059e+37
  %v185 = vand.u32 %v173, 2147483648
  %v186 = vor.u32 1.1754944e-38, %v185
  %v187 = vsel %vm184, %v186, %v182
  %v188 = vmul.f32 %v170, %v187
  %189 = vrot.lane.b32.xlu0 %v124, 64
  %v190 = vpop.permute.xlu0 %189
  %v193 = vsel %vm137, %v188, 0
  %195 = vmatpush.msra.mxu0 0.0
  %196 = vmatpush.msra.mxu0 0.0
  %197 = vmatpush.msra.mxu0 0.0
  %198 = vmatpush.msra.mxu0 0.0
  %199 = vmatpush.msra.mxu0 0.0
  %200 = vmatpush.msra.mxu0 0.0
  %201 = vmatpush.msra.mxu0 0.0
  %202 = vmatpush.msra.mxu0 0.0
  %203 = vmatpush.msra.mxu0 0.0
  %204 = vmatpush.msra.mxu0 0.0
  %205 = vmatpush.msra.mxu0 0.0
  %206 = vmatpush.msra.mxu0 0.0
  %207 = vmatpush.msra.mxu0 0.0
  %208 = vmatpush.msra.mxu0 0.0
  %209 = vmatpush.msra.mxu0 0.0
  %210 = vmatpush.msra.mxu0 %v190
  %211 = vmatmul.f32.gmra.mxu0 %v193
  %v212 = vpop.f32.mrf.mxu0
  %v213 = vadd.f32 0.0, %v212
  %214 = vdwg.mxu0
  %215 = vrot.lane.b32.xlu0 %v124, 120
  %v216 = vpop.permute.xlu0 %215
  %217 = vrot.lane.b32.xlu0 %v124, 88
  %v218 = vpop.permute.xlu0 %217
  %v219 = vsel %vm137, %v216, 0
  %v221 = vsel %vm137, %v218, 0
  %223 = vmatpush.xpose.msra.mxu0 0.0
  %224 = vmatpush.xpose.msra.mxu0 0.0
  %225 = vmatpush.xpose.msra.mxu0 0.0
  %226 = vmatpush.xpose.msra.mxu0 0.0
  %227 = vmatpush.xpose.msra.mxu0 0.0
  %228 = vmatpush.xpose.msra.mxu0 0.0
  %229 = vmatpush.xpose.msra.mxu0 0.0
  %230 = vmatpush.xpose.msra.mxu0 0.0
  %231 = vmatpush.xpose.msra.mxu0 0.0
  %232 = vmatpush.xpose.msra.mxu0 0.0
  %233 = vmatpush.xpose.msra.mxu0 0.0
  %234 = vmatpush.xpose.msra.mxu0 0.0
  %235 = vmatpush.xpose.msra.mxu0 0.0
  %236 = vmatpush.xpose.msra.mxu0 0.0
  %237 = vmatpush.xpose.msra.mxu0 0.0
  %238 = vmatpush.xpose.msra.mxu0 %v221
  %239 = vmatmul.f32.gmra.mxu0 %v219
  %v240 = vpop.f32.mrf.mxu0
  %v241 = vadd.f32 0.0, %v240
  %242 = vdwg.mxu0
  %v243 = vmul.f32 %v241, 0.17677669
  %v244 = vsel %vm163, -1e+12, %v243
  %v245 = vsel %vm137, %v244, -inf
  %246 = vmax.xlane.f32.xlu0 %v245
  %v247 = vpop.xlane.xlu0 %246
  %v248 = vsub.f32 %v244, %v247
  %v249 = vmul.f32 %v248, 1.442695
  %v250 = vpow.pop %v249
  %v251 = vsel %vm137, %v250, 0.0
  %252 = vadd.xlane.f32.xlu0 %v251
  %v253 = vpop.xlane.xlu0 %252
  %v254 = vrcp.pop %v253
  %v255 = vmul.f32 %v253, %v254
  %v256 = vsub.f32 1.0, %v255
  %v257 = vmul.f32 %v254, %v256
  %v258 = vadd.f32 %v254, %v257
  %vm259 = vweird.f32 %v253
  %vm260 = vweird.f32 %v254
  %vm261 = vmor %vm259, %vm260
  %v262 = vsel %vm261, %v254, %v258
  %v263 = vand.u32 2147483647, %v253
  %vm264 = vcmp.eq.f32.partialorder %v263, 8.507059e+37
  %v265 = vand.u32 %v253, 2147483648
  %v266 = vor.u32 1.1754944e-38, %v265
  %v267 = vsel %vm264, %v266, %v262
  %v268 = vmul.f32 %v250, %v267
  %269 = vrot.lane.b32.xlu0 %v124, 56
  %v270 = vpop.permute.xlu0 %269
  %v273 = vsel %vm137, %v268, 0
  %275 = vmatpush.msra.mxu0 0.0
  %276 = vmatpush.msra.mxu0 0.0
  %277 = vmatpush.msra.mxu0 0.0
  %278 = vmatpush.msra.mxu0 0.0
  %279 = vmatpush.msra.mxu0 0.0
  %280 = vmatpush.msra.mxu0 0.0
  %281 = vmatpush.msra.mxu0 0.0
  %282 = vmatpush.msra.mxu0 0.0
  %283 = vmatpush.msra.mxu0 0.0
  %284 = vmatpush.msra.mxu0 0.0
  %285 = vmatpush.msra.mxu0 0.0
  %286 = vmatpush.msra.mxu0 0.0
  %287 = vmatpush.msra.mxu0 0.0
  %288 = vmatpush.msra.mxu0 0.0
  %289 = vmatpush.msra.mxu0 0.0
  %290 = vmatpush.msra.mxu0 %v270
  %291 = vmatmul.f32.gmra.mxu0 %v273
  %v292 = vpop.f32.mrf.mxu0
  %v293 = vadd.f32 0.0, %v292
  %294 = vdwg.mxu0
  %v296 = vsel %vm137, %v293, 0
  %298 = vmatpush.msra.mxu0 0.0
  %299 = vmatpush.msra.mxu0 0.0
  %300 = vmatpush.msra.mxu0 0.0
  %301 = vmatpush.msra.mxu0 0.0
  %302 = vmatpush.msra.mxu0 0.0
  %303 = vmatpush.msra.mxu0 0.0
  %304 = vmatpush.msra.mxu0 0.0
  %305 = vmatpush.msra.mxu0 0.0
  %306 = vmatpush.msra.mxu0 0.0
  %307 = vmatpush.msra.mxu0 0.0
  %308 = vmatpush.msra.mxu0 0.0
  %309 = vmatpush.msra.mxu0 0.0
  %310 = vmatpush.msra.mxu0 0.0
  %311 = vmatpush.msra.mxu0 0.0
  %312 = vmatpush.msra.mxu0 0.0
  %313 = vmatpush.msra.mxu0 %v130
  %314 = vmatmul.f32.gmra.mxu0 %v296
  %v315 = vpop.f32.mrf.mxu0
  %v316 = vadd.f32 0.0, %v315
  %317 = vdwg.mxu0
  %v319 = vsel %vm137, %v213, 0
  %321 = vmatpush.msra.mxu0 0.0
  %322 = vmatpush.msra.mxu0 0.0
  %323 = vmatpush.msra.mxu0 0.0
  %324 = vmatpush.msra.mxu0 0.0
  %325 = vmatpush.msra.mxu0 0.0
  %326 = vmatpush.msra.mxu0 0.0
  %327 = vmatpush.msra.mxu0 0.0
  %328 = vmatpush.msra.mxu0 0.0
  %329 = vmatpush.msra.mxu0 0.0
  %330 = vmatpush.msra.mxu0 0.0
  %331 = vmatpush.msra.mxu0 0.0
  %332 = vmatpush.msra.mxu0 0.0
  %333 = vmatpush.msra.mxu0 0.0
  %334 = vmatpush.msra.mxu0 0.0
  %335 = vmatpush.msra.mxu0 0.0
  %336 = vmatpush.msra.mxu0 %v129
  %337 = vmatmul.f32.gmra.mxu0 %v319
  %v338 = vpop.f32.mrf.mxu0
  %v339 = vadd.f32 %v316, %v338
  %340 = vdwg.mxu0
  %341 = vrot.lane.b32.xlu0 %v124, 112
  %v342 = vpop.permute.xlu0 %341
  %343 = vrot.lane.b32.xlu0 %v124, 80
  %v344 = vpop.permute.xlu0 %343
  %v345 = vsel %vm137, %v342, 0
  %v347 = vsel %vm137, %v344, 0
  %349 = vmatpush.xpose.msra.mxu0 0.0
  %350 = vmatpush.xpose.msra.mxu0 0.0
  %351 = vmatpush.xpose.msra.mxu0 0.0
  %352 = vmatpush.xpose.msra.mxu0 0.0
  %353 = vmatpush.xpose.msra.mxu0 0.0
  %354 = vmatpush.xpose.msra.mxu0 0.0
  %355 = vmatpush.xpose.msra.mxu0 0.0
  %356 = vmatpush.xpose.msra.mxu0 0.0
  %357 = vmatpush.xpose.msra.mxu0 0.0
  %358 = vmatpush.xpose.msra.mxu0 0.0
  %359 = vmatpush.xpose.msra.mxu0 0.0
  %360 = vmatpush.xpose.msra.mxu0 0.0
  %361 = vmatpush.xpose.msra.mxu0 0.0
  %362 = vmatpush.xpose.msra.mxu0 0.0
  %363 = vmatpush.xpose.msra.mxu0 0.0
  %364 = vmatpush.xpose.msra.mxu0 %v347
  %365 = vmatmul.f32.gmra.mxu0 %v345
  %v366 = vpop.f32.mrf.mxu0
  %v367 = vadd.f32 0.0, %v366
  %368 = vdwg.mxu0
  %v369 = vmul.f32 %v367, 0.17677669
  %v370 = vsel %vm163, -1e+12, %v369
  %v371 = vsel %vm137, %v370, -inf
  %372 = vmax.xlane.f32.xlu0 %v371
  %v373 = vpop.xlane.xlu0 %372
  %v374 = vsub.f32 %v370, %v373
  %v375 = vmul.f32 %v374, 1.442695
  %v376 = vpow.pop %v375
  %v377 = vsel %vm137, %v376, 0.0
  %378 = vadd.xlane.f32.xlu0 %v377
  %v379 = vpop.xlane.xlu0 %378
  %v380 = vrcp.pop %v379
  %v381 = vmul.f32 %v379, %v380
  %v382 = vsub.f32 1.0, %v381
  %v383 = vmul.f32 %v380, %v382
  %v384 = vadd.f32 %v380, %v383
  %vm385 = vweird.f32 %v379
  %vm386 = vweird.f32 %v380
  %vm387 = vmor %vm385, %vm386
  %v388 = vsel %vm387, %v380, %v384
  %v389 = vand.u32 2147483647, %v379
  %vm390 = vcmp.eq.f32.partialorder %v389, 8.507059e+37
  %v391 = vand.u32 %v379, 2147483648
  %v392 = vor.u32 1.1754944e-38, %v391
  %v393 = vsel %vm390, %v392, %v388
  %v394 = vmul.f32 %v376, %v393
  %395 = vrot.lane.b32.xlu0 %v124, 48
  %v396 = vpop.permute.xlu0 %395
  %v399 = vsel %vm137, %v394, 0
  %401 = vmatpush.msra.mxu0 0.0
  %402 = vmatpush.msra.mxu0 0.0
  %403 = vmatpush.msra.mxu0 0.0
  %404 = vmatpush.msra.mxu0 0.0
  %405 = vmatpush.msra.mxu0 0.0
  %406 = vmatpush.msra.mxu0 0.0
  %407 = vmatpush.msra.mxu0 0.0
  %408 = vmatpush.msra.mxu0 0.0
  %409 = vmatpush.msra.mxu0 0.0
  %410 = vmatpush.msra.mxu0 0.0
  %411 = vmatpush.msra.mxu0 0.0
  %412 = vmatpush.msra.mxu0 0.0
  %413 = vmatpush.msra.mxu0 0.0
  %414 = vmatpush.msra.mxu0 0.0
  %415 = vmatpush.msra.mxu0 0.0
  %416 = vmatpush.msra.mxu0 %v396
  %417 = vmatmul.f32.gmra.mxu0 %v399
  %v418 = vpop.f32.mrf.mxu0
  %v419 = vadd.f32 0.0, %v418
  %420 = vdwg.mxu0
  %v422 = vsel %vm137, %v419, 0
  %424 = vmatpush.msra.mxu0 0.0
  %425 = vmatpush.msra.mxu0 0.0
  %426 = vmatpush.msra.mxu0 0.0
  %427 = vmatpush.msra.mxu0 0.0
  %428 = vmatpush.msra.mxu0 0.0
  %429 = vmatpush.msra.mxu0 0.0
  %430 = vmatpush.msra.mxu0 0.0
  %431 = vmatpush.msra.mxu0 0.0
  %432 = vmatpush.msra.mxu0 0.0
  %433 = vmatpush.msra.mxu0 0.0
  %434 = vmatpush.msra.mxu0 0.0
  %435 = vmatpush.msra.mxu0 0.0
  %436 = vmatpush.msra.mxu0 0.0
  %437 = vmatpush.msra.mxu0 0.0
  %438 = vmatpush.msra.mxu0 0.0
  %439 = vmatpush.msra.mxu0 %v131
  %440 = vmatmul.f32.gmra.mxu0 %v422
  %v441 = vpop.f32.mrf.mxu0
  %v442 = vadd.f32 0.0, %v441
  %443 = vdwg.mxu0
  %v444 = vadd.f32 %v339, %v442
  %445 = vrot.lane.b32.xlu0 %v124, 104
  %v446 = vpop.permute.xlu0 %445
  %447 = vrot.lane.b32.xlu0 %v124, 72
  %v448 = vpop.permute.xlu0 %447
  %v449 = vsel %vm137, %v446, 0
  %v451 = vsel %vm137, %v448, 0
  %453 = vmatpush.xpose.msra.mxu0 0.0
  %454 = vmatpush.xpose.msra.mxu0 0.0
  %455 = vmatpush.xpose.msra.mxu0 0.0
  %456 = vmatpush.xpose.msra.mxu0 0.0
  %457 = vmatpush.xpose.msra.mxu0 0.0
  %458 = vmatpush.xpose.msra.mxu0 0.0
  %459 = vmatpush.xpose.msra.mxu0 0.0
  %460 = vmatpush.xpose.msra.mxu0 0.0
  %461 = vmatpush.xpose.msra.mxu0 0.0
  %462 = vmatpush.xpose.msra.mxu0 0.0
  %463 = vmatpush.xpose.msra.mxu0 0.0
  %464 = vmatpush.xpose.msra.mxu0 0.0
  %465 = vmatpush.xpose.msra.mxu0 0.0
  %466 = vmatpush.xpose.msra.mxu0 0.0
  %467 = vmatpush.xpose.msra.mxu0 0.0
  %468 = vmatpush.xpose.msra.mxu0 %v451
  %469 = vmatmul.f32.gmra.mxu0 %v449
  %v470 = vpop.f32.mrf.mxu0
  %v471 = vadd.f32 0.0, %v470
  %472 = vdwg.mxu0
  %v473 = vmul.f32 %v471, 0.17677669
  %v474 = vsel %vm163, -1e+12, %v473
  %v475 = vsel %vm137, %v474, -inf
  %476 = vmax.xlane.f32.xlu0 %v475
  %v477 = vpop.xlane.xlu0 %476
  %v478 = vsub.f32 %v474, %v477
  %v479 = vmul.f32 %v478, 1.442695
  %v480 = vpow.pop %v479
  %v481 = vsel %vm137, %v480, 0.0
  %482 = vadd.xlane.f32.xlu0 %v481
  %v483 = vpop.xlane.xlu0 %482
  %v484 = vrcp.pop %v483
  %v485 = vmul.f32 %v483, %v484
  %v486 = vsub.f32 1.0, %v485
  %v487 = vmul.f32 %v484, %v486
  %v488 = vadd.f32 %v484, %v487
  %vm489 = vweird.f32 %v483
  %vm490 = vweird.f32 %v484
  %vm491 = vmor %vm489, %vm490
  %v492 = vsel %vm491, %v484, %v488
  %v493 = vand.u32 2147483647, %v483
  %vm494 = vcmp.eq.f32.partialorder %v493, 8.507059e+37
  %v495 = vand.u32 %v483, 2147483648
  %v496 = vor.u32 1.1754944e-38, %v495
  %v497 = vsel %vm494, %v496, %v492
  %v498 = vmul.f32 %v480, %v497
  %499 = vrot.lane.b32.xlu0 %v124, 40
  %v500 = vpop.permute.xlu0 %499
  %v503 = vsel %vm137, %v498, 0
  %505 = vmatpush.msra.mxu0 0.0
  %506 = vmatpush.msra.mxu0 0.0
  %507 = vmatpush.msra.mxu0 0.0
  %508 = vmatpush.msra.mxu0 0.0
  %509 = vmatpush.msra.mxu0 0.0
  %510 = vmatpush.msra.mxu0 0.0
  %511 = vmatpush.msra.mxu0 0.0
  %512 = vmatpush.msra.mxu0 0.0
  %513 = vmatpush.msra.mxu0 0.0
  %514 = vmatpush.msra.mxu0 0.0
  %515 = vmatpush.msra.mxu0 0.0
  %516 = vmatpush.msra.mxu0 0.0
  %517 = vmatpush.msra.mxu0 0.0
  %518 = vmatpush.msra.mxu0 0.0
  %519 = vmatpush.msra.mxu0 0.0
  %520 = vmatpush.msra.mxu0 %v500
  %521 = vmatmul.f32.gmra.mxu0 %v503
  %v522 = vpop.f32.mrf.mxu0
  %v523 = vadd.f32 0.0, %v522
  %524 = vdwg.mxu0
  %v526 = vsel %vm137, %v523, 0
  %528 = vmatpush.msra.mxu0 0.0
  %529 = vmatpush.msra.mxu0 0.0
  %530 = vmatpush.msra.mxu0 0.0
  %531 = vmatpush.msra.mxu0 0.0
  %532 = vmatpush.msra.mxu0 0.0
  %533 = vmatpush.msra.mxu0 0.0
  %534 = vmatpush.msra.mxu0 0.0
  %535 = vmatpush.msra.mxu0 0.0
  %536 = vmatpush.msra.mxu0 0.0
  %537 = vmatpush.msra.mxu0 0.0
  %538 = vmatpush.msra.mxu0 0.0
  %539 = vmatpush.msra.mxu0 0.0
  %540 = vmatpush.msra.mxu0 0.0
  %541 = vmatpush.msra.mxu0 0.0
  %542 = vmatpush.msra.mxu0 0.0
  %543 = vmatpush.msra.mxu0 %v132
  %544 = vmatmul.f32.gmra.mxu0 %v526
  %v545 = vpop.f32.mrf.mxu0
  %v546 = vadd.f32 0.0, %v545
  %547 = vdwg.mxu0
  %v548 = vadd.f32 %v444, %v546
  %s549 = scalar_lea.vmem %s1, 8
  %v550 = vld [vmem:[%s549] sm:$0xff]
  %552 = vrot.lane.b32.xlu0 %v127, 96
  %v553 = vpop.permute.xlu0 %552
  %v554 = vsel %vm137, %v127, 0
  %v556 = vsel %vm137, %v553, 0
  %558 = vmatpush.xpose.msra.mxu0 0.0
  %559 = vmatpush.xpose.msra.mxu0 0.0
  %560 = vmatpush.xpose.msra.mxu0 0.0
  %561 = vmatpush.xpose.msra.mxu0 0.0
  %562 = vmatpush.xpose.msra.mxu0 0.0
  %563 = vmatpush.xpose.msra.mxu0 0.0
  %564 = vmatpush.xpose.msra.mxu0 0.0
  %565 = vmatpush.xpose.msra.mxu0 0.0
  %566 = vmatpush.xpose.msra.mxu0 0.0
  %567 = vmatpush.xpose.msra.mxu0 0.0
  %568 = vmatpush.xpose.msra.mxu0 0.0
  %569 = vmatpush.xpose.msra.mxu0 0.0
  %570 = vmatpush.xpose.msra.mxu0 0.0
  %571 = vmatpush.xpose.msra.mxu0 0.0
  %572 = vmatpush.xpose.msra.mxu0 0.0
  %573 = vmatpush.xpose.msra.mxu0 %v556
  %574 = vmatmul.f32.gmra.mxu0 %v554
  %v575 = vpop.f32.mrf.mxu0
  %v576 = vadd.f32 0.0, %v575
  %577 = vdwg.mxu0
  %v578 = vmul.f32 %v576, 0.17677669
  %vm579 = vcmp.eq.f32.partialorder %v550, 0.0
  %v580 = vsel %vm579, -1e+12, %v578
  %v581 = vsel %vm137, %v580, -inf
  %582 = vmax.xlane.f32.xlu0 %v581
  %v583 = vpop.xlane.xlu0 %582
  %v584 = vsub.f32 %v580, %v583
  %v585 = vmul.f32 %v584, 1.442695
  %v586 = vpow.pop %v585
  %v587 = vsel %vm137, %v586, 0.0
  %588 = vadd.xlane.f32.xlu0 %v587
  %v589 = vpop.xlane.xlu0 %588
  %v590 = vrcp.pop %v589
  %v591 = vmul.f32 %v589, %v590
  %v592 = vsub.f32 1.0, %v591
  %v593 = vmul.f32 %v590, %v592
  %v594 = vadd.f32 %v590, %v593
  %vm595 = vweird.f32 %v589
  %vm596 = vweird.f32 %v590
  %vm597 = vmor %vm595, %vm596
  %v598 = vsel %vm597, %v590, %v594
  %v599 = vand.u32 2147483647, %v589
  %vm600 = vcmp.eq.f32.partialorder %v599, 8.507059e+37
  %v601 = vand.u32 %v589, 2147483648
  %v602 = vor.u32 1.1754944e-38, %v601
  %v603 = vsel %vm600, %v602, %v598
  %v604 = vmul.f32 %v586, %v603
  %605 = vrot.lane.b32.xlu0 %v127, 64
  %v606 = vpop.permute.xlu0 %605
  %v609 = vsel %vm137, %v604, 0
  %611 = vmatpush.msra.mxu0 0.0
  %612 = vmatpush.msra.mxu0 0.0
  %613 = vmatpush.msra.mxu0 0.0
  %614 = vmatpush.msra.mxu0 0.0
  %615 = vmatpush.msra.mxu0 0.0
  %616 = vmatpush.msra.mxu0 0.0
  %617 = vmatpush.msra.mxu0 0.0
  %618 = vmatpush.msra.mxu0 0.0
  %619 = vmatpush.msra.mxu0 0.0
  %620 = vmatpush.msra.mxu0 0.0
  %621 = vmatpush.msra.mxu0 0.0
  %622 = vmatpush.msra.mxu0 0.0
  %623 = vmatpush.msra.mxu0 0.0
  %624 = vmatpush.msra.mxu0 0.0
  %625 = vmatpush.msra.mxu0 0.0
  %626 = vmatpush.msra.mxu0 %v606
  %627 = vmatmul.f32.gmra.mxu0 %v609
  %v628 = vpop.f32.mrf.mxu0
  %v629 = vadd.f32 0.0, %v628
  %630 = vdwg.mxu0
  %631 = vrot.lane.b32.xlu0 %v127, 120
  %v632 = vpop.permute.xlu0 %631
  %633 = vrot.lane.b32.xlu0 %v127, 88
  %v634 = vpop.permute.xlu0 %633
  %v635 = vsel %vm137, %v632, 0
  %v637 = vsel %vm137, %v634, 0
  %639 = vmatpush.xpose.msra.mxu0 0.0
  %640 = vmatpush.xpose.msra.mxu0 0.0
  %641 = vmatpush.xpose.msra.mxu0 0.0
  %642 = vmatpush.xpose.msra.mxu0 0.0
  %643 = vmatpush.xpose.msra.mxu0 0.0
  %644 = vmatpush.xpose.msra.mxu0 0.0
  %645 = vmatpush.xpose.msra.mxu0 0.0
  %646 = vmatpush.xpose.msra.mxu0 0.0
  %647 = vmatpush.xpose.msra.mxu0 0.0
  %648 = vmatpush.xpose.msra.mxu0 0.0
  %649 = vmatpush.xpose.msra.mxu0 0.0
  %650 = vmatpush.xpose.msra.mxu0 0.0
  %651 = vmatpush.xpose.msra.mxu0 0.0
  %652 = vmatpush.xpose.msra.mxu0 0.0
  %653 = vmatpush.xpose.msra.mxu0 0.0
  %654 = vmatpush.xpose.msra.mxu0 %v637
  %655 = vmatmul.f32.gmra.mxu0 %v635
  %v656 = vpop.f32.mrf.mxu0
  %v657 = vadd.f32 0.0, %v656
  %658 = vdwg.mxu0
  %v659 = vmul.f32 %v657, 0.17677669
  %v660 = vsel %vm579, -1e+12, %v659
  %v661 = vsel %vm137, %v660, -inf
  %662 = vmax.xlane.f32.xlu0 %v661
  %v663 = vpop.xlane.xlu0 %662
  %v664 = vsub.f32 %v660, %v663
  %v665 = vmul.f32 %v664, 1.442695
  %v666 = vpow.pop %v665
  %v667 = vsel %vm137, %v666, 0.0
  %668 = vadd.xlane.f32.xlu0 %v667
  %v669 = vpop.xlane.xlu0 %668
  %v670 = vrcp.pop %v669
  %v671 = vmul.f32 %v669, %v670
  %v672 = vsub.f32 1.0, %v671
  %v673 = vmul.f32 %v670, %v672
  %v674 = vadd.f32 %v670, %v673
  %vm675 = vweird.f32 %v669
  %vm676 = vweird.f32 %v670
  %vm677 = vmor %vm675, %vm676
  %v678 = vsel %vm677, %v670, %v674
  %v679 = vand.u32 2147483647, %v669
  %vm680 = vcmp.eq.f32.partialorder %v679, 8.507059e+37
  %v681 = vand.u32 %v669, 2147483648
  %v682 = vor.u32 1.1754944e-38, %v681
  %v683 = vsel %vm680, %v682, %v678
  %v684 = vmul.f32 %v666, %v683
  %685 = vrot.lane.b32.xlu0 %v127, 56
  %v686 = vpop.permute.xlu0 %685
  %v689 = vsel %vm137, %v684, 0
  %691 = vmatpush.msra.mxu0 0.0
  %692 = vmatpush.msra.mxu0 0.0
  %693 = vmatpush.msra.mxu0 0.0
  %694 = vmatpush.msra.mxu0 0.0
  %695 = vmatpush.msra.mxu0 0.0
  %696 = vmatpush.msra.mxu0 0.0
  %697 = vmatpush.msra.mxu0 0.0
  %698 = vmatpush.msra.mxu0 0.0
  %699 = vmatpush.msra.mxu0 0.0
  %700 = vmatpush.msra.mxu0 0.0
  %701 = vmatpush.msra.mxu0 0.0
  %702 = vmatpush.msra.mxu0 0.0
  %703 = vmatpush.msra.mxu0 0.0
  %704 = vmatpush.msra.mxu0 0.0
  %705 = vmatpush.msra.mxu0 0.0
  %706 = vmatpush.msra.mxu0 %v686
  %707 = vmatmul.f32.gmra.mxu0 %v689
  %v708 = vpop.f32.mrf.mxu0
  %v709 = vadd.f32 0.0, %v708
  %710 = vdwg.mxu0
  %v712 = vsel %vm137, %v709, 0
  %714 = vmatpush.msra.mxu0 0.0
  %715 = vmatpush.msra.mxu0 0.0
  %716 = vmatpush.msra.mxu0 0.0
  %717 = vmatpush.msra.mxu0 0.0
  %718 = vmatpush.msra.mxu0 0.0
  %719 = vmatpush.msra.mxu0 0.0
  %720 = vmatpush.msra.mxu0 0.0
  %721 = vmatpush.msra.mxu0 0.0
  %722 = vmatpush.msra.mxu0 0.0
  %723 = vmatpush.msra.mxu0 0.0
  %724 = vmatpush.msra.mxu0 0.0
  %725 = vmatpush.msra.mxu0 0.0
  %726 = vmatpush.msra.mxu0 0.0
  %727 = vmatpush.msra.mxu0 0.0
  %728 = vmatpush.msra.mxu0 0.0
  %729 = vmatpush.msra.mxu0 %v130
  %730 = vmatmul.f32.gmra.mxu0 %v712
  %v731 = vpop.f32.mrf.mxu0
  %v732 = vadd.f32 0.0, %v731
  %733 = vdwg.mxu0
  %v735 = vsel %vm137, %v629, 0
  %737 = vmatpush.msra.mxu0 0.0
  %738 = vmatpush.msra.mxu0 0.0
  %739 = vmatpush.msra.mxu0 0.0
  %740 = vmatpush.msra.mxu0 0.0
  %741 = vmatpush.msra.mxu0 0.0
  %742 = vmatpush.msra.mxu0 0.0
  %743 = vmatpush.msra.mxu0 0.0
  %744 = vmatpush.msra.mxu0 0.0
  %745 = vmatpush.msra.mxu0 0.0
  %746 = vmatpush.msra.mxu0 0.0
  %747 = vmatpush.msra.mxu0 0.0
  %748 = vmatpush.msra.mxu0 0.0
  %749 = vmatpush.msra.mxu0 0.0
  %750 = vmatpush.msra.mxu0 0.0
  %751 = vmatpush.msra.mxu0 0.0
  %752 = vmatpush.msra.mxu0 %v129
  %753 = vmatmul.f32.gmra.mxu0 %v735
  %v754 = vpop.f32.mrf.mxu0
  %v755 = vadd.f32 %v732, %v754
  %756 = vdwg.mxu0
  %757 = vrot.lane.b32.xlu0 %v127, 112
  %v758 = vpop.permute.xlu0 %757
  %759 = vrot.lane.b32.xlu0 %v127, 80
  %v760 = vpop.permute.xlu0 %759
  %v761 = vsel %vm137, %v758, 0
  %v763 = vsel %vm137, %v760, 0
  %765 = vmatpush.xpose.msra.mxu0 0.0
  %766 = vmatpush.xpose.msra.mxu0 0.0
  %767 = vmatpush.xpose.msra.mxu0 0.0
  %768 = vmatpush.xpose.msra.mxu0 0.0
  %769 = vmatpush.xpose.msra.mxu0 0.0
  %770 = vmatpush.xpose.msra.mxu0 0.0
  %771 = vmatpush.xpose.msra.mxu0 0.0
  %772 = vmatpush.xpose.msra.mxu0 0.0
  %773 = vmatpush.xpose.msra.mxu0 0.0
  %774 = vmatpush.xpose.msra.mxu0 0.0
  %775 = vmatpush.xpose.msra.mxu0 0.0
  %776 = vmatpush.xpose.msra.mxu0 0.0
  %777 = vmatpush.xpose.msra.mxu0 0.0
  %778 = vmatpush.xpose.msra.mxu0 0.0
  %779 = vmatpush.xpose.msra.mxu0 0.0
  %780 = vmatpush.xpose.msra.mxu0 %v763
  %781 = vmatmul.f32.gmra.mxu0 %v761
  %v782 = vpop.f32.mrf.mxu0
  %v783 = vadd.f32 0.0, %v782
  %784 = vdwg.mxu0
  %v785 = vmul.f32 %v783, 0.17677669
  %v786 = vsel %vm579, -1e+12, %v785
  %v787 = vsel %vm137, %v786, -inf
  %788 = vmax.xlane.f32.xlu0 %v787
  %v789 = vpop.xlane.xlu0 %788
  %v790 = vsub.f32 %v786, %v789
  %v791 = vmul.f32 %v790, 1.442695
  %v792 = vpow.pop %v791
  %v793 = vsel %vm137, %v792, 0.0
  %794 = vadd.xlane.f32.xlu0 %v793
  %v795 = vpop.xlane.xlu0 %794
  %v796 = vrcp.pop %v795
  %v797 = vmul.f32 %v795, %v796
  %v798 = vsub.f32 1.0, %v797
  %v799 = vmul.f32 %v796, %v798
  %v800 = vadd.f32 %v796, %v799
  %vm801 = vweird.f32 %v795
  %vm802 = vweird.f32 %v796
  %vm803 = vmor %vm801, %vm802
  %v804 = vsel %vm803, %v796, %v800
  %v805 = vand.u32 2147483647, %v795
  %vm806 = vcmp.eq.f32.partialorder %v805, 8.507059e+37
  %v807 = vand.u32 %v795, 2147483648
  %v808 = vor.u32 1.1754944e-38, %v807
  %v809 = vsel %vm806, %v808, %v804
  %v810 = vmul.f32 %v792, %v809
  %811 = vrot.lane.b32.xlu0 %v127, 48
  %v812 = vpop.permute.xlu0 %811
  %v815 = vsel %vm137, %v810, 0
  %817 = vmatpush.msra.mxu0 0.0
  %818 = vmatpush.msra.mxu0 0.0
  %819 = vmatpush.msra.mxu0 0.0
  %820 = vmatpush.msra.mxu0 0.0
  %821 = vmatpush.msra.mxu0 0.0
  %822 = vmatpush.msra.mxu0 0.0
  %823 = vmatpush.msra.mxu0 0.0
  %824 = vmatpush.msra.mxu0 0.0
  %825 = vmatpush.msra.mxu0 0.0
  %826 = vmatpush.msra.mxu0 0.0
  %827 = vmatpush.msra.mxu0 0.0
  %828 = vmatpush.msra.mxu0 0.0
  %829 = vmatpush.msra.mxu0 0.0
  %830 = vmatpush.msra.mxu0 0.0
  %831 = vmatpush.msra.mxu0 0.0
  %832 = vmatpush.msra.mxu0 %v812
  %833 = vmatmul.f32.gmra.mxu0 %v815
  %v834 = vpop.f32.mrf.mxu0
  %v835 = vadd.f32 0.0, %v834
  %836 = vdwg.mxu0
  %v838 = vsel %vm137, %v835, 0
  %840 = vmatpush.msra.mxu0 0.0
  %841 = vmatpush.msra.mxu0 0.0
  %842 = vmatpush.msra.mxu0 0.0
  %843 = vmatpush.msra.mxu0 0.0
  %844 = vmatpush.msra.mxu0 0.0
  %845 = vmatpush.msra.mxu0 0.0
  %846 = vmatpush.msra.mxu0 0.0
  %847 = vmatpush.msra.mxu0 0.0
  %848 = vmatpush.msra.mxu0 0.0
  %849 = vmatpush.msra.mxu0 0.0
  %850 = vmatpush.msra.mxu0 0.0
  %851 = vmatpush.msra.mxu0 0.0
  %852 = vmatpush.msra.mxu0 0.0
  %853 = vmatpush.msra.mxu0 0.0
  %854 = vmatpush.msra.mxu0 0.0
  %855 = vmatpush.msra.mxu0 %v131
  %856 = vmatmul.f32.gmra.mxu0 %v838
  %v857 = vpop.f32.mrf.mxu0
  %v858 = vadd.f32 0.0, %v857
  %859 = vdwg.mxu0
  %v860 = vadd.f32 %v755, %v858
  %861 = vrot.lane.b32.xlu0 %v127, 104
  %v862 = vpop.permute.xlu0 %861
  %863 = vrot.lane.b32.xlu0 %v127, 72
  %v864 = vpop.permute.xlu0 %863
  %v865 = vsel %vm137, %v862, 0
  %v867 = vsel %vm137, %v864, 0
  %869 = vmatpush.xpose.msra.mxu0 0.0
  %870 = vmatpush.xpose.msra.mxu0 0.0
  %871 = vmatpush.xpose.msra.mxu0 0.0
  %872 = vmatpush.xpose.msra.mxu0 0.0
  %873 = vmatpush.xpose.msra.mxu0 0.0
  %874 = vmatpush.xpose.msra.mxu0 0.0
  %875 = vmatpush.xpose.msra.mxu0 0.0
  %876 = vmatpush.xpose.msra.mxu0 0.0
  %877 = vmatpush.xpose.msra.mxu0 0.0
  %878 = vmatpush.xpose.msra.mxu0 0.0
  %879 = vmatpush.xpose.msra.mxu0 0.0
  %880 = vmatpush.xpose.msra.mxu0 0.0
  %881 = vmatpush.xpose.msra.mxu0 0.0
  %882 = vmatpush.xpose.msra.mxu0 0.0
  %883 = vmatpush.xpose.msra.mxu0 0.0
  %884 = vmatpush.xpose.msra.mxu0 %v867
  %885 = vmatmul.f32.gmra.mxu0 %v865
  %v886 = vpop.f32.mrf.mxu0
  %v887 = vadd.f32 0.0, %v886
  %888 = vdwg.mxu0
  %v889 = vmul.f32 %v887, 0.17677669
  %v890 = vsel %vm579, -1e+12, %v889
  %v891 = vsel %vm137, %v890, -inf
  %892 = vmax.xlane.f32.xlu0 %v891
  %v893 = vpop.xlane.xlu0 %892
  %v894 = vsub.f32 %v890, %v893
  %v895 = vmul.f32 %v894, 1.442695
  %v896 = vpow.pop %v895
  %v897 = vsel %vm137, %v896, 0.0
  %898 = vadd.xlane.f32.xlu0 %v897
  %v899 = vpop.xlane.xlu0 %898
  %v900 = vrcp.pop %v899
  %v901 = vmul.f32 %v899, %v900
  %v902 = vsub.f32 1.0, %v901
  %v903 = vmul.f32 %v900, %v902
  %v904 = vadd.f32 %v900, %v903
  %vm905 = vweird.f32 %v899
  %vm906 = vweird.f32 %v900
  %vm907 = vmor %vm905, %vm906
  %v908 = vsel %vm907, %v900, %v904
  %v909 = vand.u32 2147483647, %v899
  %vm910 = vcmp.eq.f32.partialorder %v909, 8.507059e+37
  %v911 = vand.u32 %v899, 2147483648
  %v912 = vor.u32 1.1754944e-38, %v911
  %v913 = vsel %vm910, %v912, %v908
  %v914 = vmul.f32 %v896, %v913
  %915 = vrot.lane.b32.xlu0 %v127, 40
  %v916 = vpop.permute.xlu0 %915
  %v919 = vsel %vm137, %v914, 0
  %921 = vmatpush.msra.mxu0 0.0
  %922 = vmatpush.msra.mxu0 0.0
  %923 = vmatpush.msra.mxu0 0.0
  %924 = vmatpush.msra.mxu0 0.0
  %925 = vmatpush.msra.mxu0 0.0
  %926 = vmatpush.msra.mxu0 0.0
  %927 = vmatpush.msra.mxu0 0.0
  %928 = vmatpush.msra.mxu0 0.0
  %929 = vmatpush.msra.mxu0 0.0
  %930 = vmatpush.msra.mxu0 0.0
  %931 = vmatpush.msra.mxu0 0.0
  %932 = vmatpush.msra.mxu0 0.0
  %933 = vmatpush.msra.mxu0 0.0
  %934 = vmatpush.msra.mxu0 0.0
  %935 = vmatpush.msra.mxu0 0.0
  %936 = vmatpush.msra.mxu0 %v916
  %937 = vmatmul.f32.gmra.mxu0 %v919
  %v938 = vpop.f32.mrf.mxu0
  %v939 = vadd.f32 0.0, %v938
  %940 = vdwg.mxu0
  %v942 = vsel %vm137, %v939, 0
  %944 = vmatpush.msra.mxu0 0.0
  %945 = vmatpush.msra.mxu0 0.0
  %946 = vmatpush.msra.mxu0 0.0
  %947 = vmatpush.msra.mxu0 0.0
  %948 = vmatpush.msra.mxu0 0.0
  %949 = vmatpush.msra.mxu0 0.0
  %950 = vmatpush.msra.mxu0 0.0
  %951 = vmatpush.msra.mxu0 0.0
  %952 = vmatpush.msra.mxu0 0.0
  %953 = vmatpush.msra.mxu0 0.0
  %954 = vmatpush.msra.mxu0 0.0
  %955 = vmatpush.msra.mxu0 0.0
  %956 = vmatpush.msra.mxu0 0.0
  %957 = vmatpush.msra.mxu0 0.0
  %958 = vmatpush.msra.mxu0 0.0
  %959 = vmatpush.msra.mxu0 %v132
  %960 = vmatmul.f32.gmra.mxu0 %v942
  %v961 = vpop.f32.mrf.mxu0
  %v962 = vadd.f32 0.0, %v961
  %963 = vdwg.mxu0
  %v964 = vadd.f32 %v860, %v962
  %v965 = vld [vmem:[%s2 + $0x3] sm:$0x1]
  %v966 = vperm.slane %v965, 0
  %v967 = vadd.f32 %v548, %v966
  %v968 = vadd.f32 %v964, %v966
  %v969 = vadd.f32 %v967, %v92
  %v970 = vadd.f32 %v968, %v93
  %v971 = vld [vmem:[%s2 + $0x4] sm:$0x1]
  %v972 = vld [vmem:[%s2 + $0x5] sm:$0x1]
  %v973 = vsel %vm36, %v969, 0.0
  %974 = vadd.xlane.f32.xlu0 %v973
  %v975 = vpop.xlane.xlu0 %974
  %v976 = vsel %vm36, %v970, 0.0
  %977 = vadd.xlane.f32.xlu0 %v976
  %v978 = vpop.xlane.xlu0 %977
  %v979 = vmul.f32 %v975, %v49
  %v980 = vmul.f32 %v978, %v49
  %v981 = vsub.f32 %v969, %v979
  %v982 = vsub.f32 %v970, %v980
  %v983 = vmul.f32 %v981, %v981
  %v984 = vmul.f32 %v982, %v982
  %v985 = vsel %vm36, %v983, 0.0
  %986 = vadd.xlane.f32.xlu0 %v985
  %v987 = vpop.xlane.xlu0 %986
  %v988 = vsel %vm36, %v984, 0.0
  %989 = vadd.xlane.f32.xlu0 %v988
  %v990 = vpop.xlane.xlu0 %989
  %v991 = vmul.f32 %v987, %v49
  %v992 = vmul.f32 %v990, %v49
  %v993 = vadd.f32 %v991, 1e-05
  %v994 = vadd.f32 %v992, 1e-05
  %v995 = vrsqrt.pop %v993
  %v996 = vmul.f32 %v995, %v993
  %v997 = vmul.f32 %v996, %v995
  %v998 = vmul.f32 0.5, %v997
  %v999 = vsub.f32 1.5, %v998
  %v1000 = vmul.f32 %v995, %v999
  %vm1001 = vweird.f32 %v993
  %vm1002 = vweird.f32 %v995
  %vm1003 = vmor %vm1001, %vm1002
  %v1004 = vsel %vm1003, %v995, %v1000
  %v1005 = vrsqrt.pop %v994
  %v1006 = vmul.f32 %v1005, %v994
  %v1007 = vmul.f32 %v1006, %v1005
  %v1008 = vmul.f32 0.5, %v1007
  %v1009 = vsub.f32 1.5, %v1008
  %v1010 = vmul.f32 %v1005, %v1009
  %vm1011 = vweird.f32 %v994
  %vm1012 = vweird.f32 %v1005
  %vm1013 = vmor %vm1011, %vm1012
  %v1014 = vsel %vm1013, %v1005, %v1010
  %v1015 = vmul.f32 %v981, %v1004
  %v1016 = vmul.f32 %v982, %v1014
  %v1017 = vperm.slane %v971, 0
  %v1018 = vmul.f32 %v1015, %v1017
  %v1019 = vmul.f32 %v1016, %v1017
  %v1020 = vperm.slane %v972, 0
  %v1021 = vadd.f32 %v1018, %v1020
  %v1022 = vadd.f32 %v1019, %v1020
  %v1023 = vld [vmem:[%s5] sm:$0xff]
  %v1024 = vld [vmem:[%s5 + $0x8] sm:$0xff]
  %v1025 = vld [vmem:[%s5 + $0x10] sm:$0xff]
  %v1026 = vld [vmem:[%s5 + $0x18] sm:$0xff]
  %v1027 = vld [vmem:[%s2 + $0x6] sm:$0x1]
  %v1028 = vperm.slane %v1027, 0
  %v1030 = vsel %vm36, %v1021, 0
  %v1033 = vsel %vm36, %v1022, 0
  %1035 = vmatpush.msra.mxu0 0.0
  %1036 = vmatpush.msra.mxu0 0.0
  %1037 = vmatpush.msra.mxu0 0.0
  %1038 = vmatpush.msra.mxu0 0.0
  %1039 = vmatpush.msra.mxu0 0.0
  %1040 = vmatpush.msra.mxu0 0.0
  %1041 = vmatpush.msra.mxu0 0.0
  %1042 = vmatpush.msra.mxu0 0.0
  %1043 = vmatpush.msra.mxu0 0.0
  %1044 = vmatpush.msra.mxu0 0.0
  %1045 = vmatpush.msra.mxu0 0.0
  %1046 = vmatpush.msra.mxu0 0.0
  %1047 = vmatpush.msra.mxu0 %v1026
  %1048 = vmatpush.msra.mxu0 %v1025
  %1049 = vmatpush.msra.mxu0 %v1024
  %1050 = vmatpush.msra.mxu0 %v1023
  %1051 = vmatmul.f32.gmra.mxu0 %v1030
  %v1052 = vpop.f32.mrf.mxu0
  %v1053 = vadd.f32 %v1028, %v1052
  %1054 = vmatmul.f32.gmra.mxu0 %v1033
  %v1055 = vpop.f32.mrf.mxu0
  %v1056 = vadd.f32 %v1028, %v1055
  %1057 = vdwg.mxu0
  %v1058 = vmul.f32 %v1053, 0.5
  %v1059 = vmul.f32 %v1056, 0.5
  %v1060 = vmul.f32 %v1053, 0.70710677
  %v1061 = vmul.f32 %v1056, 0.70710677
  %vm1062 = vcmp.ge.f32.partialorder %v1060, 0.0
  %vm1063 = vcmp.ge.f32.partialorder %v1061, 0.0
  %v1064 = vsel %vm1062, 1.0, -1.0
  %v1065 = vsel %vm1063, 1.0, -1.0
  %v1066 = vand.u32 2147483647, %v1060
  %v1067 = vand.u32 2147483647, %v1061
  %v1068 = vmul.f32 %v1066, 0.3275911
  %v1069 = vmul.f32 %v1067, 0.3275911
  %v1070 = vadd.f32 %v1068, 1.0
  %v1071 = vadd.f32 %v1069, 1.0
  %v1072 = vrcp.pop %v1070
  %v1073 = vmul.f32 %v1070, %v1072
  %v1074 = vsub.f32 1.0, %v1073
  %v1075 = vmul.f32 %v1072, %v1074
  %v1076 = vadd.f32 %v1072, %v1075
  %vm1077 = vweird.f32 %v1070
  %vm1078 = vweird.f32 %v1072
  %vm1079 = vmor %vm1077, %vm1078
  %v1080 = vsel %vm1079, %v1072, %v1076
  %v1081 = vand.u32 2147483647, %v1070
  %vm1082 = vcmp.eq.f32.partialorder %v1081, 8.507059e+37
  %v1083 = vand.u32 %v1070, 2147483648
  %v1084 = vor.u32 1.1754944e-38, %v1083
  %v1085 = vsel %vm1082, %v1084, %v1080
  %v1086 = vmul.f32 1.0, %v1085
  %v1087 = vrcp.pop %v1071
  %v1088 = vmul.f32 %v1071, %v1087
  %v1089 = vsub.f32 1.0, %v1088
  %v1090 = vmul.f32 %v1087, %v1089
  %v1091 = vadd.f32 %v1087, %v1090
  %vm1092 = vweird.f32 %v1071
  %vm1093 = vweird.f32 %v1087
  %vm1094 = vmor %vm1092, %vm1093
  %v1095 = vsel %vm1094, %v1087, %v1091
  %v1096 = vand.u32 2147483647, %v1071
  %vm1097 = vcmp.eq.f32.partialorder %v1096, 8.507059e+37
  %v1098 = vand.u32 %v1071, 2147483648
  %v1099 = vor.u32 1.1754944e-38, %v1098
  %v1100 = vsel %vm1097, %v1099, %v1095
  %v1101 = vmul.f32 1.0, %v1100
  %v1102 = vmul.f32 %v1086, 1.0614054
  %v1103 = vmul.f32 %v1101, 1.0614054
  %v1104 = vadd.f32 %v1102, -1.4531521
  %v1105 = vadd.f32 %v1103, -1.4531521
  %v1106 = vmul.f32 %v1104, %v1086
  %v1107 = vmul.f32 %v1105, %v1101
  %v1108 = vadd.f32 %v1106, 1.4214138
  %v1109 = vadd.f32 %v1107, 1.4214138
  %v1110 = vmul.f32 %v1108, %v1086
  %v1111 = vmul.f32 %v1109, %v1101
  %v1112 = vadd.f32 %v1110, -0.28449672
  %v1113 = vadd.f32 %v1111, -0.28449672
  %v1114 = vmul.f32 %v1112, %v1086
  %v1115 = vmul.f32 %v1113, %v1101
  %v1116 = vadd.f32 %v1114, 0.2548296
  %v1117 = vadd.f32 %v1115, 0.2548296
  %v1118 = vmul.f32 %v1116, %v1086
  %v1119 = vmul.f32 %v1117, %v1101
  %v1120 = vsub.f32 0.0, %v1066
  %v1121 = vsub.f32 0.0, %v1067
  %v1122 = vmul.f32 %v1120, %v1066
  %v1123 = vmul.f32 %v1121, %v1067
  %v1124 = vmul.f32 %v1122, 1.442695
  %v1125 = vpow.pop %v1124
  %v1126 = vmul.f32 %v1123, 1.442695
  %v1127 = vpow.pop %v1126
  %v1128 = vmul.f32 %v1118, %v1125
  %v1129 = vmul.f32 %v1119, %v1127
  %v1130 = vsub.f32 1.0, %v1128
  %v1131 = vsub.f32 1.0, %v1129
  %v1132 = vmul.f32 %v1064, %v1130
  %v1133 = vmul.f32 %v1065, %v1131
  %v1134 = vadd.f32 %v1132, 1.0
  %v1135 = vadd.f32 %v1133, 1.0
  %v1136 = vmul.f32 %v1058, %v1134
  %v1137 = vmul.f32 %v1059, %v1135
  %v1138 = vld [vmem:[%s6] sm:$0xff]
  %v1139 = vld [vmem:[%s6 + $0x8] sm:$0xff]
  %v1140 = vld [vmem:[%s6 + $0x10] sm:$0xff]
  %v1141 = vld [vmem:[%s6 + $0x18] sm:$0xff]
  %v1142 = vld [vmem:[%s6 + $0x20] sm:$0xff]
  %v1143 = vld [vmem:[%s6 + $0x28] sm:$0xff]
  %v1144 = vld [vmem:[%s6 + $0x30] sm:$0xff]
  %v1145 = vld [vmem:[%s6 + $0x38] sm:$0xff]
  %v1146 = vld [vmem:[%s6 + $0x40] sm:$0xff]
  %v1147 = vld [vmem:[%s6 + $0x48] sm:$0xff]
  %v1148 = vld [vmem:[%s6 + $0x50] sm:$0xff]
  %v1149 = vld [vmem:[%s6 + $0x58] sm:$0xff]
  %v1150 = vld [vmem:[%s6 + $0x60] sm:$0xff]
  %v1151 = vld [vmem:[%s6 + $0x68] sm:$0xff]
  %v1152 = vld [vmem:[%s6 + $0x70] sm:$0xff]
  %v1153 = vld [vmem:[%s6 + $0x78] sm:$0xff]
  %v1154 = vld [vmem:[%s2 + $0x7] sm:$0x1]
  %v1155 = vperm.slane %v1154, 0
  %1156 = vmatpush.msra.mxu0 %v1153
  %1157 = vmatpush.msra.mxu0 %v1152
  %1158 = vmatpush.msra.mxu0 %v1151
  %1159 = vmatpush.msra.mxu0 %v1150
  %1160 = vmatpush.msra.mxu0 %v1149
  %1161 = vmatpush.msra.mxu0 %v1148
  %1162 = vmatpush.msra.mxu0 %v1147
  %1163 = vmatpush.msra.mxu0 %v1146
  %1164 = vmatpush.msra.mxu0 %v1145
  %1165 = vmatpush.msra.mxu0 %v1144
  %1166 = vmatpush.msra.mxu0 %v1143
  %1167 = vmatpush.msra.mxu0 %v1142
  %1168 = vmatpush.msra.mxu0 %v1141
  %1169 = vmatpush.msra.mxu0 %v1140
  %1170 = vmatpush.msra.mxu0 %v1139
  %1171 = vmatpush.msra.mxu0 %v1138
  %1172 = vmatmul.f32.gmra.mxu0 %v1136
  %v1173 = vpop.f32.mrf.mxu0
  %v1174 = vadd.f32 %v1155, %v1173
  %1175 = vmatmul.f32.gmra.mxu0 %v1137
  %v1176 = vpop.f32.mrf.mxu0
  %v1177 = vadd.f32 %v1155, %v1176
  %1178 = vdwg.mxu0
  %v1179 = vadd.f32 %v1174, %v1021
  %v1180 = vadd.f32 %v1177, %v1022
  %v1181 = vld [vmem:[%s2 + $0x8] sm:$0x1]
  %v1182 = vld [vmem:[%s2 + $0x9] sm:$0x1]
  %v1183 = vsel %vm36, %v1179, 0.0
  %1184 = vadd.xlane.f32.xlu0 %v1183
  %v1185 = vpop.xlane.xlu0 %1184
  %v1186 = vsel %vm36, %v1180, 0.0
  %1187 = vadd.xlane.f32.xlu0 %v1186
  %v1188 = vpop.xlane.xlu0 %1187
  %v1189 = vmul.f32 %v1185, %v49
  %v1190 = vmul.f32 %v1188, %v49
  %v1191 = vsub.f32 %v1179, %v1189
  %v1192 = vsub.f32 %v1180, %v1190
  %v1193 = vmul.f32 %v1191, %v1191
  %v1194 = vmul.f32 %v1192, %v1192
  %v1195 = vsel %vm36, %v1193, 0.0
  %1196 = vadd.xlane.f32.xlu0 %v1195
  %v1197 = vpop.xlane.xlu0 %1196
  %v1198 = vsel %vm36, %v1194, 0.0
  %1199 = vadd.xlane.f32.xlu0 %v1198
  %v1200 = vpop.xlane.xlu0 %1199
  %v1201 = vmul.f32 %v1197, %v49
  %v1202 = vmul.f32 %v1200, %v49
  %v1203 = vadd.f32 %v1201, 1e-05
  %v1204 = vadd.f32 %v1202, 1e-05
  %v1205 = vrsqrt.pop %v1203
  %v1206 = vmul.f32 %v1205, %v1203
  %v1207 = vmul.f32 %v1206, %v1205
  %v1208 = vmul.f32 0.5, %v1207
  %v1209 = vsub.f32 1.5, %v1208
  %v1210 = vmul.f32 %v1205, %v1209
  %vm1211 = vweird.f32 %v1203
  %vm1212 = vweird.f32 %v1205
  %vm1213 = vmor %vm1211, %vm1212
  %v1214 = vsel %vm1213, %v1205, %v1210
  %v1215 = vrsqrt.pop %v1204
  %v1216 = vmul.f32 %v1215, %v1204
  %v1217 = vmul.f32 %v1216, %v1215
  %v1218 = vmul.f32 0.5, %v1217
  %v1219 = vsub.f32 1.5, %v1218
  %v1220 = vmul.f32 %v1215, %v1219
  %vm1221 = vweird.f32 %v1204
  %vm1222 = vweird.f32 %v1215
  %vm1223 = vmor %vm1221, %vm1222
  %v1224 = vsel %vm1223, %v1215, %v1220
  %v1225 = vmul.f32 %v1191, %v1214
  %v1226 = vmul.f32 %v1192, %v1224
  %v1227 = vperm.slane %v1181, 0
  %v1228 = vmul.f32 %v1225, %v1227
  %v1229 = vmul.f32 %v1226, %v1227
  %v1230 = vperm.slane %v1182, 0
  %v1231 = vadd.f32 %v1228, %v1230
  %v1232 = vadd.f32 %v1229, %v1230
  %s1233 = scalar_lea.vmem %s3, 32
  %v1234 = vld [vmem:[%s1233] sm:$0xff]
  %v1235 = vld [vmem:[%s1233 + $0x8] sm:$0xff]
  %v1236 = vld [vmem:[%s1233 + $0x10] sm:$0xff]
  %v1237 = vld [vmem:[%s1233 + $0x18] sm:$0xff]
  %v1238 = vld [vmem:[%s2 + $0xa] sm:$0x1]
  %v1239 = vperm.slane %v1238, 0
  %v1241 = vsel %vm36, %v1231, 0
  %v1244 = vsel %vm36, %v1232, 0
  %1246 = vmatpush.msra.mxu0 0.0
  %1247 = vmatpush.msra.mxu0 0.0
  %1248 = vmatpush.msra.mxu0 0.0
  %1249 = vmatpush.msra.mxu0 0.0
  %1250 = vmatpush.msra.mxu0 0.0
  %1251 = vmatpush.msra.mxu0 0.0
  %1252 = vmatpush.msra.mxu0 0.0
  %1253 = vmatpush.msra.mxu0 0.0
  %1254 = vmatpush.msra.mxu0 0.0
  %1255 = vmatpush.msra.mxu0 0.0
  %1256 = vmatpush.msra.mxu0 0.0
  %1257 = vmatpush.msra.mxu0 0.0
  %1258 = vmatpush.msra.mxu0 %v1237
  %1259 = vmatpush.msra.mxu0 %v1236
  %1260 = vmatpush.msra.mxu0 %v1235
  %1261 = vmatpush.msra.mxu0 %v1234
  %1262 = vmatmul.f32.gmra.mxu0 %v1241
  %v1263 = vpop.f32.mrf.mxu0
  %v1264 = vadd.f32 %v1239, %v1263
  %1265 = vmatmul.f32.gmra.mxu0 %v1244
  %v1266 = vpop.f32.mrf.mxu0
  %v1267 = vadd.f32 %v1239, %v1266
  %1268 = vdwg.mxu0
  %s1269 = scalar_lea.vmem %s4, 32
  %v1270 = vld [vmem:[%s1269] sm:$0xff]
  %v1271 = vld [vmem:[%s1269 + $0x8] sm:$0xff]
  %v1272 = vld [vmem:[%s1269 + $0x10] sm:$0xff]
  %v1273 = vld [vmem:[%s1269 + $0x18] sm:$0xff]
  %1275 = vrot.lane.b32.xlu0 %v1264, 96
  %v1276 = vpop.permute.xlu0 %1275
  %v1277 = vsel %vm137, %v1264, 0
  %v1279 = vsel %vm137, %v1276, 0
  %1281 = vmatpush.xpose.msra.mxu0 0.0
  %1282 = vmatpush.xpose.msra.mxu0 0.0
  %1283 = vmatpush.xpose.msra.mxu0 0.0
  %1284 = vmatpush.xpose.msra.mxu0 0.0
  %1285 = vmatpush.xpose.msra.mxu0 0.0
  %1286 = vmatpush.xpose.msra.mxu0 0.0
  %1287 = vmatpush.xpose.msra.mxu0 0.0
  %1288 = vmatpush.xpose.msra.mxu0 0.0
  %1289 = vmatpush.xpose.msra.mxu0 0.0
  %1290 = vmatpush.xpose.msra.mxu0 0.0
  %1291 = vmatpush.xpose.msra.mxu0 0.0
  %1292 = vmatpush.xpose.msra.mxu0 0.0
  %1293 = vmatpush.xpose.msra.mxu0 0.0
  %1294 = vmatpush.xpose.msra.mxu0 0.0
  %1295 = vmatpush.xpose.msra.mxu0 0.0
  %1296 = vmatpush.xpose.msra.mxu0 %v1279
  %1297 = vmatmul.f32.gmra.mxu0 %v1277
  %v1298 = vpop.f32.mrf.mxu0
  %v1299 = vadd.f32 0.0, %v1298
  %1300 = vdwg.mxu0
  %v1301 = vmul.f32 %v1299, 0.17677669
  %v1302 = vsel %vm163, -1e+12, %v1301
  %v1303 = vsel %vm137, %v1302, -inf
  %1304 = vmax.xlane.f32.xlu0 %v1303
  %v1305 = vpop.xlane.xlu0 %1304
  %v1306 = vsub.f32 %v1302, %v1305
  %v1307 = vmul.f32 %v1306, 1.442695
  %v1308 = vpow.pop %v1307
  %v1309 = vsel %vm137, %v1308, 0.0
  %1310 = vadd.xlane.f32.xlu0 %v1309
  %v1311 = vpop.xlane.xlu0 %1310
  %v1312 = vrcp.pop %v1311
  %v1313 = vmul.f32 %v1311, %v1312
  %v1314 = vsub.f32 1.0, %v1313
  %v1315 = vmul.f32 %v1312, %v1314
  %v1316 = vadd.f32 %v1312, %v1315
  %vm1317 = vweird.f32 %v1311
  %vm1318 = vweird.f32 %v1312
  %vm1319 = vmor %vm1317, %vm1318
  %v1320 = vsel %vm1319, %v1312, %v1316
  %v1321 = vand.u32 2147483647, %v1311
  %vm1322 = vcmp.eq.f32.partialorder %v1321, 8.507059e+37
  %v1323 = vand.u32 %v1311, 2147483648
  %v1324 = vor.u32 1.1754944e-38, %v1323
  %v1325 = vsel %vm1322, %v1324, %v1320
  %v1326 = vmul.f32 %v1308, %v1325
  %1327 = vrot.lane.b32.xlu0 %v1264, 64
  %v1328 = vpop.permute.xlu0 %1327
  %v1331 = vsel %vm137, %v1326, 0
  %1333 = vmatpush.msra.mxu0 0.0
  %1334 = vmatpush.msra.mxu0 0.0
  %1335 = vmatpush.msra.mxu0 0.0
  %1336 = vmatpush.msra.mxu0 0.0
  %1337 = vmatpush.msra.mxu0 0.0
  %1338 = vmatpush.msra.mxu0 0.0
  %1339 = vmatpush.msra.mxu0 0.0
  %1340 = vmatpush.msra.mxu0 0.0
  %1341 = vmatpush.msra.mxu0 0.0
  %1342 = vmatpush.msra.mxu0 0.0
  %1343 = vmatpush.msra.mxu0 0.0
  %1344 = vmatpush.msra.mxu0 0.0
  %1345 = vmatpush.msra.mxu0 0.0
  %1346 = vmatpush.msra.mxu0 0.0
  %1347 = vmatpush.msra.mxu0 0.0
  %1348 = vmatpush.msra.mxu0 %v1328
  %1349 = vmatmul.f32.gmra.mxu0 %v1331
  %v1350 = vpop.f32.mrf.mxu0
  %v1351 = vadd.f32 0.0, %v1350
  %1352 = vdwg.mxu0
  %1353 = vrot.lane.b32.xlu0 %v1264, 120
  %v1354 = vpop.permute.xlu0 %1353
  %1355 = vrot.lane.b32.xlu0 %v1264, 88
  %v1356 = vpop.permute.xlu0 %1355
  %v1357 = vsel %vm137, %v1354, 0
  %v1359 = vsel %vm137, %v1356, 0
  %1361 = vmatpush.xpose.msra.mxu0 0.0
  %1362 = vmatpush.xpose.msra.mxu0 0.0
  %1363 = vmatpush.xpose.msra.mxu0 0.0
  %1364 = vmatpush.xpose.msra.mxu0 0.0
  %1365 = vmatpush.xpose.msra.mxu0 0.0
  %1366 = vmatpush.xpose.msra.mxu0 0.0
  %1367 = vmatpush.xpose.msra.mxu0 0.0
  %1368 = vmatpush.xpose.msra.mxu0 0.0
  %1369 = vmatpush.xpose.msra.mxu0 0.0
  %1370 = vmatpush.xpose.msra.mxu0 0.0
  %1371 = vmatpush.xpose.msra.mxu0 0.0
  %1372 = vmatpush.xpose.msra.mxu0 0.0
  %1373 = vmatpush.xpose.msra.mxu0 0.0
  %1374 = vmatpush.xpose.msra.mxu0 0.0
  %1375 = vmatpush.xpose.msra.mxu0 0.0
  %1376 = vmatpush.xpose.msra.mxu0 %v1359
  %1377 = vmatmul.f32.gmra.mxu0 %v1357
  %v1378 = vpop.f32.mrf.mxu0
  %v1379 = vadd.f32 0.0, %v1378
  %1380 = vdwg.mxu0
  %v1381 = vmul.f32 %v1379, 0.17677669
  %v1382 = vsel %vm163, -1e+12, %v1381
  %v1383 = vsel %vm137, %v1382, -inf
  %1384 = vmax.xlane.f32.xlu0 %v1383
  %v1385 = vpop.xlane.xlu0 %1384
  %v1386 = vsub.f32 %v1382, %v1385
  %v1387 = vmul.f32 %v1386, 1.442695
  %v1388 = vpow.pop %v1387
  %v1389 = vsel %vm137, %v1388, 0.0
  %1390 = vadd.xlane.f32.xlu0 %v1389
  %v1391 = vpop.xlane.xlu0 %1390
  %v1392 = vrcp.pop %v1391
  %v1393 = vmul.f32 %v1391, %v1392
  %v1394 = vsub.f32 1.0, %v1393
  %v1395 = vmul.f32 %v1392, %v1394
  %v1396 = vadd.f32 %v1392, %v1395
  %vm1397 = vweird.f32 %v1391
  %vm1398 = vweird.f32 %v1392
  %vm1399 = vmor %vm1397, %vm1398
  %v1400 = vsel %vm1399, %v1392, %v1396
  %v1401 = vand.u32 2147483647, %v1391
  %vm1402 = vcmp.eq.f32.partialorder %v1401, 8.507059e+37
  %v1403 = vand.u32 %v1391, 2147483648
  %v1404 = vor.u32 1.1754944e-38, %v1403
  %v1405 = vsel %vm1402, %v1404, %v1400
  %v1406 = vmul.f32 %v1388, %v1405
  %1407 = vrot.lane.b32.xlu0 %v1264, 56
  %v1408 = vpop.permute.xlu0 %1407
  %v1411 = vsel %vm137, %v1406, 0
  %1413 = vmatpush.msra.mxu0 0.0
  %1414 = vmatpush.msra.mxu0 0.0
  %1415 = vmatpush.msra.mxu0 0.0
  %1416 = vmatpush.msra.mxu0 0.0
  %1417 = vmatpush.msra.mxu0 0.0
  %1418 = vmatpush.msra.mxu0 0.0
  %1419 = vmatpush.msra.mxu0 0.0
  %1420 = vmatpush.msra.mxu0 0.0
  %1421 = vmatpush.msra.mxu0 0.0
  %1422 = vmatpush.msra.mxu0 0.0
  %1423 = vmatpush.msra.mxu0 0.0
  %1424 = vmatpush.msra.mxu0 0.0
  %1425 = vmatpush.msra.mxu0 0.0
  %1426 = vmatpush.msra.mxu0 0.0
  %1427 = vmatpush.msra.mxu0 0.0
  %1428 = vmatpush.msra.mxu0 %v1408
  %1429 = vmatmul.f32.gmra.mxu0 %v1411
  %v1430 = vpop.f32.mrf.mxu0
  %v1431 = vadd.f32 0.0, %v1430
  %1432 = vdwg.mxu0
  %v1434 = vsel %vm137, %v1431, 0
  %1436 = vmatpush.msra.mxu0 0.0
  %1437 = vmatpush.msra.mxu0 0.0
  %1438 = vmatpush.msra.mxu0 0.0
  %1439 = vmatpush.msra.mxu0 0.0
  %1440 = vmatpush.msra.mxu0 0.0
  %1441 = vmatpush.msra.mxu0 0.0
  %1442 = vmatpush.msra.mxu0 0.0
  %1443 = vmatpush.msra.mxu0 0.0
  %1444 = vmatpush.msra.mxu0 0.0
  %1445 = vmatpush.msra.mxu0 0.0
  %1446 = vmatpush.msra.mxu0 0.0
  %1447 = vmatpush.msra.mxu0 0.0
  %1448 = vmatpush.msra.mxu0 0.0
  %1449 = vmatpush.msra.mxu0 0.0
  %1450 = vmatpush.msra.mxu0 0.0
  %1451 = vmatpush.msra.mxu0 %v1271
  %1452 = vmatmul.f32.gmra.mxu0 %v1434
  %v1453 = vpop.f32.mrf.mxu0
  %v1454 = vadd.f32 0.0, %v1453
  %1455 = vdwg.mxu0
  %v1457 = vsel %vm137, %v1351, 0
  %1459 = vmatpush.msra.mxu0 0.0
  %1460 = vmatpush.msra.mxu0 0.0
  %1461 = vmatpush.msra.mxu0 0.0
  %1462 = vmatpush.msra.mxu0 0.0
  %1463 = vmatpush.msra.mxu0 0.0
  %1464 = vmatpush.msra.mxu0 0.0
  %1465 = vmatpush.msra.mxu0 0.0
  %1466 = vmatpush.msra.mxu0 0.0
  %1467 = vmatpush.msra.mxu0 0.0
  %1468 = vmatpush.msra.mxu0 0.0
  %1469 = vmatpush.msra.mxu0 0.0
  %1470 = vmatpush.msra.mxu0 0.0
  %1471 = vmatpush.msra.mxu0 0.0
  %1472 = vmatpush.msra.mxu0 0.0
  %1473 = vmatpush.msra.mxu0 0.0
  %1474 = vmatpush.msra.mxu0 %v1270
  %1475 = vmatmul.f32.gmra.mxu0 %v1457
  %v1476 = vpop.f32.mrf.mxu0
  %v1477 = vadd.f32 %v1454, %v1476
  %1478 = vdwg.mxu0
  %1479 = vrot.lane.b32.xlu0 %v1264, 112
  %v1480 = vpop.permute.xlu0 %1479
  %1481 = vrot.lane.b32.xlu0 %v1264, 80
  %v1482 = vpop.permute.xlu0 %1481
  %v1483 = vsel %vm137, %v1480, 0
  %v1485 = vsel %vm137, %v1482, 0
  %1487 = vmatpush.xpose.msra.mxu0 0.0
  %1488 = vmatpush.xpose.msra.mxu0 0.0
  %1489 = vmatpush.xpose.msra.mxu0 0.0
  %1490 = vmatpush.xpose.msra.mxu0 0.0
  %1491 = vmatpush.xpose.msra.mxu0 0.0
  %1492 = vmatpush.xpose.msra.mxu0 0.0
  %1493 = vmatpush.xpose.msra.mxu0 0.0
  %1494 = vmatpush.xpose.msra.mxu0 0.0
  %1495 = vmatpush.xpose.msra.mxu0 0.0
  %1496 = vmatpush.xpose.msra.mxu0 0.0
  %1497 = vmatpush.xpose.msra.mxu0 0.0
  %1498 = vmatpush.xpose.msra.mxu0 0.0
  %1499 = vmatpush.xpose.msra.mxu0 0.0
  %1500 = vmatpush.xpose.msra.mxu0 0.0
  %1501 = vmatpush.xpose.msra.mxu0 0.0
  %1502 = vmatpush.xpose.msra.mxu0 %v1485
  %1503 = vmatmul.f32.gmra.mxu0 %v1483
  %v1504 = vpop.f32.mrf.mxu0
  %v1505 = vadd.f32 0.0, %v1504
  %1506 = vdwg.mxu0
  %v1507 = vmul.f32 %v1505, 0.17677669
  %v1508 = vsel %vm163, -1e+12, %v1507
  %v1509 = vsel %vm137, %v1508, -inf
  %1510 = vmax.xlane.f32.xlu0 %v1509
  %v1511 = vpop.xlane.xlu0 %1510
  %v1512 = vsub.f32 %v1508, %v1511
  %v1513 = vmul.f32 %v1512, 1.442695
  %v1514 = vpow.pop %v1513
  %v1515 = vsel %vm137, %v1514, 0.0
  %1516 = vadd.xlane.f32.xlu0 %v1515
  %v1517 = vpop.xlane.xlu0 %1516
  %v1518 = vrcp.pop %v1517
  %v1519 = vmul.f32 %v1517, %v1518
  %v1520 = vsub.f32 1.0, %v1519
  %v1521 = vmul.f32 %v1518, %v1520
  %v1522 = vadd.f32 %v1518, %v1521
  %vm1523 = vweird.f32 %v1517
  %vm1524 = vweird.f32 %v1518
  %vm1525 = vmor %vm1523, %vm1524
  %v1526 = vsel %vm1525, %v1518, %v1522
  %v1527 = vand.u32 2147483647, %v1517
  %vm1528 = vcmp.eq.f32.partialorder %v1527, 8.507059e+37
  %v1529 = vand.u32 %v1517, 2147483648
  %v1530 = vor.u32 1.1754944e-38, %v1529
  %v1531 = vsel %vm1528, %v1530, %v1526
  %v1532 = vmul.f32 %v1514, %v1531
  %1533 = vrot.lane.b32.xlu0 %v1264, 48
  %v1534 = vpop.permute.xlu0 %1533
  %v1537 = vsel %vm137, %v1532, 0
  %1539 = vmatpush.msra.mxu0 0.0
  %1540 = vmatpush.msra.mxu0 0.0
  %1541 = vmatpush.msra.mxu0 0.0
  %1542 = vmatpush.msra.mxu0 0.0
  %1543 = vmatpush.msra.mxu0 0.0
  %1544 = vmatpush.msra.mxu0 0.0
  %1545 = vmatpush.msra.mxu0 0.0
  %1546 = vmatpush.msra.mxu0 0.0
  %1547 = vmatpush.msra.mxu0 0.0
  %1548 = vmatpush.msra.mxu0 0.0
  %1549 = vmatpush.msra.mxu0 0.0
  %1550 = vmatpush.msra.mxu0 0.0
  %1551 = vmatpush.msra.mxu0 0.0
  %1552 = vmatpush.msra.mxu0 0.0
  %1553 = vmatpush.msra.mxu0 0.0
  %1554 = vmatpush.msra.mxu0 %v1534
  %1555 = vmatmul.f32.gmra.mxu0 %v1537
  %v1556 = vpop.f32.mrf.mxu0
  %v1557 = vadd.f32 0.0, %v1556
  %1558 = vdwg.mxu0
  %v1560 = vsel %vm137, %v1557, 0
  %1562 = vmatpush.msra.mxu0 0.0
  %1563 = vmatpush.msra.mxu0 0.0
  %1564 = vmatpush.msra.mxu0 0.0
  %1565 = vmatpush.msra.mxu0 0.0
  %1566 = vmatpush.msra.mxu0 0.0
  %1567 = vmatpush.msra.mxu0 0.0
  %1568 = vmatpush.msra.mxu0 0.0
  %1569 = vmatpush.msra.mxu0 0.0
  %1570 = vmatpush.msra.mxu0 0.0
  %1571 = vmatpush.msra.mxu0 0.0
  %1572 = vmatpush.msra.mxu0 0.0
  %1573 = vmatpush.msra.mxu0 0.0
  %1574 = vmatpush.msra.mxu0 0.0
  %1575 = vmatpush.msra.mxu0 0.0
  %1576 = vmatpush.msra.mxu0 0.0
  %1577 = vmatpush.msra.mxu0 %v1272
  %1578 = vmatmul.f32.gmra.mxu0 %v1560
  %v1579 = vpop.f32.mrf.mxu0
  %v1580 = vadd.f32 0.0, %v1579
  %1581 = vdwg.mxu0
  %v1582 = vadd.f32 %v1477, %v1580
  %1583 = vrot.lane.b32.xlu0 %v1264, 104
  %v1584 = vpop.permute.xlu0 %1583
  %1585 = vrot.lane.b32.xlu0 %v1264, 72
  %v1586 = vpop.permute.xlu0 %1585
  %v1587 = vsel %vm137, %v1584, 0
  %v1589 = vsel %vm137, %v1586, 0
  %1591 = vmatpush.xpose.msra.mxu0 0.0
  %1592 = vmatpush.xpose.msra.mxu0 0.0
  %1593 = vmatpush.xpose.msra.mxu0 0.0
  %1594 = vmatpush.xpose.msra.mxu0 0.0
  %1595 = vmatpush.xpose.msra.mxu0 0.0
  %1596 = vmatpush.xpose.msra.mxu0 0.0
  %1597 = vmatpush.xpose.msra.mxu0 0.0
  %1598 = vmatpush.xpose.msra.mxu0 0.0
  %1599 = vmatpush.xpose.msra.mxu0 0.0
  %1600 = vmatpush.xpose.msra.mxu0 0.0
  %1601 = vmatpush.xpose.msra.mxu0 0.0
  %1602 = vmatpush.xpose.msra.mxu0 0.0
  %1603 = vmatpush.xpose.msra.mxu0 0.0
  %1604 = vmatpush.xpose.msra.mxu0 0.0
  %1605 = vmatpush.xpose.msra.mxu0 0.0
  %1606 = vmatpush.xpose.msra.mxu0 %v1589
  %1607 = vmatmul.f32.gmra.mxu0 %v1587
  %v1608 = vpop.f32.mrf.mxu0
  %v1609 = vadd.f32 0.0, %v1608
  %1610 = vdwg.mxu0
  %v1611 = vmul.f32 %v1609, 0.17677669
  %v1612 = vsel %vm163, -1e+12, %v1611
  %v1613 = vsel %vm137, %v1612, -inf
  %1614 = vmax.xlane.f32.xlu0 %v1613
  %v1615 = vpop.xlane.xlu0 %1614
  %v1616 = vsub.f32 %v1612, %v1615
  %v1617 = vmul.f32 %v1616, 1.442695
  %v1618 = vpow.pop %v1617
  %v1619 = vsel %vm137, %v1618, 0.0
  %1620 = vadd.xlane.f32.xlu0 %v1619
  %v1621 = vpop.xlane.xlu0 %1620
  %v1622 = vrcp.pop %v1621
  %v1623 = vmul.f32 %v1621, %v1622
  %v1624 = vsub.f32 1.0, %v1623
  %v1625 = vmul.f32 %v1622, %v1624
  %v1626 = vadd.f32 %v1622, %v1625
  %vm1627 = vweird.f32 %v1621
  %vm1628 = vweird.f32 %v1622
  %vm1629 = vmor %vm1627, %vm1628
  %v1630 = vsel %vm1629, %v1622, %v1626
  %v1631 = vand.u32 2147483647, %v1621
  %vm1632 = vcmp.eq.f32.partialorder %v1631, 8.507059e+37
  %v1633 = vand.u32 %v1621, 2147483648
  %v1634 = vor.u32 1.1754944e-38, %v1633
  %v1635 = vsel %vm1632, %v1634, %v1630
  %v1636 = vmul.f32 %v1618, %v1635
  %1637 = vrot.lane.b32.xlu0 %v1264, 40
  %v1638 = vpop.permute.xlu0 %1637
  %v1641 = vsel %vm137, %v1636, 0
  %1643 = vmatpush.msra.mxu0 0.0
  %1644 = vmatpush.msra.mxu0 0.0
  %1645 = vmatpush.msra.mxu0 0.0
  %1646 = vmatpush.msra.mxu0 0.0
  %1647 = vmatpush.msra.mxu0 0.0
  %1648 = vmatpush.msra.mxu0 0.0
  %1649 = vmatpush.msra.mxu0 0.0
  %1650 = vmatpush.msra.mxu0 0.0
  %1651 = vmatpush.msra.mxu0 0.0
  %1652 = vmatpush.msra.mxu0 0.0
  %1653 = vmatpush.msra.mxu0 0.0
  %1654 = vmatpush.msra.mxu0 0.0
  %1655 = vmatpush.msra.mxu0 0.0
  %1656 = vmatpush.msra.mxu0 0.0
  %1657 = vmatpush.msra.mxu0 0.0
  %1658 = vmatpush.msra.mxu0 %v1638
  %1659 = vmatmul.f32.gmra.mxu0 %v1641
  %v1660 = vpop.f32.mrf.mxu0
  %v1661 = vadd.f32 0.0, %v1660
  %1662 = vdwg.mxu0
  %v1664 = vsel %vm137, %v1661, 0
  %1666 = vmatpush.msra.mxu0 0.0
  %1667 = vmatpush.msra.mxu0 0.0
  %1668 = vmatpush.msra.mxu0 0.0
  %1669 = vmatpush.msra.mxu0 0.0
  %1670 = vmatpush.msra.mxu0 0.0
  %1671 = vmatpush.msra.mxu0 0.0
  %1672 = vmatpush.msra.mxu0 0.0
  %1673 = vmatpush.msra.mxu0 0.0
  %1674 = vmatpush.msra.mxu0 0.0
  %1675 = vmatpush.msra.mxu0 0.0
  %1676 = vmatpush.msra.mxu0 0.0
  %1677 = vmatpush.msra.mxu0 0.0
  %1678 = vmatpush.msra.mxu0 0.0
  %1679 = vmatpush.msra.mxu0 0.0
  %1680 = vmatpush.msra.mxu0 0.0
  %1681 = vmatpush.msra.mxu0 %v1273
  %1682 = vmatmul.f32.gmra.mxu0 %v1664
  %v1683 = vpop.f32.mrf.mxu0
  %v1684 = vadd.f32 0.0, %v1683
  %1685 = vdwg.mxu0
  %v1686 = vadd.f32 %v1582, %v1684
  %1688 = vrot.lane.b32.xlu0 %v1267, 96
  %v1689 = vpop.permute.xlu0 %1688
  %v1690 = vsel %vm137, %v1267, 0
  %v1692 = vsel %vm137, %v1689, 0
  %1694 = vmatpush.xpose.msra.mxu0 0.0
  %1695 = vmatpush.xpose.msra.mxu0 0.0
  %1696 = vmatpush.xpose.msra.mxu0 0.0
  %1697 = vmatpush.xpose.msra.mxu0 0.0
  %1698 = vmatpush.xpose.msra.mxu0 0.0
  %1699 = vmatpush.xpose.msra.mxu0 0.0
  %1700 = vmatpush.xpose.msra.mxu0 0.0
  %1701 = vmatpush.xpose.msra.mxu0 0.0
  %1702 = vmatpush.xpose.msra.mxu0 0.0
  %1703 = vmatpush.xpose.msra.mxu0 0.0
  %1704 = vmatpush.xpose.msra.mxu0 0.0
  %1705 = vmatpush.xpose.msra.mxu0 0.0
  %1706 = vmatpush.xpose.msra.mxu0 0.0
  %1707 = vmatpush.xpose.msra.mxu0 0.0
  %1708 = vmatpush.xpose.msra.mxu0 0.0
  %1709 = vmatpush.xpose.msra.mxu0 %v1692
  %1710 = vmatmul.f32.gmra.mxu0 %v1690
  %v1711 = vpop.f32.mrf.mxu0
  %v1712 = vadd.f32 0.0, %v1711
  %1713 = vdwg.mxu0
  %v1714 = vmul.f32 %v1712, 0.17677669
  %v1715 = vsel %vm579, -1e+12, %v1714
  %v1716 = vsel %vm137, %v1715, -inf
  %1717 = vmax.xlane.f32.xlu0 %v1716
  %v1718 = vpop.xlane.xlu0 %1717
  %v1719 = vsub.f32 %v1715, %v1718
  %v1720 = vmul.f32 %v1719, 1.442695
  %v1721 = vpow.pop %v1720
  %v1722 = vsel %vm137, %v1721, 0.0
  %1723 = vadd.xlane.f32.xlu0 %v1722
  %v1724 = vpop.xlane.xlu0 %1723
  %v1725 = vrcp.pop %v1724
  %v1726 = vmul.f32 %v1724, %v1725
  %v1727 = vsub.f32 1.0, %v1726
  %v1728 = vmul.f32 %v1725, %v1727
  %v1729 = vadd.f32 %v1725, %v1728
  %vm1730 = vweird.f32 %v1724
  %vm1731 = vweird.f32 %v1725
  %vm1732 = vmor %vm1730, %vm1731
  %v1733 = vsel %vm1732, %v1725, %v1729
  %v1734 = vand.u32 2147483647, %v1724
  %vm1735 = vcmp.eq.f32.partialorder %v1734, 8.507059e+37
  %v1736 = vand.u32 %v1724, 2147483648
  %v1737 = vor.u32 1.1754944e-38, %v1736
  %v1738 = vsel %vm1735, %v1737, %v1733
  %v1739 = vmul.f32 %v1721, %v1738
  %1740 = vrot.lane.b32.xlu0 %v1267, 64
  %v1741 = vpop.permute.xlu0 %1740
  %v1744 = vsel %vm137, %v1739, 0
  %1746 = vmatpush.msra.mxu0 0.0
  %1747 = vmatpush.msra.mxu0 0.0
  %1748 = vmatpush.msra.mxu0 0.0
  %1749 = vmatpush.msra.mxu0 0.0
  %1750 = vmatpush.msra.mxu0 0.0
  %1751 = vmatpush.msra.mxu0 0.0
  %1752 = vmatpush.msra.mxu0 0.0
  %1753 = vmatpush.msra.mxu0 0.0
  %1754 = vmatpush.msra.mxu0 0.0
  %1755 = vmatpush.msra.mxu0 0.0
  %1756 = vmatpush.msra.mxu0 0.0
  %1757 = vmatpush.msra.mxu0 0.0
  %1758 = vmatpush.msra.mxu0 0.0
  %1759 = vmatpush.msra.mxu0 0.0
  %1760 = vmatpush.msra.mxu0 0.0
  %1761 = vmatpush.msra.mxu0 %v1741
  %1762 = vmatmul.f32.gmra.mxu0 %v1744
  %v1763 = vpop.f32.mrf.mxu0
  %v1764 = vadd.f32 0.0, %v1763
  %1765 = vdwg.mxu0
  %1766 = vrot.lane.b32.xlu0 %v1267, 120
  %v1767 = vpop.permute.xlu0 %1766
  %1768 = vrot.lane.b32.xlu0 %v1267, 88
  %v1769 = vpop.permute.xlu0 %1768
  %v1770 = vsel %vm137, %v1767, 0
  %v1772 = vsel %vm137, %v1769, 0
  %1774 = vmatpush.xpose.msra.mxu0 0.0
  %1775 = vmatpush.xpose.msra.mxu0 0.0
  %1776 = vmatpush.xpose.msra.mxu0 0.0
  %1777 = vmatpush.xpose.msra.mxu0 0.0
  %1778 = vmatpush.xpose.msra.mxu0 0.0
  %1779 = vmatpush.xpose.msra.mxu0 0.0
  %1780 = vmatpush.xpose.msra.mxu0 0.0
  %1781 = vmatpush.xpose.msra.mxu0 0.0
  %1782 = vmatpush.xpose.msra.mxu0 0.0
  %1783 = vmatpush.xpose.msra.mxu0 0.0
  %1784 = vmatpush.xpose.msra.mxu0 0.0
  %1785 = vmatpush.xpose.msra.mxu0 0.0
  %1786 = vmatpush.xpose.msra.mxu0 0.0
  %1787 = vmatpush.xpose.msra.mxu0 0.0
  %1788 = vmatpush.xpose.msra.mxu0 0.0
  %1789 = vmatpush.xpose.msra.mxu0 %v1772
  %1790 = vmatmul.f32.gmra.mxu0 %v1770
  %v1791 = vpop.f32.mrf.mxu0
  %v1792 = vadd.f32 0.0, %v1791
  %1793 = vdwg.mxu0
  %v1794 = vmul.f32 %v1792, 0.17677669
  %v1795 = vsel %vm579, -1e+12, %v1794
  %v1796 = vsel %vm137, %v1795, -inf
  %1797 = vmax.xlane.f32.xlu0 %v1796
  %v1798 = vpop.xlane.xlu0 %1797
  %v1799 = vsub.f32 %v1795, %v1798
  %v1800 = vmul.f32 %v1799, 1.442695
  %v1801 = vpow.pop %v1800
  %v1802 = vsel %vm137, %v1801, 0.0
  %1803 = vadd.xlane.f32.xlu0 %v1802
  %v1804 = vpop.xlane.xlu0 %1803
  %v1805 = vrcp.pop %v1804
  %v1806 = vmul.f32 %v1804, %v1805
  %v1807 = vsub.f32 1.0, %v1806
  %v1808 = vmul.f32 %v1805, %v1807
  %v1809 = vadd.f32 %v1805, %v1808
  %vm1810 = vweird.f32 %v1804
  %vm1811 = vweird.f32 %v1805
  %vm1812 = vmor %vm1810, %vm1811
  %v1813 = vsel %vm1812, %v1805, %v1809
  %v1814 = vand.u32 2147483647, %v1804
  %vm1815 = vcmp.eq.f32.partialorder %v1814, 8.507059e+37
  %v1816 = vand.u32 %v1804, 2147483648
  %v1817 = vor.u32 1.1754944e-38, %v1816
  %v1818 = vsel %vm1815, %v1817, %v1813
  %v1819 = vmul.f32 %v1801, %v1818
  %1820 = vrot.lane.b32.xlu0 %v1267, 56
  %v1821 = vpop.permute.xlu0 %1820
  %v1824 = vsel %vm137, %v1819, 0
  %1826 = vmatpush.msra.mxu0 0.0
  %1827 = vmatpush.msra.mxu0 0.0
  %1828 = vmatpush.msra.mxu0 0.0
  %1829 = vmatpush.msra.mxu0 0.0
  %1830 = vmatpush.msra.mxu0 0.0
  %1831 = vmatpush.msra.mxu0 0.0
  %1832 = vmatpush.msra.mxu0 0.0
  %1833 = vmatpush.msra.mxu0 0.0
  %1834 = vmatpush.msra.mxu0 0.0
  %1835 = vmatpush.msra.mxu0 0.0
  %1836 = vmatpush.msra.mxu0 0.0
  %1837 = vmatpush.msra.mxu0 0.0
  %1838 = vmatpush.msra.mxu0 0.0
  %1839 = vmatpush.msra.mxu0 0.0
  %1840 = vmatpush.msra.mxu0 0.0
  %1841 = vmatpush.msra.mxu0 %v1821
  %1842 = vmatmul.f32.gmra.mxu0 %v1824
  %v1843 = vpop.f32.mrf.mxu0
  %v1844 = vadd.f32 0.0, %v1843
  %1845 = vdwg.mxu0
  %v1847 = vsel %vm137, %v1844, 0
  %1849 = vmatpush.msra.mxu0 0.0
  %1850 = vmatpush.msra.mxu0 0.0
  %1851 = vmatpush.msra.mxu0 0.0
  %1852 = vmatpush.msra.mxu0 0.0
  %1853 = vmatpush.msra.mxu0 0.0
  %1854 = vmatpush.msra.mxu0 0.0
  %1855 = vmatpush.msra.mxu0 0.0
  %1856 = vmatpush.msra.mxu0 0.0
  %1857 = vmatpush.msra.mxu0 0.0
  %1858 = vmatpush.msra.mxu0 0.0
  %1859 = vmatpush.msra.mxu0 0.0
  %1860 = vmatpush.msra.mxu0 0.0
  %1861 = vmatpush.msra.mxu0 0.0
  %1862 = vmatpush.msra.mxu0 0.0
  %1863 = vmatpush.msra.mxu0 0.0
  %1864 = vmatpush.msra.mxu0 %v1271
  %1865 = vmatmul.f32.gmra.mxu0 %v1847
  %v1866 = vpop.f32.mrf.mxu0
  %v1867 = vadd.f32 0.0, %v1866
  %1868 = vdwg.mxu0
  %v1870 = vsel %vm137, %v1764, 0
  %1872 = vmatpush.msra.mxu0 0.0
  %1873 = vmatpush.msra.mxu0 0.0
  %1874 = vmatpush.msra.mxu0 0.0
  %1875 = vmatpush.msra.mxu0 0.0
  %1876 = vmatpush.msra.mxu0 0.0
  %1877 = vmatpush.msra.mxu0 0.0
  %1878 = vmatpush.msra.mxu0 0.0
  %1879 = vmatpush.msra.mxu0 0.0
  %1880 = vmatpush.msra.mxu0 0.0
  %1881 = vmatpush.msra.mxu0 0.0
  %1882 = vmatpush.msra.mxu0 0.0
  %1883 = vmatpush.msra.mxu0 0.0
  %1884 = vmatpush.msra.mxu0 0.0
  %1885 = vmatpush.msra.mxu0 0.0
  %1886 = vmatpush.msra.mxu0 0.0
  %1887 = vmatpush.msra.mxu0 %v1270
  %1888 = vmatmul.f32.gmra.mxu0 %v1870
  %v1889 = vpop.f32.mrf.mxu0
  %v1890 = vadd.f32 %v1867, %v1889
  %1891 = vdwg.mxu0
  %1892 = vrot.lane.b32.xlu0 %v1267, 112
  %v1893 = vpop.permute.xlu0 %1892
  %1894 = vrot.lane.b32.xlu0 %v1267, 80
  %v1895 = vpop.permute.xlu0 %1894
  %v1896 = vsel %vm137, %v1893, 0
  %v1898 = vsel %vm137, %v1895, 0
  %1900 = vmatpush.xpose.msra.mxu0 0.0
  %1901 = vmatpush.xpose.msra.mxu0 0.0
  %1902 = vmatpush.xpose.msra.mxu0 0.0
  %1903 = vmatpush.xpose.msra.mxu0 0.0
  %1904 = vmatpush.xpose.msra.mxu0 0.0
  %1905 = vmatpush.xpose.msra.mxu0 0.0
  %1906 = vmatpush.xpose.msra.mxu0 0.0
  %1907 = vmatpush.xpose.msra.mxu0 0.0
  %1908 = vmatpush.xpose.msra.mxu0 0.0
  %1909 = vmatpush.xpose.msra.mxu0 0.0
  %1910 = vmatpush.xpose.msra.mxu0 0.0
  %1911 = vmatpush.xpose.msra.mxu0 0.0
  %1912 = vmatpush.xpose.msra.mxu0 0.0
  %1913 = vmatpush.xpose.msra.mxu0 0.0
  %1914 = vmatpush.xpose.msra.mxu0 0.0
  %1915 = vmatpush.xpose.msra.mxu0 %v1898
  %1916 = vmatmul.f32.gmra.mxu0 %v1896
  %v1917 = vpop.f32.mrf.mxu0
  %v1918 = vadd.f32 0.0, %v1917
  %1919 = vdwg.mxu0
  %v1920 = vmul.f32 %v1918, 0.17677669
  %v1921 = vsel %vm579, -1e+12, %v1920
  %v1922 = vsel %vm137, %v1921, -inf
  %1923 = vmax.xlane.f32.xlu0 %v1922
  %v1924 = vpop.xlane.xlu0 %1923
  %v1925 = vsub.f32 %v1921, %v1924
  %v1926 = vmul.f32 %v1925, 1.442695
  %v1927 = vpow.pop %v1926
  %v1928 = vsel %vm137, %v1927, 0.0
  %1929 = vadd.xlane.f32.xlu0 %v1928
  %v1930 = vpop.xlane.xlu0 %1929
  %v1931 = vrcp.pop %v1930
  %v1932 = vmul.f32 %v1930, %v1931
  %v1933 = vsub.f32 1.0, %v1932
  %v1934 = vmul.f32 %v1931, %v1933
  %v1935 = vadd.f32 %v1931, %v1934
  %vm1936 = vweird.f32 %v1930
  %vm1937 = vweird.f32 %v1931
  %vm1938 = vmor %vm1936, %vm1937
  %v1939 = vsel %vm1938, %v1931, %v1935
  %v1940 = vand.u32 2147483647, %v1930
  %vm1941 = vcmp.eq.f32.partialorder %v1940, 8.507059e+37
  %v1942 = vand.u32 %v1930, 2147483648
  %v1943 = vor.u32 1.1754944e-38, %v1942
  %v1944 = vsel %vm1941, %v1943, %v1939
  %v1945 = vmul.f32 %v1927, %v1944
  %1946 = vrot.lane.b32.xlu0 %v1267, 48
  %v1947 = vpop.permute.xlu0 %1946
  %v1950 = vsel %vm137, %v1945, 0
  %1952 = vmatpush.msra.mxu0 0.0
  %1953 = vmatpush.msra.mxu0 0.0
  %1954 = vmatpush.msra.mxu0 0.0
  %1955 = vmatpush.msra.mxu0 0.0
  %1956 = vmatpush.msra.mxu0 0.0
  %1957 = vmatpush.msra.mxu0 0.0
  %1958 = vmatpush.msra.mxu0 0.0
  %1959 = vmatpush.msra.mxu0 0.0
  %1960 = vmatpush.msra.mxu0 0.0
  %1961 = vmatpush.msra.mxu0 0.0
  %1962 = vmatpush.msra.mxu0 0.0
  %1963 = vmatpush.msra.mxu0 0.0
  %1964 = vmatpush.msra.mxu0 0.0
  %1965 = vmatpush.msra.mxu0 0.0
  %1966 = vmatpush.msra.mxu0 0.0
  %1967 = vmatpush.msra.mxu0 %v1947
  %1968 = vmatmul.f32.gmra.mxu0 %v1950
  %v1969 = vpop.f32.mrf.mxu0
  %v1970 = vadd.f32 0.0, %v1969
  %1971 = vdwg.mxu0
  %v1973 = vsel %vm137, %v1970, 0
  %1975 = vmatpush.msra.mxu0 0.0
  %1976 = vmatpush.msra.mxu0 0.0
  %1977 = vmatpush.msra.mxu0 0.0
  %1978 = vmatpush.msra.mxu0 0.0
  %1979 = vmatpush.msra.mxu0 0.0
  %1980 = vmatpush.msra.mxu0 0.0
  %1981 = vmatpush.msra.mxu0 0.0
  %1982 = vmatpush.msra.mxu0 0.0
  %1983 = vmatpush.msra.mxu0 0.0
  %1984 = vmatpush.msra.mxu0 0.0
  %1985 = vmatpush.msra.mxu0 0.0
  %1986 = vmatpush.msra.mxu0 0.0
  %1987 = vmatpush.msra.mxu0 0.0
  %1988 = vmatpush.msra.mxu0 0.0
  %1989 = vmatpush.msra.mxu0 0.0
  %1990 = vmatpush.msra.mxu0 %v1272
  %1991 = vmatmul.f32.gmra.mxu0 %v1973
  %v1992 = vpop.f32.mrf.mxu0
  %v1993 = vadd.f32 0.0, %v1992
  %1994 = vdwg.mxu0
  %v1995 = vadd.f32 %v1890, %v1993
  %1996 = vrot.lane.b32.xlu0 %v1267, 104
  %v1997 = vpop.permute.xlu0 %1996
  %1998 = vrot.lane.b32.xlu0 %v1267, 72
  %v1999 = vpop.permute.xlu0 %1998
  %v2000 = vsel %vm137, %v1997, 0
  %v2002 = vsel %vm137, %v1999, 0
  %2004 = vmatpush.xpose.msra.mxu0 0.0
  %2005 = vmatpush.xpose.msra.mxu0 0.0
  %2006 = vmatpush.xpose.msra.mxu0 0.0
  %2007 = vmatpush.xpose.msra.mxu0 0.0
  %2008 = vmatpush.xpose.msra.mxu0 0.0
  %2009 = vmatpush.xpose.msra.mxu0 0.0
  %2010 = vmatpush.xpose.msra.mxu0 0.0
  %2011 = vmatpush.xpose.msra.mxu0 0.0
  %2012 = vmatpush.xpose.msra.mxu0 0.0
  %2013 = vmatpush.xpose.msra.mxu0 0.0
  %2014 = vmatpush.xpose.msra.mxu0 0.0
  %2015 = vmatpush.xpose.msra.mxu0 0.0
  %2016 = vmatpush.xpose.msra.mxu0 0.0
  %2017 = vmatpush.xpose.msra.mxu0 0.0
  %2018 = vmatpush.xpose.msra.mxu0 0.0
  %2019 = vmatpush.xpose.msra.mxu0 %v2002
  %2020 = vmatmul.f32.gmra.mxu0 %v2000
  %v2021 = vpop.f32.mrf.mxu0
  %v2022 = vadd.f32 0.0, %v2021
  %2023 = vdwg.mxu0
  %v2024 = vmul.f32 %v2022, 0.17677669
  %v2025 = vsel %vm579, -1e+12, %v2024
  %v2026 = vsel %vm137, %v2025, -inf
  %2027 = vmax.xlane.f32.xlu0 %v2026
  %v2028 = vpop.xlane.xlu0 %2027
  %v2029 = vsub.f32 %v2025, %v2028
  %v2030 = vmul.f32 %v2029, 1.442695
  %v2031 = vpow.pop %v2030
  %v2032 = vsel %vm137, %v2031, 0.0
  %2033 = vadd.xlane.f32.xlu0 %v2032
  %v2034 = vpop.xlane.xlu0 %2033
  %v2035 = vrcp.pop %v2034
  %v2036 = vmul.f32 %v2034, %v2035
  %v2037 = vsub.f32 1.0, %v2036
  %v2038 = vmul.f32 %v2035, %v2037
  %v2039 = vadd.f32 %v2035, %v2038
  %vm2040 = vweird.f32 %v2034
  %vm2041 = vweird.f32 %v2035
  %vm2042 = vmor %vm2040, %vm2041
  %v2043 = vsel %vm2042, %v2035, %v2039
  %v2044 = vand.u32 2147483647, %v2034
  %vm2045 = vcmp.eq.f32.partialorder %v2044, 8.507059e+37
  %v2046 = vand.u32 %v2034, 2147483648
  %v2047 = vor.u32 1.1754944e-38, %v2046
  %v2048 = vsel %vm2045, %v2047, %v2043
  %v2049 = vmul.f32 %v2031, %v2048
  %2050 = vrot.lane.b32.xlu0 %v1267, 40
  %v2051 = vpop.permute.xlu0 %2050
  %v2054 = vsel %vm137, %v2049, 0
  %2056 = vmatpush.msra.mxu0 0.0
  %2057 = vmatpush.msra.mxu0 0.0
  %2058 = vmatpush.msra.mxu0 0.0
  %2059 = vmatpush.msra.mxu0 0.0
  %2060 = vmatpush.msra.mxu0 0.0
  %2061 = vmatpush.msra.mxu0 0.0
  %2062 = vmatpush.msra.mxu0 0.0
  %2063 = vmatpush.msra.mxu0 0.0
  %2064 = vmatpush.msra.mxu0 0.0
  %2065 = vmatpush.msra.mxu0 0.0
  %2066 = vmatpush.msra.mxu0 0.0
  %2067 = vmatpush.msra.mxu0 0.0
  %2068 = vmatpush.msra.mxu0 0.0
  %2069 = vmatpush.msra.mxu0 0.0
  %2070 = vmatpush.msra.mxu0 0.0
  %2071 = vmatpush.msra.mxu0 %v2051
  %2072 = vmatmul.f32.gmra.mxu0 %v2054
  %v2073 = vpop.f32.mrf.mxu0
  %v2074 = vadd.f32 0.0, %v2073
  %2075 = vdwg.mxu0
  %v2077 = vsel %vm137, %v2074, 0
  %2079 = vmatpush.msra.mxu0 0.0
  %2080 = vmatpush.msra.mxu0 0.0
  %2081 = vmatpush.msra.mxu0 0.0
  %2082 = vmatpush.msra.mxu0 0.0
  %2083 = vmatpush.msra.mxu0 0.0
  %2084 = vmatpush.msra.mxu0 0.0
  %2085 = vmatpush.msra.mxu0 0.0
  %2086 = vmatpush.msra.mxu0 0.0
  %2087 = vmatpush.msra.mxu0 0.0
  %2088 = vmatpush.msra.mxu0 0.0
  %2089 = vmatpush.msra.mxu0 0.0
  %2090 = vmatpush.msra.mxu0 0.0
  %2091 = vmatpush.msra.mxu0 0.0
  %2092 = vmatpush.msra.mxu0 0.0
  %2093 = vmatpush.msra.mxu0 0.0
  %2094 = vmatpush.msra.mxu0 %v1273
  %2095 = vmatmul.f32.gmra.mxu0 %v2077
  %v2096 = vpop.f32.mrf.mxu0
  %v2097 = vadd.f32 0.0, %v2096
  %2098 = vdwg.mxu0
  %v2099 = vadd.f32 %v1995, %v2097
  %v2100 = vld [vmem:[%s2 + $0xb] sm:$0x1]
  %v2101 = vperm.slane %v2100, 0
  %v2102 = vadd.f32 %v1686, %v2101
  %v2103 = vadd.f32 %v2099, %v2101
  %v2104 = vadd.f32 %v2102, %v1231
  %v2105 = vadd.f32 %v2103, %v1232
  %v2106 = vld [vmem:[%s2 + $0xc] sm:$0x1]
  %v2107 = vld [vmem:[%s2 + $0xd] sm:$0x1]
  %v2108 = vsel %vm36, %v2104, 0.0
  %2109 = vadd.xlane.f32.xlu0 %v2108
  %v2110 = vpop.xlane.xlu0 %2109
  %v2111 = vsel %vm36, %v2105, 0.0
  %2112 = vadd.xlane.f32.xlu0 %v2111
  %v2113 = vpop.xlane.xlu0 %2112
  %v2114 = vmul.f32 %v2110, %v49
  %v2115 = vmul.f32 %v2113, %v49
  %v2116 = vsub.f32 %v2104, %v2114
  %v2117 = vsub.f32 %v2105, %v2115
  %v2118 = vmul.f32 %v2116, %v2116
  %v2119 = vmul.f32 %v2117, %v2117
  %v2120 = vsel %vm36, %v2118, 0.0
  %2121 = vadd.xlane.f32.xlu0 %v2120
  %v2122 = vpop.xlane.xlu0 %2121
  %v2123 = vsel %vm36, %v2119, 0.0
  %2124 = vadd.xlane.f32.xlu0 %v2123
  %v2125 = vpop.xlane.xlu0 %2124
  %v2126 = vmul.f32 %v2122, %v49
  %v2127 = vmul.f32 %v2125, %v49
  %v2128 = vadd.f32 %v2126, 1e-05
  %v2129 = vadd.f32 %v2127, 1e-05
  %v2130 = vrsqrt.pop %v2128
  %v2131 = vmul.f32 %v2130, %v2128
  %v2132 = vmul.f32 %v2131, %v2130
  %v2133 = vmul.f32 0.5, %v2132
  %v2134 = vsub.f32 1.5, %v2133
  %v2135 = vmul.f32 %v2130, %v2134
  %vm2136 = vweird.f32 %v2128
  %vm2137 = vweird.f32 %v2130
  %vm2138 = vmor %vm2136, %vm2137
  %v2139 = vsel %vm2138, %v2130, %v2135
  %v2140 = vrsqrt.pop %v2129
  %v2141 = vmul.f32 %v2140, %v2129
  %v2142 = vmul.f32 %v2141, %v2140
  %v2143 = vmul.f32 0.5, %v2142
  %v2144 = vsub.f32 1.5, %v2143
  %v2145 = vmul.f32 %v2140, %v2144
  %vm2146 = vweird.f32 %v2129
  %vm2147 = vweird.f32 %v2140
  %vm2148 = vmor %vm2146, %vm2147
  %v2149 = vsel %vm2148, %v2140, %v2145
  %v2150 = vmul.f32 %v2116, %v2139
  %v2151 = vmul.f32 %v2117, %v2149
  %v2152 = vperm.slane %v2106, 0
  %v2153 = vmul.f32 %v2150, %v2152
  %v2154 = vmul.f32 %v2151, %v2152
  %v2155 = vperm.slane %v2107, 0
  %v2156 = vadd.f32 %v2153, %v2155
  %v2157 = vadd.f32 %v2154, %v2155
  %s2158 = scalar_lea.vmem %s5, 32
  %v2159 = vld [vmem:[%s2158] sm:$0xff]
  %v2160 = vld [vmem:[%s2158 + $0x8] sm:$0xff]
  %v2161 = vld [vmem:[%s2158 + $0x10] sm:$0xff]
  %v2162 = vld [vmem:[%s2158 + $0x18] sm:$0xff]
  %v2163 = vld [vmem:[%s2 + $0xe] sm:$0x1]
  %v2164 = vperm.slane %v2163, 0
  %v2166 = vsel %vm36, %v2156, 0
  %v2169 = vsel %vm36, %v2157, 0
  %2171 = vmatpush.msra.mxu0 0.0
  %2172 = vmatpush.msra.mxu0 0.0
  %2173 = vmatpush.msra.mxu0 0.0
  %2174 = vmatpush.msra.mxu0 0.0
  %2175 = vmatpush.msra.mxu0 0.0
  %2176 = vmatpush.msra.mxu0 0.0
  %2177 = vmatpush.msra.mxu0 0.0
  %2178 = vmatpush.msra.mxu0 0.0
  %2179 = vmatpush.msra.mxu0 0.0
  %2180 = vmatpush.msra.mxu0 0.0
  %2181 = vmatpush.msra.mxu0 0.0
  %2182 = vmatpush.msra.mxu0 0.0
  %2183 = vmatpush.msra.mxu0 %v2162
  %2184 = vmatpush.msra.mxu0 %v2161
  %2185 = vmatpush.msra.mxu0 %v2160
  %2186 = vmatpush.msra.mxu0 %v2159
  %2187 = vmatmul.f32.gmra.mxu0 %v2166
  %v2188 = vpop.f32.mrf.mxu0
  %v2189 = vadd.f32 %v2164, %v2188
  %2190 = vmatmul.f32.gmra.mxu0 %v2169
  %v2191 = vpop.f32.mrf.mxu0
  %v2192 = vadd.f32 %v2164, %v2191
  %2193 = vdwg.mxu0
  %v2194 = vmul.f32 %v2189, 0.5
  %v2195 = vmul.f32 %v2192, 0.5
  %v2196 = vmul.f32 %v2189, 0.70710677
  %v2197 = vmul.f32 %v2192, 0.70710677
  %vm2198 = vcmp.ge.f32.partialorder %v2196, 0.0
  %vm2199 = vcmp.ge.f32.partialorder %v2197, 0.0
  %v2200 = vsel %vm2198, 1.0, -1.0
  %v2201 = vsel %vm2199, 1.0, -1.0
  %v2202 = vand.u32 2147483647, %v2196
  %v2203 = vand.u32 2147483647, %v2197
  %v2204 = vmul.f32 %v2202, 0.3275911
  %v2205 = vmul.f32 %v2203, 0.3275911
  %v2206 = vadd.f32 %v2204, 1.0
  %v2207 = vadd.f32 %v2205, 1.0
  %v2208 = vrcp.pop %v2206
  %v2209 = vmul.f32 %v2206, %v2208
  %v2210 = vsub.f32 1.0, %v2209
  %v2211 = vmul.f32 %v2208, %v2210
  %v2212 = vadd.f32 %v2208, %v2211
  %vm2213 = vweird.f32 %v2206
  %vm2214 = vweird.f32 %v2208
  %vm2215 = vmor %vm2213, %vm2214
  %v2216 = vsel %vm2215, %v2208, %v2212
  %v2217 = vand.u32 2147483647, %v2206
  %vm2218 = vcmp.eq.f32.partialorder %v2217, 8.507059e+37
  %v2219 = vand.u32 %v2206, 2147483648
  %v2220 = vor.u32 1.1754944e-38, %v2219
  %v2221 = vsel %vm2218, %v2220, %v2216
  %v2222 = vmul.f32 1.0, %v2221
  %v2223 = vrcp.pop %v2207
  %v2224 = vmul.f32 %v2207, %v2223
  %v2225 = vsub.f32 1.0, %v2224
  %v2226 = vmul.f32 %v2223, %v2225
  %v2227 = vadd.f32 %v2223, %v2226
  %vm2228 = vweird.f32 %v2207
  %vm2229 = vweird.f32 %v2223
  %vm2230 = vmor %vm2228, %vm2229
  %v2231 = vsel %vm2230, %v2223, %v2227
  %v2232 = vand.u32 2147483647, %v2207
  %vm2233 = vcmp.eq.f32.partialorder %v2232, 8.507059e+37
  %v2234 = vand.u32 %v2207, 2147483648
  %v2235 = vor.u32 1.1754944e-38, %v2234
  %v2236 = vsel %vm2233, %v2235, %v2231
  %v2237 = vmul.f32 1.0, %v2236
  %v2238 = vmul.f32 %v2222, 1.0614054
  %v2239 = vmul.f32 %v2237, 1.0614054
  %v2240 = vadd.f32 %v2238, -1.4531521
  %v2241 = vadd.f32 %v2239, -1.4531521
  %v2242 = vmul.f32 %v2240, %v2222
  %v2243 = vmul.f32 %v2241, %v2237
  %v2244 = vadd.f32 %v2242, 1.4214138
  %v2245 = vadd.f32 %v2243, 1.4214138
  %v2246 = vmul.f32 %v2244, %v2222
  %v2247 = vmul.f32 %v2245, %v2237
  %v2248 = vadd.f32 %v2246, -0.28449672
  %v2249 = vadd.f32 %v2247, -0.28449672
  %v2250 = vmul.f32 %v2248, %v2222
  %v2251 = vmul.f32 %v2249, %v2237
  %v2252 = vadd.f32 %v2250, 0.2548296
  %v2253 = vadd.f32 %v2251, 0.2548296
  %v2254 = vmul.f32 %v2252, %v2222
  %v2255 = vmul.f32 %v2253, %v2237
  %v2256 = vsub.f32 0.0, %v2202
  %v2257 = vsub.f32 0.0, %v2203
  %v2258 = vmul.f32 %v2256, %v2202
  %v2259 = vmul.f32 %v2257, %v2203
  %v2260 = vmul.f32 %v2258, 1.442695
  %v2261 = vpow.pop %v2260
  %v2262 = vmul.f32 %v2259, 1.442695
  %v2263 = vpow.pop %v2262
  %v2264 = vmul.f32 %v2254, %v2261
  %v2265 = vmul.f32 %v2255, %v2263
  %v2266 = vsub.f32 1.0, %v2264
  %v2267 = vsub.f32 1.0, %v2265
  %v2268 = vmul.f32 %v2200, %v2266
  %v2269 = vmul.f32 %v2201, %v2267
  %v2270 = vadd.f32 %v2268, 1.0
  %v2271 = vadd.f32 %v2269, 1.0
  %v2272 = vmul.f32 %v2194, %v2270
  %v2273 = vmul.f32 %v2195, %v2271
  %s2274 = scalar_lea.vmem %s6, 128
  %v2275 = vld [vmem:[%s2274] sm:$0xff]
  %v2276 = vld [vmem:[%s2274 + $0x8] sm:$0xff]
  %v2277 = vld [vmem:[%s2274 + $0x10] sm:$0xff]
  %v2278 = vld [vmem:[%s2274 + $0x18] sm:$0xff]
  %v2279 = vld [vmem:[%s2274 + $0x20] sm:$0xff]
  %v2280 = vld [vmem:[%s2274 + $0x28] sm:$0xff]
  %v2281 = vld [vmem:[%s2274 + $0x30] sm:$0xff]
  %v2282 = vld [vmem:[%s2274 + $0x38] sm:$0xff]
  %v2283 = vld [vmem:[%s2274 + $0x40] sm:$0xff]
  %v2284 = vld [vmem:[%s2274 + $0x48] sm:$0xff]
  %v2285 = vld [vmem:[%s2274 + $0x50] sm:$0xff]
  %v2286 = vld [vmem:[%s2274 + $0x58] sm:$0xff]
  %v2287 = vld [vmem:[%s2274 + $0x60] sm:$0xff]
  %v2288 = vld [vmem:[%s2274 + $0x68] sm:$0xff]
  %v2289 = vld [vmem:[%s2274 + $0x70] sm:$0xff]
  %v2290 = vld [vmem:[%s2274 + $0x78] sm:$0xff]
  %v2291 = vld [vmem:[%s2 + $0xf] sm:$0x1]
  %v2292 = vperm.slane %v2291, 0
  %2293 = vmatpush.msra.mxu0 %v2290
  %2294 = vmatpush.msra.mxu0 %v2289
  %2295 = vmatpush.msra.mxu0 %v2288
  %2296 = vmatpush.msra.mxu0 %v2287
  %2297 = vmatpush.msra.mxu0 %v2286
  %2298 = vmatpush.msra.mxu0 %v2285
  %2299 = vmatpush.msra.mxu0 %v2284
  %2300 = vmatpush.msra.mxu0 %v2283
  %2301 = vmatpush.msra.mxu0 %v2282
  %2302 = vmatpush.msra.mxu0 %v2281
  %2303 = vmatpush.msra.mxu0 %v2280
  %2304 = vmatpush.msra.mxu0 %v2279
  %2305 = vmatpush.msra.mxu0 %v2278
  %2306 = vmatpush.msra.mxu0 %v2277
  %2307 = vmatpush.msra.mxu0 %v2276
  %2308 = vmatpush.msra.mxu0 %v2275
  %2309 = vmatmul.f32.gmra.mxu0 %v2272
  %v2310 = vpop.f32.mrf.mxu0
  %v2311 = vadd.f32 %v2292, %v2310
  %2312 = vmatmul.f32.gmra.mxu0 %v2273
  %v2313 = vpop.f32.mrf.mxu0
  %v2314 = vadd.f32 %v2292, %v2313
  %2315 = vdwg.mxu0
  %v2316 = vadd.f32 %v2311, %v2156
  %v2317 = vadd.f32 %v2314, %v2157
  %v2318 = vld [vmem:[%s2 + $0x10] sm:$0x1]
  %v2319 = vld [vmem:[%s2 + $0x11] sm:$0x1]
  %v2320 = vsel %vm36, %v2316, 0.0
  %2321 = vadd.xlane.f32.xlu0 %v2320
  %v2322 = vpop.xlane.xlu0 %2321
  %v2323 = vsel %vm36, %v2317, 0.0
  %2324 = vadd.xlane.f32.xlu0 %v2323
  %v2325 = vpop.xlane.xlu0 %2324
  %v2326 = vmul.f32 %v2322, %v49
  %v2327 = vmul.f32 %v2325, %v49
  %v2328 = vsub.f32 %v2316, %v2326
  %v2329 = vsub.f32 %v2317, %v2327
  %v2330 = vmul.f32 %v2328, %v2328
  %v2331 = vmul.f32 %v2329, %v2329
  %v2332 = vsel %vm36, %v2330, 0.0
  %2333 = vadd.xlane.f32.xlu0 %v2332
  %v2334 = vpop.xlane.xlu0 %2333
  %v2335 = vsel %vm36, %v2331, 0.0
  %2336 = vadd.xlane.f32.xlu0 %v2335
  %v2337 = vpop.xlane.xlu0 %2336
  %v2338 = vmul.f32 %v2334, %v49
  %v2339 = vmul.f32 %v2337, %v49
  %v2340 = vadd.f32 %v2338, 1e-05
  %v2341 = vadd.f32 %v2339, 1e-05
  %v2342 = vrsqrt.pop %v2340
  %v2343 = vmul.f32 %v2342, %v2340
  %v2344 = vmul.f32 %v2343, %v2342
  %v2345 = vmul.f32 0.5, %v2344
  %v2346 = vsub.f32 1.5, %v2345
  %v2347 = vmul.f32 %v2342, %v2346
  %vm2348 = vweird.f32 %v2340
  %vm2349 = vweird.f32 %v2342
  %vm2350 = vmor %vm2348, %vm2349
  %v2351 = vsel %vm2350, %v2342, %v2347
  %v2352 = vrsqrt.pop %v2341
  %v2353 = vmul.f32 %v2352, %v2341
  %v2354 = vmul.f32 %v2353, %v2352
  %v2355 = vmul.f32 0.5, %v2354
  %v2356 = vsub.f32 1.5, %v2355
  %v2357 = vmul.f32 %v2352, %v2356
  %vm2358 = vweird.f32 %v2341
  %vm2359 = vweird.f32 %v2352
  %vm2360 = vmor %vm2358, %vm2359
  %v2361 = vsel %vm2360, %v2352, %v2357
  %v2362 = vmul.f32 %v2328, %v2351
  %v2363 = vmul.f32 %v2329, %v2361
  %v2364 = vperm.slane %v2318, 0
  %v2365 = vmul.f32 %v2362, %v2364
  %v2366 = vmul.f32 %v2363, %v2364
  %v2367 = vperm.slane %v2319, 0
  %v2368 = vadd.f32 %v2365, %v2367
  %v2369 = vadd.f32 %v2366, %v2367
  %v2370 = vld [vmem:[%s7] sm:$0xff]
  %v2371 = vld [vmem:[%s7 + $0x8] sm:$0xff]
  %v2372 = vld [vmem:[%s7 + $0x10] sm:$0xff]
  %v2373 = vld [vmem:[%s7 + $0x18] sm:$0xff]
  %v2374 = vld [vmem:[%s2 + $0x12] sm:$0x1]
  %v2375 = vperm.slane %v2374, 0
  %v2377 = vsel %vm36, %v2368, 0
  %v2380 = vsel %vm36, %v2369, 0
  %2382 = vmatpush.msra.mxu0 0.0
  %2383 = vmatpush.msra.mxu0 0.0
  %2384 = vmatpush.msra.mxu0 0.0
  %2385 = vmatpush.msra.mxu0 0.0
  %2386 = vmatpush.msra.mxu0 0.0
  %2387 = vmatpush.msra.mxu0 0.0
  %2388 = vmatpush.msra.mxu0 0.0
  %2389 = vmatpush.msra.mxu0 0.0
  %2390 = vmatpush.msra.mxu0 0.0
  %2391 = vmatpush.msra.mxu0 0.0
  %2392 = vmatpush.msra.mxu0 0.0
  %2393 = vmatpush.msra.mxu0 0.0
  %2394 = vmatpush.msra.mxu0 %v2373
  %2395 = vmatpush.msra.mxu0 %v2372
  %2396 = vmatpush.msra.mxu0 %v2371
  %2397 = vmatpush.msra.mxu0 %v2370
  %2398 = vmatmul.f32.gmra.mxu0 %v2377
  %v2399 = vpop.f32.mrf.mxu0
  %v2400 = vadd.f32 %v2375, %v2399
  %2401 = vmatmul.f32.gmra.mxu0 %v2380
  %v2402 = vpop.f32.mrf.mxu0
  %v2403 = vadd.f32 %v2375, %v2402
  %2404 = vdwg.mxu0
  %v2405 = vmul.f32 %v2400, 0.5
  %v2406 = vmul.f32 %v2403, 0.5
  %v2407 = vmul.f32 %v2400, 0.70710677
  %v2408 = vmul.f32 %v2403, 0.70710677
  %vm2409 = vcmp.ge.f32.partialorder %v2407, 0.0
  %vm2410 = vcmp.ge.f32.partialorder %v2408, 0.0
  %v2411 = vsel %vm2409, 1.0, -1.0
  %v2412 = vsel %vm2410, 1.0, -1.0
  %v2413 = vand.u32 2147483647, %v2407
  %v2414 = vand.u32 2147483647, %v2408
  %v2415 = vmul.f32 %v2413, 0.3275911
  %v2416 = vmul.f32 %v2414, 0.3275911
  %v2417 = vadd.f32 %v2415, 1.0
  %v2418 = vadd.f32 %v2416, 1.0
  %v2419 = vrcp.pop %v2417
  %v2420 = vmul.f32 %v2417, %v2419
  %v2421 = vsub.f32 1.0, %v2420
  %v2422 = vmul.f32 %v2419, %v2421
  %v2423 = vadd.f32 %v2419, %v2422
  %vm2424 = vweird.f32 %v2417
  %vm2425 = vweird.f32 %v2419
  %vm2426 = vmor %vm2424, %vm2425
  %v2427 = vsel %vm2426, %v2419, %v2423
  %v2428 = vand.u32 2147483647, %v2417
  %vm2429 = vcmp.eq.f32.partialorder %v2428, 8.507059e+37
  %v2430 = vand.u32 %v2417, 2147483648
  %v2431 = vor.u32 1.1754944e-38, %v2430
  %v2432 = vsel %vm2429, %v2431, %v2427
  %v2433 = vmul.f32 1.0, %v2432
  %v2434 = vrcp.pop %v2418
  %v2435 = vmul.f32 %v2418, %v2434
  %v2436 = vsub.f32 1.0, %v2435
  %v2437 = vmul.f32 %v2434, %v2436
  %v2438 = vadd.f32 %v2434, %v2437
  %vm2439 = vweird.f32 %v2418
  %vm2440 = vweird.f32 %v2434
  %vm2441 = vmor %vm2439, %vm2440
  %v2442 = vsel %vm2441, %v2434, %v2438
  %v2443 = vand.u32 2147483647, %v2418
  %vm2444 = vcmp.eq.f32.partialorder %v2443, 8.507059e+37
  %v2445 = vand.u32 %v2418, 2147483648
  %v2446 = vor.u32 1.1754944e-38, %v2445
  %v2447 = vsel %vm2444, %v2446, %v2442
  %v2448 = vmul.f32 1.0, %v2447
  %v2449 = vmul.f32 %v2433, 1.0614054
  %v2450 = vmul.f32 %v2448, 1.0614054
  %v2451 = vadd.f32 %v2449, -1.4531521
  %v2452 = vadd.f32 %v2450, -1.4531521
  %v2453 = vmul.f32 %v2451, %v2433
  %v2454 = vmul.f32 %v2452, %v2448
  %v2455 = vadd.f32 %v2453, 1.4214138
  %v2456 = vadd.f32 %v2454, 1.4214138
  %v2457 = vmul.f32 %v2455, %v2433
  %v2458 = vmul.f32 %v2456, %v2448
  %v2459 = vadd.f32 %v2457, -0.28449672
  %v2460 = vadd.f32 %v2458, -0.28449672
  %v2461 = vmul.f32 %v2459, %v2433
  %v2462 = vmul.f32 %v2460, %v2448
  %v2463 = vadd.f32 %v2461, 0.2548296
  %v2464 = vadd.f32 %v2462, 0.2548296
  %v2465 = vmul.f32 %v2463, %v2433
  %v2466 = vmul.f32 %v2464, %v2448
  %v2467 = vsub.f32 0.0, %v2413
  %v2468 = vsub.f32 0.0, %v2414
  %v2469 = vmul.f32 %v2467, %v2413
  %v2470 = vmul.f32 %v2468, %v2414
  %v2471 = vmul.f32 %v2469, 1.442695
  %v2472 = vpow.pop %v2471
  %v2473 = vmul.f32 %v2470, 1.442695
  %v2474 = vpow.pop %v2473
  %v2475 = vmul.f32 %v2465, %v2472
  %v2476 = vmul.f32 %v2466, %v2474
  %v2477 = vsub.f32 1.0, %v2475
  %v2478 = vsub.f32 1.0, %v2476
  %v2479 = vmul.f32 %v2411, %v2477
  %v2480 = vmul.f32 %v2412, %v2478
  %v2481 = vadd.f32 %v2479, 1.0
  %v2482 = vadd.f32 %v2480, 1.0
  %v2483 = vmul.f32 %v2405, %v2481
  %v2484 = vmul.f32 %v2406, %v2482
  %v2485 = vld [vmem:[%s8] sm:$0xff]
  %v2486 = vld [vmem:[%s8 + $0x8] sm:$0xff]
  %v2487 = vld [vmem:[%s8 + $0x10] sm:$0xff]
  %v2488 = vld [vmem:[%s8 + $0x18] sm:$0xff]
  %v2489 = vld [vmem:[%s2 + $0x13] sm:$0x1]
  %v2490 = vperm.slane %v2489, 0
  %v2492 = vsel %vm36, %v2483, 0
  %v2495 = vsel %vm36, %v2484, 0
  %2497 = vmatpush.msra.mxu0 0.0
  %2498 = vmatpush.msra.mxu0 0.0
  %2499 = vmatpush.msra.mxu0 0.0
  %2500 = vmatpush.msra.mxu0 0.0
  %2501 = vmatpush.msra.mxu0 0.0
  %2502 = vmatpush.msra.mxu0 0.0
  %2503 = vmatpush.msra.mxu0 0.0
  %2504 = vmatpush.msra.mxu0 0.0
  %2505 = vmatpush.msra.mxu0 0.0
  %2506 = vmatpush.msra.mxu0 0.0
  %2507 = vmatpush.msra.mxu0 0.0
  %2508 = vmatpush.msra.mxu0 0.0
  %2509 = vmatpush.msra.mxu0 %v2488
  %2510 = vmatpush.msra.mxu0 %v2487
  %2511 = vmatpush.msra.mxu0 %v2486
  %2512 = vmatpush.msra.mxu0 %v2485
  %2513 = vmatmul.f32.gmra.mxu0 %v2492
  %v2514 = vpop.f32.mrf.mxu0
  %v2515 = vadd.f32 %v2490, %v2514
  %2516 = vmatmul.f32.gmra.mxu0 %v2495
  %v2517 = vpop.f32.mrf.mxu0
  %v2518 = vadd.f32 %v2490, %v2517
  %2519 = vdwg.mxu0
  %2520 = vst [vmem:[%s9] sm:$0xff] %v2515
  %2521 = vst [vmem:[%s9 + $0x8] sm:$0xff] %v2518
  // Predicated region
  $region38: #{transformer_forward.1} parent=0 // pred_check
    _
  $region39: #{transformer_forward.1} parent=0 // pred_check_branch
    %2523 = sbr.rel (0) target = $region41
  $region40: #{transformer_forward.1} parent=0 // pred_region
    _
  $region41: #{transformer_forward.1} parent=0 // pred_fallthru
    _
  // Predicated region
  $region42: #{transformer_forward.1} parent=0 // pred_check
    _
  $region43: #{transformer_forward.1} parent=0 // pred_check_branch
    %2525 = sbr.rel (0) target = $region45
  $region44: #{transformer_forward.1} parent=0 // pred_region
    _
  $region45: #{transformer_forward.1} parent=0 // pred_fallthru
    _

</llo_original>
